<compile_context>
chip_gen: v7x
topology: tpu7x:2x2x1
jax: 0.10.0
libtpu: 0.0.40
codegen_flags: <defaults>
</compile_context>

<pallas_src>
import functools

import numpy as np

import jax
import jax.numpy as jnp
from jax.experimental import pallas as pl
from jax.experimental.pallas import tpu as pltpu


def _dft_kernel(m_rows, mr, nh_pad, lhs_ref, rhs_ref, amp_ref, ph_ref, acc_ref):
    """Grid: (parity j: parallel across TCs, folded reduction k: arbitrary)."""
    k = pl.program_id(1)

    @pl.when(k == 0)
    def _():
        acc_ref[...] = jnp.zeros_like(acc_ref)

    # bf16 x bf16 -> f32 MXU dot.  LHS rows: [A block ; B block];
    # RHS lanes:  [cos | -sin]  =>  acc = [[Re, .], [., Im]].
    acc_ref[...] += jnp.dot(lhs_ref[0], rhs_ref[0],
                            preferred_element_type=jnp.float32)

    @pl.when(k == pl.num_programs(1) - 1)
    def _():
        re = acc_ref[pl.ds(0, m_rows), pl.ds(0, nh_pad)]
        im = acc_ref[pl.ds(mr, m_rows), pl.ds(nh_pad, nh_pad)]
        amp_ref[0] = jnp.sqrt(re * re + im * im)
        ph_ref[0] = jnp.arctan2(im, re)      # torch.angle == atan2(imag, real)


@functools.lru_cache(maxsize=8)
def _dft_rhs(L, N, nh_pad, k_pad):
    """Cached bf16 coefficient stack, shape (2, k_pad, 2*nh_pad).

    slab 0: even frequencies k = 2m,   slab 1: odd frequencies k = 2m+1,
    rows n = 0..L/4 (twice-folded reduction), lanes [cos | -sin].
    """
    Q1 = L // 4 + 1
    n = np.arange(Q1, dtype=np.int64)
    ne = (N + 1) // 2
    no = N // 2
    ke = 2 * np.arange(ne, dtype=np.int64)
    ko = 2 * np.arange(no, dtype=np.int64) + 1

    def blocks(kk):
        nk = (n[:, None] * kk[None, :]) % L            # keep angles in [0, 2*pi)
        th = (2.0 * np.pi / L) * nk.astype(np.float64)
        return np.cos(th), -np.sin(th)

    rhs = np.zeros((2, k_pad, 2 * nh_pad), dtype=np.float32)
    ce, se = blocks(ke)
    co, so = blocks(ko)
    rhs[0, :Q1, :ne] = ce
    rhs[0, :Q1, nh_pad:nh_pad + ne] = se
    rhs[1, :Q1, :no] = co
    rhs[1, :Q1, nh_pad:nh_pad + no] = so
    return jnp.asarray(rhs, dtype=jnp.bfloat16)


def _std_norm(v):
    # torch: mean over last dim, unbiased std (ddof=1), eps added to the std.
    mean = jnp.mean(v, axis=-1, keepdims=True)
    var = jnp.sum((v - mean) ** 2, axis=-1, keepdims=True) / (v.shape[-1] - 1)
    return (v - mean) / (jnp.sqrt(var) + 1e-6)


@functools.partial(jax.jit, static_argnames=("n_out", "tk"))
def _forward(x, rhs, *, n_out, tk):
    B, C, L = x.shape
    N = n_out
    half, quarter = L // 2, L // 4
    Q1 = quarter + 1
    ne, no = (N + 1) // 2, N // 2
    nh_pad = ((max(ne, no) + 127) // 128) * 128        # lane-aligned half width
    W2 = 2 * nh_pad                                    # [cos | -sin] lanes
    k_pad = ((Q1 + tk - 1) // tk) * tk                 # reduction padded to tile
    M = B * C
    Mr = ((M + 7) // 8) * 8                            # sublane-aligned row block
    R = 2 * Mr                                         # [A block ; B block]

    # ---- exact real-input folds (tiny, fused by XLA inside this jit) -------
    xf = x.reshape(M, L).astype(jnp.float32)
    zeros1 = jnp.zeros((M, 1), jnp.float32)
    xm = xf[:, 1:half]                                 # x[1 .. L/2-1]
    xmr = xf[:, half + 1:][:, ::-1]                    # x[L-1 .. L/2+1] reversed
    xe = jnp.concatenate([xf[:, 0:1], xm + xmr, xf[:, half:half + 1]], axis=1)
    xo = jnp.concatenate([zeros1, xm - xmr, zeros1], axis=1)          # (M, L/2+1)

    # second fold over n -> L/2 - n (even/odd frequency split)
    a, ar = xe[:, 1:quarter], xe[:, quarter + 1:half][:, ::-1]
    b, br = xo[:, 1:quarter], xo[:, quarter + 1:half][:, ::-1]
    xq_e = xe[:, quarter:quarter + 1]
    xq_o = xo[:, quarter:quarter + 1]
    A_e = jnp.concatenate([xe[:, 0:1] + xe[:, half:half + 1], a + ar, xq_e], 1)
    B_e = jnp.concatenate([zeros1, b - br, zeros1], 1)
    A_o = jnp.concatenate([xe[:, 0:1] - xe[:, half:half + 1], a - ar, xq_e], 1)
    B_o = jnp.concatenate([zeros1, b + br, xq_o], 1)                  # (M, Q1)

    lhs = jnp.zeros((2, R, k_pad), jnp.float32)
    lhs = lhs.at[0, :M, :Q1].set(A_e)
    lhs = lhs.at[0, Mr:Mr + M, :Q1].set(B_e)
    lhs = lhs.at[1, :M, :Q1].set(A_o)
    lhs = lhs.at[1, Mr:Mr + M, :Q1].set(B_o)
    lhs = lhs.astype(jnp.bfloat16)                     # cast once, stream bf16

    kernel = functools.partial(_dft_kernel, M, Mr, nh_pad)
    amp2, ph2 = pl.pallas_call(
        kernel,
        out_shape=(jax.ShapeDtypeStruct((2, M, nh_pad), jnp.float32),
                   jax.ShapeDtypeStruct((2, M, nh_pad), jnp.float32)),
        grid_spec=pltpu.PrefetchScalarGridSpec(
            num_scalar_prefetch=0,
            grid=(2, k_pad // tk),                     # (parity, reduction)
            in_specs=[
                pl.BlockSpec((1, R, tk), lambda j, k: (j, 0, k)),    # folded x
                pl.BlockSpec((1, tk, W2), lambda j, k: (j, k, 0)),   # [cos|-sin]
            ],
            out_specs=(
                pl.BlockSpec((1, M, nh_pad), lambda j, k: (j, 0, 0)),  # amplitude
                pl.BlockSpec((1, M, nh_pad), lambda j, k: (j, 0, 0)),  # phase
            ),
            scratch_shapes=[
                pltpu.VMEM((R, W2), jnp.float32),      # [Re | Im] accumulator
            ],
        ),
        compiler_params=pltpu.CompilerParams(
            dimension_semantics=("parallel", "arbitrary"),
        ),
    )(lhs, rhs)

    # Re-interleave even/odd frequency columns, then standardize (cheap fused
    # XLA on (M, N) f32; std-norm is invariant to the column permutation).
    def interleave(v2):
        out = jnp.zeros((M, N), jnp.float32)
        out = out.at[:, 0::2].set(v2[0, :, :ne])
        out = out.at[:, 1::2].set(v2[1, :, :no])
        return out

    amp = _std_norm(interleave(amp2)).reshape(B, C, N)
    ph = _std_norm(interleave(ph2)).reshape(B, C, N)
    return amp, ph


def fourier_spectrum_processor(x, target_sequence_length=1000, tk=768):
    """JAX/Pallas equivalent of FourierSpectrumProcessor.forward (slice path)."""
    B, C, L = x.shape
    if C != 2 or L != 9000:
        raise ValueError(f"expected input shape (batch, 2, 9000), got {x.shape}")
    N = target_sequence_length
    ne, no = (N + 1) // 2, N // 2
    nh_pad = ((max(ne, no) + 127) // 128) * 128
    Q1 = L // 4 + 1
    k_pad = ((Q1 + tk - 1) // tk) * tk
    rhs = _dft_rhs(L, N, nh_pad, k_pad)       # cached, device-resident bf16
    return _forward(x, rhs, n_out=N, tk=tk)


if __name__ == "__main__":
    # Small batch; channels=2 and seq_len=9000 are mandated by the module.
    key = jax.random.PRNGKey(0)
    x = jax.random.normal(key, (2, 2, 9000), dtype=jnp.float32)

    amp, ph = fourier_spectrum_processor(x, target_sequence_length=1000)
    jax.block_until_ready((amp, ph))

    assert amp.shape == (2, 2, 1000), amp.shape
    assert ph.shape == (2, 2, 1000), ph.shape
    assert bool(jnp.isfinite(amp).all()) and bool(jnp.isfinite(ph).all())

    # Sanity check against a plain-XLA FFT reference.  Loose tolerances: the
    # kernel streams bf16 coefficients and phase is ill-conditioned where the
    # spectrum magnitude is tiny.
    xfft = jnp.fft.fft(x, axis=-1)[..., :1000]
    amp_ref = _std_norm(jnp.abs(xfft))
    ph_ref = _std_norm(jnp.angle(xfft))
    amp_err = float(jnp.max(jnp.abs(amp - amp_ref)))
    ph_bad = float(jnp.mean((jnp.abs(ph - ph_ref) > 0.3).astype(jnp.float32)))
    assert amp_err < 0.2, f"amplitude mismatch vs FFT reference: {amp_err}"
    assert ph_bad < 0.01, f"too many phase outliers vs FFT reference: {ph_bad}"

    print("KERNEL_OK")
</pallas_src>

<mosaic_0001>
module attributes {stable_mosaic.version = 11 : i64} {
  func.func @_dft_kernel(%arg0: i32, %arg1: i32, %arg2: memref<1x16x768xbf16, #tpu.memory_space<vmem>>, %arg3: memref<1x768x1024xbf16, #tpu.memory_space<vmem>>, %arg4: memref<1x4x512xf32, #tpu.memory_space<vmem>>, %arg5: memref<1x4x512xf32, #tpu.memory_space<vmem>>, %arg6: memref<16x1024xf32, #tpu.memory_space<vmem>>) attributes {dimension_semantics = [#tpu.dimension_semantics<parallel>, #tpu.dimension_semantics<arbitrary>], iteration_bounds = array<i64: 2, 3>, scalar_prefetch = 0 : i64, scratch_operands = 1 : i64, tpu.core_type = #tpu.core_type<tc>, window_params = [{transform_indices = @transform_0, window_bounds = array<i64: 1, 16, 768>}, {transform_indices = @transform_1, window_bounds = array<i64: 1, 768, 1024>}, {transform_indices = @transform_2, window_bounds = array<i64: 1, 4, 512>}, {transform_indices = @transform_3, window_bounds = array<i64: 1, 4, 512>}]} {
    %c0_i32 = arith.constant 0 : i32
    %0 = arith.cmpi eq, %arg1, %c0_i32 : i32
    %1 = arith.extui %0 : i1 to i32
    %c0_i32_0 = arith.constant 0 : i32
    %2 = arith.cmpi ne, %1, %c0_i32_0 : i32
    scf.if %2 {
      %cst_11 = arith.constant 0.000000e+00 : f32
      %14 = vector.broadcast %cst_11 : f32 to vector<16x1024xf32>
      %c0_12 = arith.constant 0 : index
      %c0_13 = arith.constant 0 : index
      %15 = vector.load %arg6[%c0_12, %c0_13] : memref<16x1024xf32, #tpu.memory_space<vmem>>, vector<16x1024xf32>
      tpu.vector_store %arg6[%c0_12, %c0_13], %14 {strides = array<i32>} : memref<16x1024xf32, #tpu.memory_space<vmem>>, vector<16x1024xf32>,
    } else {
    }
    %c0 = arith.constant 0 : index
    %c0_1 = arith.constant 0 : index
    %3 = vector.load %arg6[%c0, %c0_1] : memref<16x1024xf32, #tpu.memory_space<vmem>>, vector<16x1024xf32>
    %c0_2 = arith.constant 0 : index
    %c0_3 = arith.constant 0 : index
    %c0_4 = arith.constant 0 : index
    %4 = vector.load %arg2[%c0_2, %c0_3, %c0_4] : memref<1x16x768xbf16, #tpu.memory_space<vmem>>, vector<1x16x768xbf16>
    %5 = vector.shape_cast %4 : vector<1x16x768xbf16> to vector<16x768xbf16>
    %c0_5 = arith.constant 0 : index
    %c0_6 = arith.constant 0 : index
    %c0_7 = arith.constant 0 : index
    %6 = vector.load %arg3[%c0_5, %c0_6, %c0_7] : memref<1x768x1024xbf16, #tpu.memory_space<vmem>>, vector<1x768x1024xbf16>
    %7 = vector.shape_cast %6 : vector<1x768x1024xbf16> to vector<768x1024xbf16>
    %cst = arith.constant dense<0.000000e+00> : vector<16x1024xf32>
    %8 = tpu.matmul %5, %7, %cst {dimension_numbers = #tpu.dot_dimension_numbers<[1], [0], [0], [1], [0, 0, 1, 1], [], []>} : vector<16x768xbf16>, vector<768x1024xbf16>, vector<16x1024xf32> -> vector<16x1024xf32>
    %9 = arith.addf %3, %8 : vector<16x1024xf32>
    %c0_8 = arith.constant 0 : index
    %c0_9 = arith.constant 0 : index
    %10 = vector.load %arg6[%c0_8, %c0_9] : memref<16x1024xf32, #tpu.memory_space<vmem>>, vector<16x1024xf32>
    tpu.vector_store %arg6[%c0_8, %c0_9], %9 {strides = array<i32>} : memref<16x1024xf32, #tpu.memory_space<vmem>>, vector<16x1024xf32>,
    %c2_i32 = arith.constant 2 : i32
    %11 = arith.cmpi eq, %arg1, %c2_i32 : i32
    %12 = arith.extui %11 : i1 to i32
    %c0_i32_10 = arith.constant 0 : i32
    %13 = arith.cmpi ne, %12, %c0_i32_10 : i32
    scf.if %13 {
      %c0_11 = arith.constant 0 : index
      %c0_12 = arith.constant 0 : index
      %14 = vector.load %arg6[%c0_11, %c0_12] : memref<16x1024xf32, #tpu.memory_space<vmem>>, vector<4x512xf32>
      %c8 = arith.constant 8 : index
      %c512 = arith.constant 512 : index
      %15 = vector.load %arg6[%c8, %c512] : memref<16x1024xf32, #tpu.memory_space<vmem>>, vector<4x512xf32>
      %16 = arith.mulf %14, %14 : vector<4x512xf32>
      %17 = arith.mulf %15, %15 : vector<4x512xf32>
      %18 = arith.addf %16, %17 : vector<4x512xf32>
      %19 = math.sqrt %18 : vector<4x512xf32>
      %c0_13 = arith.constant 0 : index
      %c0_14 = arith.constant 0 : index
      %c0_15 = arith.constant 0 : index
      %20 = vector.load %arg4[%c0_13, %c0_14, %c0_15] : memref<1x4x512xf32, #tpu.memory_space<vmem>>, vector<1x4x512xf32>
      %21 = vector.shape_cast %20 : vector<1x4x512xf32> to vector<4x512xf32>
      %22 = vector.shape_cast %19 : vector<4x512xf32> to vector<1x4x512xf32>
      tpu.vector_store %arg4[%c0_13, %c0_14, %c0_15], %22 {strides = array<i32>} : memref<1x4x512xf32, #tpu.memory_space<vmem>>, vector<1x4x512xf32>,
      %23 = math.atan2 %15, %14 : vector<4x512xf32>
      %c0_16 = arith.constant 0 : index
      %c0_17 = arith.constant 0 : index
      %c0_18 = arith.constant 0 : index
      %24 = vector.load %arg5[%c0_16, %c0_17, %c0_18] : memref<1x4x512xf32, #tpu.memory_space<vmem>>, vector<1x4x512xf32>
      %25 = vector.shape_cast %24 : vector<1x4x512xf32> to vector<4x512xf32>
      %26 = vector.shape_cast %23 : vector<4x512xf32> to vector<1x4x512xf32>
      tpu.vector_store %arg5[%c0_16, %c0_17, %c0_18], %26 {strides = array<i32>} : memref<1x4x512xf32, #tpu.memory_space<vmem>>, vector<1x4x512xf32>,
    } else {
    }
    return
  }
  func.func @transform_0(%arg0: i32, %arg1: i32) -> (i32, i32, i32) {
    %c0_i32 = arith.constant 0 : i32
    %c0_i32_0 = arith.constant 0 : i32
    return %arg0, %c0_i32, %arg1 : i32, i32, i32
  }
  func.func @transform_1(%arg0: i32, %arg1: i32) -> (i32, i32, i32) {
    %c0_i32 = arith.constant 0 : i32
    %c0_i32_0 = arith.constant 0 : i32
    return %arg0, %arg1, %c0_i32 : i32, i32, i32
  }
  func.func @transform_2(%arg0: i32, %arg1: i32) -> (i32, i32, i32) {
    %c0_i32 = arith.constant 0 : i32
    %c0_i32_0 = arith.constant 0 : i32
    %c0_i32_1 = arith.constant 0 : i32
    return %arg0, %c0_i32, %c0_i32_0 : i32, i32, i32
  }
  func.func @transform_3(%arg0: i32, %arg1: i32) -> (i32, i32, i32) {
    %c0_i32 = arith.constant 0 : i32
    %c0_i32_0 = arith.constant 0 : i32
    %c0_i32_1 = arith.constant 0 : i32
    return %arg0, %c0_i32, %c0_i32_0 : i32, i32, i32
  }
}

</mosaic_0001>

<llo_original>
// kernel: reverse
$region0: #{reverse}
  %s0 = inlined_call_operand.vmem [shape: f32[4,4608], index: 0, kind: input, shape index: {}]
  %s1 = inlined_call_operand.vmem [shape: f32[4,4608], index: 1, kind: output, shape index: {}]
  %v2 = vlaneseq
  %v3 = vsub.s32 127, %v2
  %4 = vset.pattern.permute.xlu0 %v3
  $region1: #{reverse} parent=0
    #allocation0 [shape = 'u8[4096]{0}', space=vmem, size = 0x1000, scoped, tag = 'operand span for operand 0']
    #allocation1 [shape = 'u8[4096]{0}', space=vmem, size = 0x1000, scoped, tag = 'packed  for operand 0']
    #allocation2 [shape = 'u8[4096]{0}', space=vmem, size = 0x1000, scoped, tag = 'operand span for operand 1']
    #allocation3 [shape = 'u8[4096]{0}', space=vmem, size = 0x1000, scoped, tag = 'packed  for operand 1']
    loop: start=0, step=1, limit=38
    $region2: #{reverse} parent=1 // loop_pre_header
      _
    $region3: #{reverse} parent=1 // loop_header
      %s6 = sphi 0, %s10
      %p7 = scmp.ge.s32.totalorder %s6, 38
      %s13 = sphi 0, %s25
      %s14 = sphi 0, %s21
      %s15 = sphi 0, %s13
      %s16 = sphi 0, %s14
      %s17 = sphi 0, %s15
      %s18 = sphi 0, %s16
    $region4: #{reverse} parent=1 // loop_header_branch
      %9 = sbr.rel (%p7) target = $region8
    $region5: #{reverse} parent=1 // loop_body
      %s11 = ssub.s32 %s6, 1
      %s12 = ssub.s32 %s6, 2
      %s19 = sadd.s32 1, %s14
      %p20 = scmp.ge.s32.totalorder %s19, 36
      %s21 = scalar_select %p20, 0, %s19
      %s22 = sadd.s32 1, %s13
      %s23 = scalar_select %p20, %s22, %s13
      %p24 = scmp.ge.s32.totalorder %s23, 1
      %s25 = scalar_select %p24, 0, %s23
      %p26 = scmp.le.s32.totalorder 1, %s6
      %p27 = scmp.lt.s32.totalorder %s6, 37
      %p28 = pnand %p26, %p27
      %p29 = pneg %p28
      // Predicated region
      $region9: #{reverse} parent=5 // pred_check
        _
      $region10: #{reverse} parent=5 // pred_check_branch
        %31 = sbr.rel (%p28) target = $region12
      $region11: #{reverse} parent=5 // pred_region
        %s32 = ssub.s32 %s6, 1
      $region12: #{reverse} parent=5 // pred_fallthru
        _
      %p33 = scmp.lt.s32.totalorder %s6, 36
      // Predicated region
      $region13: #{reverse} parent=5 // pred_check
        %p34 = pneg %p33
      $region14: #{reverse} parent=5 // pred_check_branch
        %36 = sbr.rel (%p34) target = $region16
      $region15: #{reverse} parent=5 // pred_region
        %s37 = sand.u32 %s6, 1
        %s38 = sand.u32 %s6, 1
        %s39 = smul.addr %s38, 4
        %s40 = scalar_lea.vmem [#allocation1], %s39
        %s41 = ssub.s32 35, %s14
        %s42 = smul.addr %s13, 36
        %s43 = sadd.s32 %s41, %s42
        %s44 = smul.addr %s43, 4
        %s45 = scalar_lea.vmem %s0, %s44
        // Predicated region
        $region17: #{reverse} parent=15 // pred_check
          _
        $region18: #{reverse} parent=15 // pred_check_branch
          %47 = sbr.rel (0) target = $region20
        $region19: #{reverse} parent=15 // pred_region
          // Predicated region
          $region21: #{reverse} parent=19 // pred_check
            _
          $region22: #{reverse} parent=19 // pred_check_branch
            %49 = sbr.rel target = $region24
          $region23: #{reverse} parent=19 // pred_region
            // Predicated region
            $region36: #{reverse} parent=23 // pred_check
              _
            $region37: #{reverse} parent=23 // pred_check_branch
              %64 = sbr.rel (0) target = $region39
            $region38: #{reverse} parent=23 // pred_region
              loop: start=0, step=1, limit=1
              $region40: #{reverse} parent=38 // loop_pre_header
                _
              $region41: #{reverse} parent=38 // loop_header
                %s67 = sphi 0, %s71
                %p68 = scmp.ge.s32.totalorder %s67, 1
                %s72 = sphi %s45, %s45
                %s73 = sphi %s40, %s40
              $region42: #{reverse} parent=38 // loop_header_branch
                %70 = sbr.rel (%p68) target = $region46
              $region43: #{reverse} parent=38 // loop_body
                %v74 = vld [vmem:[%s72] sm:$0xf]
                %75 = vst [vmem:[%s73] sm:$0xf] %v74
              $region44: #{reverse} parent=38 // loop_footer
                %s71 = sadd.s32 1, %s67
              $region45: #{reverse} parent=38 // loop_footer_branch
                %66 = sbr.rel target = $region41
              $region46: #{reverse} parent=38 // loop_exit
                _
            $region39: #{reverse} parent=23 // pred_fallthru
              _
          $region24: #{reverse} parent=19 // pred_fallthru
            _
          // Predicated region
          $region25: #{reverse} parent=19 // pred_check
            _
          $region26: #{reverse} parent=19 // pred_check_branch
            %51 = sbr.rel (0) target = $region28
          $region27: #{reverse} parent=19 // pred_region
            loop: start=0, step=1, limit=1
            $region29: #{reverse} parent=27 // loop_pre_header
              _
            $region30: #{reverse} parent=27 // loop_header
              %s54 = sphi 0, %s58
              %p55 = scmp.ge.s32.totalorder %s54, 1
              %s59 = sphi %s45, %s45
              %s60 = sphi %s40, %s40
            $region31: #{reverse} parent=27 // loop_header_branch
              %57 = sbr.rel (%p55) target = $region35
            $region32: #{reverse} parent=27 // loop_body
              %v61 = vld [vmem:[%s59] sm:$0xf]
              %62 = vst [vmem:[%s60] sm:$0xf] %v61
            $region33: #{reverse} parent=27 // loop_footer
              %s58 = sadd.s32 1, %s54
            $region34: #{reverse} parent=27 // loop_footer_branch
              %53 = sbr.rel target = $region30
            $region35: #{reverse} parent=27 // loop_exit
              _
          $region28: #{reverse} parent=19 // pred_fallthru
            _
        $region20: #{reverse} parent=15 // pred_fallthru
          _
        %76 = vnop
      $region16: #{reverse} parent=5 // pred_fallthru
        _
      %p77 = scmp.le.s32.totalorder 1, %s6
      %p78 = scmp.lt.s32.totalorder %s6, 37
      %p79 = pnand %p77, %p78
      %p80 = pneg %p79
      // Predicated region
      $region47: #{reverse} parent=5 // pred_check
        _
      $region48: #{reverse} parent=5 // pred_check_branch
        %82 = sbr.rel (%p79) target = $region50
      $region49: #{reverse} parent=5 // pred_region
        %s83 = ssub.s32 %s6, 1
        %s84 = sand.u32 %s11, 1
        %s85 = sand.u32 %s11, 1
        %s86 = smul.addr %s85, 4
        %s87 = scalar_lea.vmem [#allocation1], %s86
        %s88 = sand.u32 %s11, 1
        %s89 = sand.u32 %s11, 1
        %s90 = smul.addr %s89, 4
        %s91 = scalar_lea.vmem [#allocation1], %s90
        %s92 = sand.u32 %s11, 1
        %s93 = sand.u32 %s11, 1
        %s94 = smul.addr %s93, 4
        %s95 = scalar_lea.vmem [#allocation3], %s94
        %s97 = sshllo.u32 0, 4
        %v98 = vld [vmem:[%s91] sm:%s97]
        %99 = vst [vmem:[#allocation0] sm:%s97] %v98
        %s100 = ssub.s32 35, %s16
        %v101 = vld [vmem:[#allocation0] sm:$0xff]
        %102 = vperm.xlu0 %4, %v101
        %v103 = vpop.permute.xlu0 %102
        %104 = vst [vmem:[#allocation2] sm:$0xff] %v103
        %s106 = sshllo.u32 0, 4
        %v108 = vld [vmem:[#allocation2] sm:%s106]
        %s109 = sshllo.u32 0, 4
        %110 = vst [vmem:[%s95] sm:%s109] %v108
        %s111 = sand.u32 %s11, 1
        %s112 = sand.u32 %s11, 1
        %s113 = smul.addr %s112, 4
        %s114 = scalar_lea.vmem [#allocation3], %s113
        %s115 = smul.addr %s15, 36
        %s116 = sadd.s32 %s16, %s115
        %s117 = smul.addr %s116, 4
        %s118 = scalar_lea.vmem %s1, %s117
        // Predicated region
        $region51: #{reverse} parent=49 // pred_check
          _
        $region52: #{reverse} parent=49 // pred_check_branch
          %120 = sbr.rel (0) target = $region54
        $region53: #{reverse} parent=49 // pred_region
          // Predicated region
          $region55: #{reverse} parent=53 // pred_check
            _
          $region56: #{reverse} parent=53 // pred_check_branch
            %122 = sbr.rel target = $region58
          $region57: #{reverse} parent=53 // pred_region
            // Predicated region
            $region70: #{reverse} parent=57 // pred_check
              _
            $region71: #{reverse} parent=57 // pred_check_branch
              %137 = sbr.rel (0) target = $region73
            $region72: #{reverse} parent=57 // pred_region
              loop: start=0, step=1, limit=1
              $region74: #{reverse} parent=72 // loop_pre_header
                _
              $region75: #{reverse} parent=72 // loop_header
                %s140 = sphi 0, %s144
                %p141 = scmp.ge.s32.totalorder %s140, 1
                %s145 = sphi %s114, %s114
                %s146 = sphi %s118, %s118
              $region76: #{reverse} parent=72 // loop_header_branch
                %143 = sbr.rel (%p141) target = $region80
              $region77: #{reverse} parent=72 // loop_body
                %v147 = vld [vmem:[%s145] sm:$0xf]
                %148 = vst [vmem:[%s146] sm:$0xf] %v147
              $region78: #{reverse} parent=72 // loop_footer
                %s144 = sadd.s32 1, %s140
              $region79: #{reverse} parent=72 // loop_footer_branch
                %139 = sbr.rel target = $region75
              $region80: #{reverse} parent=72 // loop_exit
                _
            $region73: #{reverse} parent=57 // pred_fallthru
              _
          $region58: #{reverse} parent=53 // pred_fallthru
            _
          // Predicated region
          $region59: #{reverse} parent=53 // pred_check
            _
          $region60: #{reverse} parent=53 // pred_check_branch
            %124 = sbr.rel (0) target = $region62
          $region61: #{reverse} parent=53 // pred_region
            loop: start=0, step=1, limit=1
            $region63: #{reverse} parent=61 // loop_pre_header
              _
            $region64: #{reverse} parent=61 // loop_header
              %s127 = sphi 0, %s131
              %p128 = scmp.ge.s32.totalorder %s127, 1
              %s132 = sphi %s114, %s114
              %s133 = sphi %s118, %s118
            $region65: #{reverse} parent=61 // loop_header_branch
              %130 = sbr.rel (%p128) target = $region69
            $region66: #{reverse} parent=61 // loop_body
              %v134 = vld [vmem:[%s132] sm:$0xf]
              %135 = vst [vmem:[%s133] sm:$0xf] %v134
            $region67: #{reverse} parent=61 // loop_footer
              %s131 = sadd.s32 1, %s127
            $region68: #{reverse} parent=61 // loop_footer_branch
              %126 = sbr.rel target = $region64
            $region69: #{reverse} parent=61 // loop_exit
              _
          $region62: #{reverse} parent=53 // pred_fallthru
            _
        $region54: #{reverse} parent=49 // pred_fallthru
          _
        %149 = vnop
      $region50: #{reverse} parent=5 // pred_fallthru
        _
      %p150 = scmp.le.s32.totalorder 2, %s6
      // Predicated region
      $region81: #{reverse} parent=5 // pred_check
        %p151 = pneg %p150
      $region82: #{reverse} parent=5 // pred_check_branch
        %153 = sbr.rel (%p151) target = $region84
      $region83: #{reverse} parent=5 // pred_region
        %s154 = ssub.s32 %s6, 2
        %s155 = sand.u32 %s12, 1
        %s156 = sand.u32 %s12, 1
        %s157 = smul.addr %s156, 4
        %s158 = scalar_lea.vmem [#allocation3], %s157
      $region84: #{reverse} parent=5 // pred_fallthru
        _
    $region6: #{reverse} parent=1 // loop_footer
      %s10 = sadd.s32 1, %s6
    $region7: #{reverse} parent=1 // loop_footer_branch
      %5 = sbr.rel target = $region3
    $region8: #{reverse} parent=1 // loop_exit
      _

// kernel: reverse.1
$region0: #{reverse.1}
  %s0 = inlined_call_operand.vmem [shape: f32[4,2304], index: 0, kind: input, shape index: {}]
  %s1 = inlined_call_operand.vmem [shape: f32[4,2304], index: 1, kind: output, shape index: {}]
  %v2 = vlaneseq
  %v3 = vsub.s32 127, %v2
  %4 = vset.pattern.permute.xlu0 %v3
  $region1: #{reverse.1} parent=0
    #allocation0 [shape = 'u8[4096]{0}', space=vmem, size = 0x1000, scoped, tag = 'operand span for operand 0']
    #allocation1 [shape = 'u8[4096]{0}', space=vmem, size = 0x1000, scoped, tag = 'packed  for operand 0']
    #allocation2 [shape = 'u8[4096]{0}', space=vmem, size = 0x1000, scoped, tag = 'operand span for operand 1']
    #allocation3 [shape = 'u8[4096]{0}', space=vmem, size = 0x1000, scoped, tag = 'packed  for operand 1']
    loop: start=0, step=1, limit=20
    $region2: #{reverse.1} parent=1 // loop_pre_header
      _
    $region3: #{reverse.1} parent=1 // loop_header
      %s6 = sphi 0, %s10
      %p7 = scmp.ge.s32.totalorder %s6, 20
      %s13 = sphi 0, %s25
      %s14 = sphi 0, %s21
      %s15 = sphi 0, %s13
      %s16 = sphi 0, %s14
      %s17 = sphi 0, %s15
      %s18 = sphi 0, %s16
    $region4: #{reverse.1} parent=1 // loop_header_branch
      %9 = sbr.rel (%p7) target = $region8
    $region5: #{reverse.1} parent=1 // loop_body
      %s11 = ssub.s32 %s6, 1
      %s12 = ssub.s32 %s6, 2
      %s19 = sadd.s32 1, %s14
      %p20 = scmp.ge.s32.totalorder %s19, 18
      %s21 = scalar_select %p20, 0, %s19
      %s22 = sadd.s32 1, %s13
      %s23 = scalar_select %p20, %s22, %s13
      %p24 = scmp.ge.s32.totalorder %s23, 1
      %s25 = scalar_select %p24, 0, %s23
      %p26 = scmp.le.s32.totalorder 1, %s6
      %p27 = scmp.lt.s32.totalorder %s6, 19
      %p28 = pnand %p26, %p27
      %p29 = pneg %p28
      // Predicated region
      $region9: #{reverse.1} parent=5 // pred_check
        _
      $region10: #{reverse.1} parent=5 // pred_check_branch
        %31 = sbr.rel (%p28) target = $region12
      $region11: #{reverse.1} parent=5 // pred_region
        %s32 = ssub.s32 %s6, 1
      $region12: #{reverse.1} parent=5 // pred_fallthru
        _
      %p33 = scmp.lt.s32.totalorder %s6, 18
      // Predicated region
      $region13: #{reverse.1} parent=5 // pred_check
        %p34 = pneg %p33
      $region14: #{reverse.1} parent=5 // pred_check_branch
        %36 = sbr.rel (%p34) target = $region16
      $region15: #{reverse.1} parent=5 // pred_region
        %s37 = sand.u32 %s6, 1
        %s38 = sand.u32 %s6, 1
        %s39 = smul.addr %s38, 4
        %s40 = scalar_lea.vmem [#allocation1], %s39
        %s41 = ssub.s32 17, %s14
        %s42 = smul.addr %s13, 18
        %s43 = sadd.s32 %s41, %s42
        %s44 = smul.addr %s43, 4
        %s45 = scalar_lea.vmem %s0, %s44
        // Predicated region
        $region17: #{reverse.1} parent=15 // pred_check
          _
        $region18: #{reverse.1} parent=15 // pred_check_branch
          %47 = sbr.rel (0) target = $region20
        $region19: #{reverse.1} parent=15 // pred_region
          // Predicated region
          $region21: #{reverse.1} parent=19 // pred_check
            _
          $region22: #{reverse.1} parent=19 // pred_check_branch
            %49 = sbr.rel target = $region24
          $region23: #{reverse.1} parent=19 // pred_region
            // Predicated region
            $region36: #{reverse.1} parent=23 // pred_check
              _
            $region37: #{reverse.1} parent=23 // pred_check_branch
              %64 = sbr.rel (0) target = $region39
            $region38: #{reverse.1} parent=23 // pred_region
              loop: start=0, step=1, limit=1
              $region40: #{reverse.1} parent=38 // loop_pre_header
                _
              $region41: #{reverse.1} parent=38 // loop_header
                %s67 = sphi 0, %s71
                %p68 = scmp.ge.s32.totalorder %s67, 1
                %s72 = sphi %s45, %s45
                %s73 = sphi %s40, %s40
              $region42: #{reverse.1} parent=38 // loop_header_branch
                %70 = sbr.rel (%p68) target = $region46
              $region43: #{reverse.1} parent=38 // loop_body
                %v74 = vld [vmem:[%s72] sm:$0xf]
                %75 = vst [vmem:[%s73] sm:$0xf] %v74
              $region44: #{reverse.1} parent=38 // loop_footer
                %s71 = sadd.s32 1, %s67
              $region45: #{reverse.1} parent=38 // loop_footer_branch
                %66 = sbr.rel target = $region41
              $region46: #{reverse.1} parent=38 // loop_exit
                _
            $region39: #{reverse.1} parent=23 // pred_fallthru
              _
          $region24: #{reverse.1} parent=19 // pred_fallthru
            _
          // Predicated region
          $region25: #{reverse.1} parent=19 // pred_check
            _
          $region26: #{reverse.1} parent=19 // pred_check_branch
            %51 = sbr.rel (0) target = $region28
          $region27: #{reverse.1} parent=19 // pred_region
            loop: start=0, step=1, limit=1
            $region29: #{reverse.1} parent=27 // loop_pre_header
              _
            $region30: #{reverse.1} parent=27 // loop_header
              %s54 = sphi 0, %s58
              %p55 = scmp.ge.s32.totalorder %s54, 1
              %s59 = sphi %s45, %s45
              %s60 = sphi %s40, %s40
            $region31: #{reverse.1} parent=27 // loop_header_branch
              %57 = sbr.rel (%p55) target = $region35
            $region32: #{reverse.1} parent=27 // loop_body
              %v61 = vld [vmem:[%s59] sm:$0xf]
              %62 = vst [vmem:[%s60] sm:$0xf] %v61
            $region33: #{reverse.1} parent=27 // loop_footer
              %s58 = sadd.s32 1, %s54
            $region34: #{reverse.1} parent=27 // loop_footer_branch
              %53 = sbr.rel target = $region30
            $region35: #{reverse.1} parent=27 // loop_exit
              _
          $region28: #{reverse.1} parent=19 // pred_fallthru
            _
        $region20: #{reverse.1} parent=15 // pred_fallthru
          _
        %76 = vnop
      $region16: #{reverse.1} parent=5 // pred_fallthru
        _
      %p77 = scmp.le.s32.totalorder 1, %s6
      %p78 = scmp.lt.s32.totalorder %s6, 19
      %p79 = pnand %p77, %p78
      %p80 = pneg %p79
      // Predicated region
      $region47: #{reverse.1} parent=5 // pred_check
        _
      $region48: #{reverse.1} parent=5 // pred_check_branch
        %82 = sbr.rel (%p79) target = $region50
      $region49: #{reverse.1} parent=5 // pred_region
        %s83 = ssub.s32 %s6, 1
        %s84 = sand.u32 %s11, 1
        %s85 = sand.u32 %s11, 1
        %s86 = smul.addr %s85, 4
        %s87 = scalar_lea.vmem [#allocation1], %s86
        %s88 = sand.u32 %s11, 1
        %s89 = sand.u32 %s11, 1
        %s90 = smul.addr %s89, 4
        %s91 = scalar_lea.vmem [#allocation1], %s90
        %s92 = sand.u32 %s11, 1
        %s93 = sand.u32 %s11, 1
        %s94 = smul.addr %s93, 4
        %s95 = scalar_lea.vmem [#allocation3], %s94
        %s97 = sshllo.u32 0, 4
        %v98 = vld [vmem:[%s91] sm:%s97]
        %99 = vst [vmem:[#allocation0] sm:%s97] %v98
        %s100 = ssub.s32 17, %s16
        %v101 = vld [vmem:[#allocation0] sm:$0xff]
        %102 = vperm.xlu0 %4, %v101
        %v103 = vpop.permute.xlu0 %102
        %104 = vst [vmem:[#allocation2] sm:$0xff] %v103
        %s106 = sshllo.u32 0, 4
        %v108 = vld [vmem:[#allocation2] sm:%s106]
        %s109 = sshllo.u32 0, 4
        %110 = vst [vmem:[%s95] sm:%s109] %v108
        %s111 = sand.u32 %s11, 1
        %s112 = sand.u32 %s11, 1
        %s113 = smul.addr %s112, 4
        %s114 = scalar_lea.vmem [#allocation3], %s113
        %s115 = smul.addr %s15, 18
        %s116 = sadd.s32 %s16, %s115
        %s117 = smul.addr %s116, 4
        %s118 = scalar_lea.vmem %s1, %s117
        // Predicated region
        $region51: #{reverse.1} parent=49 // pred_check
          _
        $region52: #{reverse.1} parent=49 // pred_check_branch
          %120 = sbr.rel (0) target = $region54
        $region53: #{reverse.1} parent=49 // pred_region
          // Predicated region
          $region55: #{reverse.1} parent=53 // pred_check
            _
          $region56: #{reverse.1} parent=53 // pred_check_branch
            %122 = sbr.rel target = $region58
          $region57: #{reverse.1} parent=53 // pred_region
            // Predicated region
            $region70: #{reverse.1} parent=57 // pred_check
              _
            $region71: #{reverse.1} parent=57 // pred_check_branch
              %137 = sbr.rel (0) target = $region73
            $region72: #{reverse.1} parent=57 // pred_region
              loop: start=0, step=1, limit=1
              $region74: #{reverse.1} parent=72 // loop_pre_header
                _
              $region75: #{reverse.1} parent=72 // loop_header
                %s140 = sphi 0, %s144
                %p141 = scmp.ge.s32.totalorder %s140, 1
                %s145 = sphi %s114, %s114
                %s146 = sphi %s118, %s118
              $region76: #{reverse.1} parent=72 // loop_header_branch
                %143 = sbr.rel (%p141) target = $region80
              $region77: #{reverse.1} parent=72 // loop_body
                %v147 = vld [vmem:[%s145] sm:$0xf]
                %148 = vst [vmem:[%s146] sm:$0xf] %v147
              $region78: #{reverse.1} parent=72 // loop_footer
                %s144 = sadd.s32 1, %s140
              $region79: #{reverse.1} parent=72 // loop_footer_branch
                %139 = sbr.rel target = $region75
              $region80: #{reverse.1} parent=72 // loop_exit
                _
            $region73: #{reverse.1} parent=57 // pred_fallthru
              _
          $region58: #{reverse.1} parent=53 // pred_fallthru
            _
          // Predicated region
          $region59: #{reverse.1} parent=53 // pred_check
            _
          $region60: #{reverse.1} parent=53 // pred_check_branch
            %124 = sbr.rel (0) target = $region62
          $region61: #{reverse.1} parent=53 // pred_region
            loop: start=0, step=1, limit=1
            $region63: #{reverse.1} parent=61 // loop_pre_header
              _
            $region64: #{reverse.1} parent=61 // loop_header
              %s127 = sphi 0, %s131
              %p128 = scmp.ge.s32.totalorder %s127, 1
              %s132 = sphi %s114, %s114
              %s133 = sphi %s118, %s118
            $region65: #{reverse.1} parent=61 // loop_header_branch
              %130 = sbr.rel (%p128) target = $region69
            $region66: #{reverse.1} parent=61 // loop_body
              %v134 = vld [vmem:[%s132] sm:$0xf]
              %135 = vst [vmem:[%s133] sm:$0xf] %v134
            $region67: #{reverse.1} parent=61 // loop_footer
              %s131 = sadd.s32 1, %s127
            $region68: #{reverse.1} parent=61 // loop_footer_branch
              %126 = sbr.rel target = $region64
            $region69: #{reverse.1} parent=61 // loop_exit
              _
          $region62: #{reverse.1} parent=53 // pred_fallthru
            _
        $region54: #{reverse.1} parent=49 // pred_fallthru
          _
        %149 = vnop
      $region50: #{reverse.1} parent=5 // pred_fallthru
        _
      %p150 = scmp.le.s32.totalorder 2, %s6
      // Predicated region
      $region81: #{reverse.1} parent=5 // pred_check
        %p151 = pneg %p150
      $region82: #{reverse.1} parent=5 // pred_check_branch
        %153 = sbr.rel (%p151) target = $region84
      $region83: #{reverse.1} parent=5 // pred_region
        %s154 = ssub.s32 %s6, 2
        %s155 = sand.u32 %s12, 1
        %s156 = sand.u32 %s12, 1
        %s157 = smul.addr %s156, 4
        %s158 = scalar_lea.vmem [#allocation3], %s157
      $region84: #{reverse.1} parent=5 // pred_fallthru
        _
    $region6: #{reverse.1} parent=1 // loop_footer
      %s10 = sadd.s32 1, %s6
    $region7: #{reverse.1} parent=1 // loop_footer_branch
      %5 = sbr.rel target = $region3
    $region8: #{reverse.1} parent=1 // loop_exit
      _

// kernel: _forward.1
$region0: #{_forward.1}
  #allocation0 [shape = 'u32[]', space=smem, size = 0x4, offset = 0x4, fixed_abs, tag = 'smem constant byte address 0x4 - core index']
  #allocation1 [shape = 'u32[144,128]{1,0:T(1,128)}', space=vmem, size = 0x12000, scoped, tag = 'internal scratch']
  #allocation2 [shape = 'f32[16,1024]{1,0:T(8,128)}', space=vmem, size = 0x10000, scoped, tag = 'scratch operand']
  %s0 = inlined_call_operand.vmem [shape: bf16[2,16,2304], index: 0, kind: input, shape index: {}]
  %s1 = inlined_call_operand.hbm [shape: bf16[2,2304,1024], index: 1, kind: input, shape index: {}]
  %s2 = inlined_call_operand.vmem [shape: f32[2,4,512], index: 2, kind: output, shape index: {0}]
  %s3 = inlined_call_operand.vmem [shape: f32[2,4,512], index: 3, kind: output, shape index: {1}]
  %4 = xla_tuple %s2, %s3
  %s5 = sld [smem:[#allocation0]]
  $region84: #{_forward.1} parent=0
    _
  %s7 = ssub.s32 1, %s5
  %s8 = scalar_select 0, %s7, %s5
  $region1: #{_forward.1} parent=0
    #allocation3 [shape = 'u8[49152]{0}', space=vmem, size = 0xc000, scoped, tag = 'input window, operand 0']
    #allocation4 [shape = 'u8[3145728]{0}', space=vmem, size = 0x300000, scoped, tag = 'input window, operand 1']
    #allocation5 [shape = 's32[2]{0}', space=sflag, size = 0x8, scoped, tag = 'scoped memory for _forward.1']
    %9 = vsyncpa [#allocation5], 0
    %s10 = scalar_lea.sflag [#allocation5], 1
    %11 = vsyncpa %s10, 0
    loop: start=0, step=1, limit=8
    $region2: #{_forward.1} parent=1 // loop_pre_header
      _
    $region3: #{_forward.1} parent=1 // loop_header
      %s13 = sphi 0, %s17
      %p14 = scmp.ge.s32.totalorder %s13, 8
      %s20 = sphi 0, %s32
      %s21 = sphi 0, %s28
      %s22 = sphi 0, %s20
      %s23 = sphi 0, %s21
      %s24 = sphi 0, %s22
      %s25 = sphi 0, %s23
      %s37 = sphi 0, %s39
      %s40 = sphi 0, %s37
      %s41 = sphi 0, %s40
      %s57 = sphi 0, %s41
      %s65 = sphi 0, %s67
      %s68 = sphi 0, %s65
      %s69 = sphi 0, %s68
      %s85 = sphi 0, %s69
      %s91 = sphi 0, %s93
      %s94 = sphi 0, %s91
      %s95 = sphi 0, %s94
      %s111 = sphi 0, %s95
      %s117 = sphi 0, %s119
      %s120 = sphi 0, %s117
      %s121 = sphi 0, %s120
      %s137 = sphi 0, %s121
    $region4: #{_forward.1} parent=1 // loop_header_branch
      %16 = sbr.rel (%p14) target = $region8
    $region5: #{_forward.1} parent=1 // loop_body
      %s18 = ssub.s32 %s13, 1
      %s19 = ssub.s32 %s13, 2
      %s26 = sadd.s32 1, %s21
      %p27 = scmp.ge.s32.totalorder %s26, 3
      %s28 = scalar_select %p27, 0, %s26
      %s29 = sadd.s32 1, %s20
      %s30 = scalar_select %p27, %s29, %s20
      %p31 = scmp.ge.s32.totalorder %s30, 2
      %s32 = scalar_select %p31, 0, %s30
      %s33 = ssub.s32 %s20, %s32
      %s34 = ssub.s32 %s21, %s28
      %s35 = sor.u32 %s33, %s34
      %p36 = scmp.eq.s32.totalorder %s35, 0
      %s38 = sadd.s32 %s37, 1
      %s39 = scalar_select %p36, %s37, %s38
      %p42 = pneg %p36
      %p43 = scmp.eq.s32.totalorder %s13, 5
      %p44 = por %p42, %p43
      %p45 = scmp.ne.s32.totalorder %s37, %s40
      %p46 = scmp.eq.s32.totalorder %s13, 0
      %p47 = por %p45, %p46
      %p48 = scmp.ne.s32.totalorder %s37, %s40
      %p49 = scmp.eq.s32.totalorder %s18, 5
      %p50 = por %p48, %p49
      %p51 = scmp.ne.s32.totalorder %s40, %s41
      %p52 = scmp.eq.s32.totalorder %s18, 0
      %p53 = por %p51, %p52
      %p54 = scmp.ne.s32.totalorder %s40, %s41
      %p55 = scmp.eq.s32.totalorder %s19, 5
      %p56 = por %p54, %p55
      %p58 = scmp.ne.s32.totalorder %s41, %s57
      %p59 = scmp.eq.s32.totalorder %s19, 0
      %p60 = por %p58, %p59
      %s61 = ssub.s32 %s20, %s32
      %s62 = ssub.s32 %s21, %s28
      %s63 = sor.u32 %s61, %s62
      %p64 = scmp.eq.s32.totalorder %s63, 0
      %s66 = sadd.s32 %s65, 1
      %s67 = scalar_select %p64, %s65, %s66
      %p70 = pneg %p64
      %p71 = scmp.eq.s32.totalorder %s13, 5
      %p72 = por %p70, %p71
      %p73 = scmp.ne.s32.totalorder %s65, %s68
      %p74 = scmp.eq.s32.totalorder %s13, 0
      %p75 = por %p73, %p74
      %p76 = scmp.ne.s32.totalorder %s65, %s68
      %p77 = scmp.eq.s32.totalorder %s18, 5
      %p78 = por %p76, %p77
      %p79 = scmp.ne.s32.totalorder %s68, %s69
      %p80 = scmp.eq.s32.totalorder %s18, 0
      %p81 = por %p79, %p80
      %p82 = scmp.ne.s32.totalorder %s68, %s69
      %p83 = scmp.eq.s32.totalorder %s19, 5
      %p84 = por %p82, %p83
      %p86 = scmp.ne.s32.totalorder %s69, %s85
      %p87 = scmp.eq.s32.totalorder %s19, 0
      %p88 = por %p86, %p87
      %s89 = ssub.s32 %s20, %s32
      %p90 = scmp.eq.s32.totalorder %s89, 0
      %s92 = sadd.s32 %s91, 1
      %s93 = scalar_select %p90, %s91, %s92
      %p96 = pneg %p90
      %p97 = scmp.eq.s32.totalorder %s13, 5
      %p98 = por %p96, %p97
      %p99 = scmp.ne.s32.totalorder %s91, %s94
      %p100 = scmp.eq.s32.totalorder %s13, 0
      %p101 = por %p99, %p100
      %p102 = scmp.ne.s32.totalorder %s91, %s94
      %p103 = scmp.eq.s32.totalorder %s18, 5
      %p104 = por %p102, %p103
      %p105 = scmp.ne.s32.totalorder %s94, %s95
      %p106 = scmp.eq.s32.totalorder %s18, 0
      %p107 = por %p105, %p106
      %p108 = scmp.ne.s32.totalorder %s94, %s95
      %p109 = scmp.eq.s32.totalorder %s19, 5
      %p110 = por %p108, %p109
      %p112 = scmp.ne.s32.totalorder %s95, %s111
      %p113 = scmp.eq.s32.totalorder %s19, 0
      %p114 = por %p112, %p113
      %s115 = ssub.s32 %s20, %s32
      %p116 = scmp.eq.s32.totalorder %s115, 0
      %s118 = sadd.s32 %s117, 1
      %s119 = scalar_select %p116, %s117, %s118
      %p122 = pneg %p116
      %p123 = scmp.eq.s32.totalorder %s13, 5
      %p124 = por %p122, %p123
      %p125 = scmp.ne.s32.totalorder %s117, %s120
      %p126 = scmp.eq.s32.totalorder %s13, 0
      %p127 = por %p125, %p126
      %p128 = scmp.ne.s32.totalorder %s117, %s120
      %p129 = scmp.eq.s32.totalorder %s18, 5
      %p130 = por %p128, %p129
      %p131 = scmp.ne.s32.totalorder %s120, %s121
      %p132 = scmp.eq.s32.totalorder %s18, 0
      %p133 = por %p131, %p132
      %p134 = scmp.ne.s32.totalorder %s120, %s121
      %p135 = scmp.eq.s32.totalorder %s19, 5
      %p136 = por %p134, %p135
      %p138 = scmp.ne.s32.totalorder %s121, %s137
      %p139 = scmp.eq.s32.totalorder %s19, 0
      %p140 = por %p138, %p139
      %p141 = scmp.le.s32.totalorder 1, %s13
      %p142 = scmp.lt.s32.totalorder %s13, 7
      %p143 = pnand %p141, %p142
      %p144 = pneg %p143
      // Predicated region
      $region9: #{_forward.1} parent=5 // pred_check
        _
      $region10: #{_forward.1} parent=5 // pred_check_branch
        %146 = sbr.rel (%p143) target = $region12
      $region11: #{_forward.1} parent=5 // pred_region
        %s147 = ssub.s32 %s13, 1
      $region12: #{_forward.1} parent=5 // pred_fallthru
        _
      %p148 = scmp.lt.s32.totalorder %s13, 6
      // Predicated region
      $region13: #{_forward.1} parent=5 // pred_check
        %p149 = pneg %p148
      $region14: #{_forward.1} parent=5 // pred_check_branch
        %151 = sbr.rel (%p149) target = $region16
      $region15: #{_forward.1} parent=5 // pred_region
        // Predicated region
        $region17: #{_forward.1} parent=15 // pred_check
          %p152 = pneg %p47
        $region18: #{_forward.1} parent=15 // pred_check_branch
          %154 = sbr.rel (%p152) target = $region20
        $region19: #{_forward.1} parent=15 // pred_region
          %s155 = sand.u32 %s37, 1
          %s156 = sand.u32 %s37, 1
          %s157 = smul.addr %s156, 48
          %s158 = scalar_lea.vmem [#allocation3], %s157
          %s159 = smul.u32 6, %s21
          %s160 = smul.addr %s20, 36
          %s161 = sadd.s32 %s159, %s160
          %s162 = smul.addr %s161, 4
          %s163 = scalar_lea.vmem %s0, %s162
          // Predicated region
          $region21: #{_forward.1} parent=19 // pred_check
            _
          $region22: #{_forward.1} parent=19 // pred_check_branch
            %165 = sbr.rel (0) target = $region24
          $region23: #{_forward.1} parent=19 // pred_region
            // Predicated region
            $region25: #{_forward.1} parent=23 // pred_check
              _
            $region26: #{_forward.1} parent=23 // pred_check_branch
              %167 = sbr.rel (0) target = $region28
            $region27: #{_forward.1} parent=23 // pred_region
              loop: start=0, step=1, limit=1
              $region29: #{_forward.1} parent=27 // loop_pre_header
                _
              $region30: #{_forward.1} parent=27 // loop_header
                %s169 = sphi 0, %s173
                %p170 = scmp.ge.s32.totalorder %s169, 1
                %s174 = sphi %s163, %s163
                %s175 = sphi %s158, %s158
              $region31: #{_forward.1} parent=27 // loop_header_branch
                %172 = sbr.rel (%p170) target = $region35
              $region32: #{_forward.1} parent=27 // loop_body
                %v176 = vld [vmem:[%s174] sm:$0xff]
                %177 = vst [vmem:[%s175] sm:$0xff] %v176
                %v178 = vld [vmem:[%s174 + $0x8] sm:$0xff]
                %179 = vst [vmem:[%s175 + $0x8] sm:$0xff] %v178
                %v180 = vld [vmem:[%s174 + $0x10] sm:$0xff]
                %181 = vst [vmem:[%s175 + $0x10] sm:$0xff] %v180
                %v182 = vld [vmem:[%s174 + $0x48] sm:$0xff]
                %183 = vst [vmem:[%s175 + $0x18] sm:$0xff] %v182
                %v184 = vld [vmem:[%s174 + $0x50] sm:$0xff]
                %185 = vst [vmem:[%s175 + $0x20] sm:$0xff] %v184
                %v186 = vld [vmem:[%s174 + $0x58] sm:$0xff]
                %187 = vst [vmem:[%s175 + $0x28] sm:$0xff] %v186
              $region33: #{_forward.1} parent=27 // loop_footer
                %s173 = sadd.s32 1, %s169
              $region34: #{_forward.1} parent=27 // loop_footer_branch
                %168 = sbr.rel target = $region30
              $region35: #{_forward.1} parent=27 // loop_exit
                _
            $region28: #{_forward.1} parent=23 // pred_fallthru
              _
            // Predicated region
            $region36: #{_forward.1} parent=23 // pred_check
              _
            $region37: #{_forward.1} parent=23 // pred_check_branch
              %189 = sbr.rel target = $region39
            $region38: #{_forward.1} parent=23 // pred_region
              _
            $region39: #{_forward.1} parent=23 // pred_fallthru
              _
          $region24: #{_forward.1} parent=19 // pred_fallthru
            _
          %190 = vnop
        $region20: #{_forward.1} parent=15 // pred_fallthru
          _
        // Predicated region
        $region40: #{_forward.1} parent=15 // pred_check
          %p191 = pneg %p75
        $region41: #{_forward.1} parent=15 // pred_check_branch
          %193 = sbr.rel (%p191) target = $region43
        $region42: #{_forward.1} parent=15 // pred_region
          %s194 = sand.u32 %s65, 1
          %s195 = scalar_lea.sflag [#allocation5], %s194
          %s196 = sand.u32 %s65, 1
          %s197 = smul.addr %s196, 3072
          %s198 = scalar_lea.vmem [#allocation4], %s197
          %s199 = smul.u32 96, %s21
          %s201 = ssub.s32 49152, 49152
          %202 = vsyncadd %s195, %s201
          %s203 = smul.addr %s199, 8
          %s204 = smul.addr %s20, 2304
          %s205 = sadd.s32 %s203, %s204
          %s206 = smul.addr %s205, 64
          %s207 = scalar_lea.hbm %s1, %s206
          %s208 = sshll.u32 %s198, 4
          %s209 = int_to_ptr.vmem [resolvable:$true] %s208
          %214 = dma.hbm_to_vmem [thread:$0]  %s207, 49152, %s209, %s195, 512, 512, 32
        $region43: #{_forward.1} parent=15 // pred_fallthru
          _
      $region16: #{_forward.1} parent=5 // pred_fallthru
        _
      %p215 = scmp.le.s32.totalorder 1, %s13
      %p216 = scmp.lt.s32.totalorder %s13, 7
      %p217 = pnand %p215, %p216
      %p218 = pneg %p217
      // Predicated region
      $region44: #{_forward.1} parent=5 // pred_check
        _
      $region45: #{_forward.1} parent=5 // pred_check_branch
        %220 = sbr.rel (%p217) target = $region47
      $region46: #{_forward.1} parent=5 // pred_region
        %s221 = ssub.s32 %s13, 1
        %s222 = sand.u32 %s40, 1
        %s223 = sand.u32 %s40, 1
        %s224 = smul.addr %s223, 48
        %s225 = scalar_lea.vmem [#allocation3], %s224
        // Predicated region
        $region48: #{_forward.1} parent=46 // pred_check
          %p226 = pneg %p53
        $region49: #{_forward.1} parent=46 // pred_check_branch
          %228 = sbr.rel (%p226) target = $region51
        $region50: #{_forward.1} parent=46 // pred_region
          _
        $region51: #{_forward.1} parent=46 // pred_fallthru
          _
        %s229 = sand.u32 %s68, 1
        %s230 = scalar_lea.sflag [#allocation5], %s229
        %s231 = sand.u32 %s68, 1
        %s232 = smul.addr %s231, 3072
        %s233 = scalar_lea.vmem [#allocation4], %s232
        // Predicated region
        $region52: #{_forward.1} parent=46 // pred_check
          %p234 = pneg %p81
        $region53: #{_forward.1} parent=46 // pred_check_branch
          %236 = sbr.rel (%p234) target = $region55
        $region54: #{_forward.1} parent=46 // pred_region
          %237 = dma.done %s230, 49152
        $region55: #{_forward.1} parent=46 // pred_fallthru
          _
        %s238 = sand.u32 %s40, 1
        %s239 = sand.u32 %s40, 1
        %s240 = smul.addr %s239, 48
        %s241 = scalar_lea.vmem [#allocation3], %s240
        %p242 = pneg %p53
        %p243 = pneg %p50
        %s244 = sand.u32 %s68, 1
        %s245 = scalar_lea.sflag [#allocation5], %s244
        %s246 = sand.u32 %s68, 1
        %s247 = smul.addr %s246, 3072
        %s248 = scalar_lea.vmem [#allocation4], %s247
        %p249 = pneg %p81
        %p250 = pneg %p78
        %p251 = pneg %p107
        %p252 = pneg %p104
        %p253 = scmp.lt.s32.totalorder %s22, 1
        %s254 = scalar_select %p253, %s22, 1
        %s255 = smul.addr %s254, 4
        %s256 = smul.addr %s255, 4
        %s257 = scalar_lea.vmem %s2, %s256
        %p258 = pneg %p133
        %p259 = pneg %p130
        %p260 = scmp.lt.s32.totalorder %s22, 1
        %s261 = scalar_select %p260, %s22, 1
        %s262 = smul.addr %s261, 4
        %s263 = smul.addr %s262, 4
        %s264 = scalar_lea.vmem %s3, %s263
        %s265 = smul.u32 6, %s23
        %s266 = smul.u32 96, %s23
        %p267 = scmp.lt.s32.totalorder %s22, 1
        %s268 = scalar_select %p267, %s22, 1
        %s269 = smul.addr %s268, 4
        %s270 = smul.addr %s269, 4
        %s271 = scalar_lea.vmem %s2, %s270
        %p272 = scmp.lt.s32.totalorder %s22, 1
        %s273 = scalar_select %p272, %s22, 1
        %s274 = smul.addr %s273, 4
        %s275 = smul.addr %s274, 4
        %s276 = scalar_lea.vmem %s3, %s275
        %p277 = scmp.eq.s32.totalorder %s23, 0
        // Predicated region
        $region56: #{_forward.1} parent=46 // pred_check
          %p278 = pneg %p277
        $region57: #{_forward.1} parent=46 // pred_check_branch
          %280 = sbr.rel (%p278) target = $region59
        $region58: #{_forward.1} parent=46 // pred_region
          %281 = vst [vmem:[#allocation2] sm:$0xff] 0.0
          %282 = vst [vmem:[#allocation2 + $0x8] sm:$0xff] 0.0
          %283 = vst [vmem:[#allocation2 + $0x10] sm:$0xff] 0.0
          %284 = vst [vmem:[#allocation2 + $0x18] sm:$0xff] 0.0
          %285 = vst [vmem:[#allocation2 + $0x20] sm:$0xff] 0.0
          %286 = vst [vmem:[#allocation2 + $0x28] sm:$0xff] 0.0
          %287 = vst [vmem:[#allocation2 + $0x30] sm:$0xff] 0.0
          %288 = vst [vmem:[#allocation2 + $0x38] sm:$0xff] 0.0
          %289 = vst [vmem:[#allocation2 + $0x40] sm:$0xff] 0.0
          %290 = vst [vmem:[#allocation2 + $0x48] sm:$0xff] 0.0
          %291 = vst [vmem:[#allocation2 + $0x50] sm:$0xff] 0.0
          %292 = vst [vmem:[#allocation2 + $0x58] sm:$0xff] 0.0
          %293 = vst [vmem:[#allocation2 + $0x60] sm:$0xff] 0.0
          %294 = vst [vmem:[#allocation2 + $0x68] sm:$0xff] 0.0
          %295 = vst [vmem:[#allocation2 + $0x70] sm:$0xff] 0.0
          %296 = vst [vmem:[#allocation2 + $0x78] sm:$0xff] 0.0
        $region59: #{_forward.1} parent=46 // pred_fallthru
          _
        %v297 = vld [vmem:[#allocation2] sm:$0xff]
        %v298 = vld [vmem:[#allocation2 + $0x8] sm:$0xff]
        %v299 = vld [vmem:[#allocation2 + $0x10] sm:$0xff]
        %v300 = vld [vmem:[#allocation2 + $0x18] sm:$0xff]
        %v301 = vld [vmem:[#allocation2 + $0x20] sm:$0xff]
        %v302 = vld [vmem:[#allocation2 + $0x28] sm:$0xff]
        %v303 = vld [vmem:[#allocation2 + $0x30] sm:$0xff]
        %v304 = vld [vmem:[#allocation2 + $0x38] sm:$0xff]
        %v305 = vld [vmem:[#allocation2 + $0x40] sm:$0xff]
        %v306 = vld [vmem:[#allocation2 + $0x48] sm:$0xff]
        %v307 = vld [vmem:[#allocation2 + $0x50] sm:$0xff]
        %v308 = vld [vmem:[#allocation2 + $0x58] sm:$0xff]
        %v309 = vld [vmem:[#allocation2 + $0x60] sm:$0xff]
        %v310 = vld [vmem:[#allocation2 + $0x68] sm:$0xff]
        %v311 = vld [vmem:[#allocation2 + $0x70] sm:$0xff]
        %v312 = vld [vmem:[#allocation2 + $0x78] sm:$0xff]
        %v313 = vld [vmem:[%s225] sm:$0xff]
        %v314 = vld [vmem:[%s225 + $0x8] sm:$0xff]
        %v315 = vld [vmem:[%s225 + $0x10] sm:$0xff]
        %v316 = vld [vmem:[%s225 + $0x18] sm:$0xff]
        %v317 = vld [vmem:[%s225 + $0x20] sm:$0xff]
        %v318 = vld [vmem:[%s225 + $0x28] sm:$0xff]
        %v319 = vld [vmem:[%s233] sm:$0xff]
        %v320 = vld [vmem:[%s233 + $0x8] sm:$0xff]
        %v321 = vld [vmem:[%s233 + $0x10] sm:$0xff]
        %v322 = vld [vmem:[%s233 + $0x18] sm:$0xff]
        %v323 = vld [vmem:[%s233 + $0x20] sm:$0xff]
        %v324 = vld [vmem:[%s233 + $0x28] sm:$0xff]
        %v325 = vld [vmem:[%s233 + $0x30] sm:$0xff]
        %v326 = vld [vmem:[%s233 + $0x38] sm:$0xff]
        %v327 = vld [vmem:[%s233 + $0x40] sm:$0xff]
        %v328 = vld [vmem:[%s233 + $0x48] sm:$0xff]
        %v329 = vld [vmem:[%s233 + $0x50] sm:$0xff]
        %v330 = vld [vmem:[%s233 + $0x58] sm:$0xff]
        %v331 = vld [vmem:[%s233 + $0x60] sm:$0xff]
        %v332 = vld [vmem:[%s233 + $0x68] sm:$0xff]
        %v333 = vld [vmem:[%s233 + $0x70] sm:$0xff]
        %v334 = vld [vmem:[%s233 + $0x78] sm:$0xff]
        %v335 = vld [vmem:[%s233 + $0x80] sm:$0xff]
        %v336 = vld [vmem:[%s233 + $0x88] sm:$0xff]
        %v337 = vld [vmem:[%s233 + $0x90] sm:$0xff]
        %v338 = vld [vmem:[%s233 + $0x98] sm:$0xff]
        %v339 = vld [vmem:[%s233 + $0xa0] sm:$0xff]
        %v340 = vld [vmem:[%s233 + $0xa8] sm:$0xff]
        %v341 = vld [vmem:[%s233 + $0xb0] sm:$0xff]
        %v342 = vld [vmem:[%s233 + $0xb8] sm:$0xff]
        %v343 = vld [vmem:[%s233 + $0xc0] sm:$0xff]
        %v344 = vld [vmem:[%s233 + $0xc8] sm:$0xff]
        %v345 = vld [vmem:[%s233 + $0xd0] sm:$0xff]
        %v346 = vld [vmem:[%s233 + $0xd8] sm:$0xff]
        %v347 = vld [vmem:[%s233 + $0xe0] sm:$0xff]
        %v348 = vld [vmem:[%s233 + $0xe8] sm:$0xff]
        %v349 = vld [vmem:[%s233 + $0xf0] sm:$0xff]
        %v350 = vld [vmem:[%s233 + $0xf8] sm:$0xff]
        %v351 = vld [vmem:[%s233 + $0x100] sm:$0xff]
        %v352 = vld [vmem:[%s233 + $0x108] sm:$0xff]
        %v353 = vld [vmem:[%s233 + $0x110] sm:$0xff]
        %v354 = vld [vmem:[%s233 + $0x118] sm:$0xff]
        %v355 = vld [vmem:[%s233 + $0x120] sm:$0xff]
        %v356 = vld [vmem:[%s233 + $0x128] sm:$0xff]
        %v357 = vld [vmem:[%s233 + $0x130] sm:$0xff]
        %v358 = vld [vmem:[%s233 + $0x138] sm:$0xff]
        %v359 = vld [vmem:[%s233 + $0x140] sm:$0xff]
        %v360 = vld [vmem:[%s233 + $0x148] sm:$0xff]
        %v361 = vld [vmem:[%s233 + $0x150] sm:$0xff]
        %v362 = vld [vmem:[%s233 + $0x158] sm:$0xff]
        %v363 = vld [vmem:[%s233 + $0x160] sm:$0xff]
        %v364 = vld [vmem:[%s233 + $0x168] sm:$0xff]
        %v365 = vld [vmem:[%s233 + $0x170] sm:$0xff]
        %v366 = vld [vmem:[%s233 + $0x178] sm:$0xff]
        %v367 = vld [vmem:[%s233 + $0x180] sm:$0xff]
        %v368 = vld [vmem:[%s233 + $0x188] sm:$0xff]
        %v369 = vld [vmem:[%s233 + $0x190] sm:$0xff]
        %v370 = vld [vmem:[%s233 + $0x198] sm:$0xff]
        %v371 = vld [vmem:[%s233 + $0x1a0] sm:$0xff]
        %v372 = vld [vmem:[%s233 + $0x1a8] sm:$0xff]
        %v373 = vld [vmem:[%s233 + $0x1b0] sm:$0xff]
        %v374 = vld [vmem:[%s233 + $0x1b8] sm:$0xff]
        %v375 = vld [vmem:[%s233 + $0x1c0] sm:$0xff]
        %v376 = vld [vmem:[%s233 + $0x1c8] sm:$0xff]
        %v377 = vld [vmem:[%s233 + $0x1d0] sm:$0xff]
        %v378 = vld [vmem:[%s233 + $0x1d8] sm:$0xff]
        %v379 = vld [vmem:[%s233 + $0x1e0] sm:$0xff]
        %v380 = vld [vmem:[%s233 + $0x1e8] sm:$0xff]
        %v381 = vld [vmem:[%s233 + $0x1f0] sm:$0xff]
        %v382 = vld [vmem:[%s233 + $0x1f8] sm:$0xff]
        %v383 = vld [vmem:[%s233 + $0x200] sm:$0xff]
        %v384 = vld [vmem:[%s233 + $0x208] sm:$0xff]
        %v385 = vld [vmem:[%s233 + $0x210] sm:$0xff]
        %v386 = vld [vmem:[%s233 + $0x218] sm:$0xff]
        %v387 = vld [vmem:[%s233 + $0x220] sm:$0xff]
        %v388 = vld [vmem:[%s233 + $0x228] sm:$0xff]
        %v389 = vld [vmem:[%s233 + $0x230] sm:$0xff]
        %v390 = vld [vmem:[%s233 + $0x238] sm:$0xff]
        %v391 = vld [vmem:[%s233 + $0x240] sm:$0xff]
        %v392 = vld [vmem:[%s233 + $0x248] sm:$0xff]
        %v393 = vld [vmem:[%s233 + $0x250] sm:$0xff]
        %v394 = vld [vmem:[%s233 + $0x258] sm:$0xff]
        %v395 = vld [vmem:[%s233 + $0x260] sm:$0xff]
        %v396 = vld [vmem:[%s233 + $0x268] sm:$0xff]
        %v397 = vld [vmem:[%s233 + $0x270] sm:$0xff]
        %v398 = vld [vmem:[%s233 + $0x278] sm:$0xff]
        %v399 = vld [vmem:[%s233 + $0x280] sm:$0xff]
        %v400 = vld [vmem:[%s233 + $0x288] sm:$0xff]
        %v401 = vld [vmem:[%s233 + $0x290] sm:$0xff]
        %v402 = vld [vmem:[%s233 + $0x298] sm:$0xff]
        %v403 = vld [vmem:[%s233 + $0x2a0] sm:$0xff]
        %v404 = vld [vmem:[%s233 + $0x2a8] sm:$0xff]
        %v405 = vld [vmem:[%s233 + $0x2b0] sm:$0xff]
        %v406 = vld [vmem:[%s233 + $0x2b8] sm:$0xff]
        %v407 = vld [vmem:[%s233 + $0x2c0] sm:$0xff]
        %v408 = vld [vmem:[%s233 + $0x2c8] sm:$0xff]
        %v409 = vld [vmem:[%s233 + $0x2d0] sm:$0xff]
        %v410 = vld [vmem:[%s233 + $0x2d8] sm:$0xff]
        %v411 = vld [vmem:[%s233 + $0x2e0] sm:$0xff]
        %v412 = vld [vmem:[%s233 + $0x2e8] sm:$0xff]
        %v413 = vld [vmem:[%s233 + $0x2f0] sm:$0xff]
        %v414 = vld [vmem:[%s233 + $0x2f8] sm:$0xff]
        %v415 = vld [vmem:[%s233 + $0x300] sm:$0xff]
        %v416 = vld [vmem:[%s233 + $0x308] sm:$0xff]
        %v417 = vld [vmem:[%s233 + $0x310] sm:$0xff]
        %v418 = vld [vmem:[%s233 + $0x318] sm:$0xff]
        %v419 = vld [vmem:[%s233 + $0x320] sm:$0xff]
        %v420 = vld [vmem:[%s233 + $0x328] sm:$0xff]
        %v421 = vld [vmem:[%s233 + $0x330] sm:$0xff]
        %v422 = vld [vmem:[%s233 + $0x338] sm:$0xff]
        %v423 = vld [vmem:[%s233 + $0x340] sm:$0xff]
        %v424 = vld [vmem:[%s233 + $0x348] sm:$0xff]
        %v425 = vld [vmem:[%s233 + $0x350] sm:$0xff]
        %v426 = vld [vmem:[%s233 + $0x358] sm:$0xff]
        %v427 = vld [vmem:[%s233 + $0x360] sm:$0xff]
        %v428 = vld [vmem:[%s233 + $0x368] sm:$0xff]
        %v429 = vld [vmem:[%s233 + $0x370] sm:$0xff]
        %v430 = vld [vmem:[%s233 + $0x378] sm:$0xff]
        %v431 = vld [vmem:[%s233 + $0x380] sm:$0xff]
        %v432 = vld [vmem:[%s233 + $0x388] sm:$0xff]
        %v433 = vld [vmem:[%s233 + $0x390] sm:$0xff]
        %v434 = vld [vmem:[%s233 + $0x398] sm:$0xff]
        %v435 = vld [vmem:[%s233 + $0x3a0] sm:$0xff]
        %v436 = vld [vmem:[%s233 + $0x3a8] sm:$0xff]
        %v437 = vld [vmem:[%s233 + $0x3b0] sm:$0xff]
        %v438 = vld [vmem:[%s233 + $0x3b8] sm:$0xff]
        %v439 = vld [vmem:[%s233 + $0x3c0] sm:$0xff]
        %v440 = vld [vmem:[%s233 + $0x3c8] sm:$0xff]
        %v441 = vld [vmem:[%s233 + $0x3d0] sm:$0xff]
        %v442 = vld [vmem:[%s233 + $0x3d8] sm:$0xff]
        %v443 = vld [vmem:[%s233 + $0x3e0] sm:$0xff]
        %v444 = vld [vmem:[%s233 + $0x3e8] sm:$0xff]
        %v445 = vld [vmem:[%s233 + $0x3f0] sm:$0xff]
        %v446 = vld [vmem:[%s233 + $0x3f8] sm:$0xff]
        %v447 = vld [vmem:[%s233 + $0x400] sm:$0xff]
        %v448 = vld [vmem:[%s233 + $0x408] sm:$0xff]
        %v449 = vld [vmem:[%s233 + $0x410] sm:$0xff]
        %v450 = vld [vmem:[%s233 + $0x418] sm:$0xff]
        %v451 = vld [vmem:[%s233 + $0x420] sm:$0xff]
        %v452 = vld [vmem:[%s233 + $0x428] sm:$0xff]
        %v453 = vld [vmem:[%s233 + $0x430] sm:$0xff]
        %v454 = vld [vmem:[%s233 + $0x438] sm:$0xff]
        %v455 = vld [vmem:[%s233 + $0x440] sm:$0xff]
        %v456 = vld [vmem:[%s233 + $0x448] sm:$0xff]
        %v457 = vld [vmem:[%s233 + $0x450] sm:$0xff]
        %v458 = vld [vmem:[%s233 + $0x458] sm:$0xff]
        %v459 = vld [vmem:[%s233 + $0x460] sm:$0xff]
        %v460 = vld [vmem:[%s233 + $0x468] sm:$0xff]
        %v461 = vld [vmem:[%s233 + $0x470] sm:$0xff]
        %v462 = vld [vmem:[%s233 + $0x478] sm:$0xff]
        %v463 = vld [vmem:[%s233 + $0x480] sm:$0xff]
        %v464 = vld [vmem:[%s233 + $0x488] sm:$0xff]
        %v465 = vld [vmem:[%s233 + $0x490] sm:$0xff]
        %v466 = vld [vmem:[%s233 + $0x498] sm:$0xff]
        %v467 = vld [vmem:[%s233 + $0x4a0] sm:$0xff]
        %v468 = vld [vmem:[%s233 + $0x4a8] sm:$0xff]
        %v469 = vld [vmem:[%s233 + $0x4b0] sm:$0xff]
        %v470 = vld [vmem:[%s233 + $0x4b8] sm:$0xff]
        %v471 = vld [vmem:[%s233 + $0x4c0] sm:$0xff]
        %v472 = vld [vmem:[%s233 + $0x4c8] sm:$0xff]
        %v473 = vld [vmem:[%s233 + $0x4d0] sm:$0xff]
        %v474 = vld [vmem:[%s233 + $0x4d8] sm:$0xff]
        %v475 = vld [vmem:[%s233 + $0x4e0] sm:$0xff]
        %v476 = vld [vmem:[%s233 + $0x4e8] sm:$0xff]
        %v477 = vld [vmem:[%s233 + $0x4f0] sm:$0xff]
        %v478 = vld [vmem:[%s233 + $0x4f8] sm:$0xff]
        %v479 = vld [vmem:[%s233 + $0x500] sm:$0xff]
        %v480 = vld [vmem:[%s233 + $0x508] sm:$0xff]
        %v481 = vld [vmem:[%s233 + $0x510] sm:$0xff]
        %v482 = vld [vmem:[%s233 + $0x518] sm:$0xff]
        %v483 = vld [vmem:[%s233 + $0x520] sm:$0xff]
        %v484 = vld [vmem:[%s233 + $0x528] sm:$0xff]
        %v485 = vld [vmem:[%s233 + $0x530] sm:$0xff]
        %v486 = vld [vmem:[%s233 + $0x538] sm:$0xff]
        %v487 = vld [vmem:[%s233 + $0x540] sm:$0xff]
        %v488 = vld [vmem:[%s233 + $0x548] sm:$0xff]
        %v489 = vld [vmem:[%s233 + $0x550] sm:$0xff]
        %v490 = vld [vmem:[%s233 + $0x558] sm:$0xff]
        %v491 = vld [vmem:[%s233 + $0x560] sm:$0xff]
        %v492 = vld [vmem:[%s233 + $0x568] sm:$0xff]
        %v493 = vld [vmem:[%s233 + $0x570] sm:$0xff]
        %v494 = vld [vmem:[%s233 + $0x578] sm:$0xff]
        %v495 = vld [vmem:[%s233 + $0x580] sm:$0xff]
        %v496 = vld [vmem:[%s233 + $0x588] sm:$0xff]
        %v497 = vld [vmem:[%s233 + $0x590] sm:$0xff]
        %v498 = vld [vmem:[%s233 + $0x598] sm:$0xff]
        %v499 = vld [vmem:[%s233 + $0x5a0] sm:$0xff]
        %v500 = vld [vmem:[%s233 + $0x5a8] sm:$0xff]
        %v501 = vld [vmem:[%s233 + $0x5b0] sm:$0xff]
        %v502 = vld [vmem:[%s233 + $0x5b8] sm:$0xff]
        %v503 = vld [vmem:[%s233 + $0x5c0] sm:$0xff]
        %v504 = vld [vmem:[%s233 + $0x5c8] sm:$0xff]
        %v505 = vld [vmem:[%s233 + $0x5d0] sm:$0xff]
        %v506 = vld [vmem:[%s233 + $0x5d8] sm:$0xff]
        %v507 = vld [vmem:[%s233 + $0x5e0] sm:$0xff]
        %v508 = vld [vmem:[%s233 + $0x5e8] sm:$0xff]
        %v509 = vld [vmem:[%s233 + $0x5f0] sm:$0xff]
        %v510 = vld [vmem:[%s233 + $0x5f8] sm:$0xff]
        %v511 = vld [vmem:[%s233 + $0x600] sm:$0xff]
        %v512 = vld [vmem:[%s233 + $0x608] sm:$0xff]
        %v513 = vld [vmem:[%s233 + $0x610] sm:$0xff]
        %v514 = vld [vmem:[%s233 + $0x618] sm:$0xff]
        %v515 = vld [vmem:[%s233 + $0x620] sm:$0xff]
        %v516 = vld [vmem:[%s233 + $0x628] sm:$0xff]
        %v517 = vld [vmem:[%s233 + $0x630] sm:$0xff]
        %v518 = vld [vmem:[%s233 + $0x638] sm:$0xff]
        %v519 = vld [vmem:[%s233 + $0x640] sm:$0xff]
        %v520 = vld [vmem:[%s233 + $0x648] sm:$0xff]
        %v521 = vld [vmem:[%s233 + $0x650] sm:$0xff]
        %v522 = vld [vmem:[%s233 + $0x658] sm:$0xff]
        %v523 = vld [vmem:[%s233 + $0x660] sm:$0xff]
        %v524 = vld [vmem:[%s233 + $0x668] sm:$0xff]
        %v525 = vld [vmem:[%s233 + $0x670] sm:$0xff]
        %v526 = vld [vmem:[%s233 + $0x678] sm:$0xff]
        %v527 = vld [vmem:[%s233 + $0x680] sm:$0xff]
        %v528 = vld [vmem:[%s233 + $0x688] sm:$0xff]
        %v529 = vld [vmem:[%s233 + $0x690] sm:$0xff]
        %v530 = vld [vmem:[%s233 + $0x698] sm:$0xff]
        %v531 = vld [vmem:[%s233 + $0x6a0] sm:$0xff]
        %v532 = vld [vmem:[%s233 + $0x6a8] sm:$0xff]
        %v533 = vld [vmem:[%s233 + $0x6b0] sm:$0xff]
        %v534 = vld [vmem:[%s233 + $0x6b8] sm:$0xff]
        %v535 = vld [vmem:[%s233 + $0x6c0] sm:$0xff]
        %v536 = vld [vmem:[%s233 + $0x6c8] sm:$0xff]
        %v537 = vld [vmem:[%s233 + $0x6d0] sm:$0xff]
        %v538 = vld [vmem:[%s233 + $0x6d8] sm:$0xff]
        %v539 = vld [vmem:[%s233 + $0x6e0] sm:$0xff]
        %v540 = vld [vmem:[%s233 + $0x6e8] sm:$0xff]
        %v541 = vld [vmem:[%s233 + $0x6f0] sm:$0xff]
        %v542 = vld [vmem:[%s233 + $0x6f8] sm:$0xff]
        %v543 = vld [vmem:[%s233 + $0x700] sm:$0xff]
        %v544 = vld [vmem:[%s233 + $0x708] sm:$0xff]
        %v545 = vld [vmem:[%s233 + $0x710] sm:$0xff]
        %v546 = vld [vmem:[%s233 + $0x718] sm:$0xff]
        %v547 = vld [vmem:[%s233 + $0x720] sm:$0xff]
        %v548 = vld [vmem:[%s233 + $0x728] sm:$0xff]
        %v549 = vld [vmem:[%s233 + $0x730] sm:$0xff]
        %v550 = vld [vmem:[%s233 + $0x738] sm:$0xff]
        %v551 = vld [vmem:[%s233 + $0x740] sm:$0xff]
        %v552 = vld [vmem:[%s233 + $0x748] sm:$0xff]
        %v553 = vld [vmem:[%s233 + $0x750] sm:$0xff]
        %v554 = vld [vmem:[%s233 + $0x758] sm:$0xff]
        %v555 = vld [vmem:[%s233 + $0x760] sm:$0xff]
        %v556 = vld [vmem:[%s233 + $0x768] sm:$0xff]
        %v557 = vld [vmem:[%s233 + $0x770] sm:$0xff]
        %v558 = vld [vmem:[%s233 + $0x778] sm:$0xff]
        %v559 = vld [vmem:[%s233 + $0x780] sm:$0xff]
        %v560 = vld [vmem:[%s233 + $0x788] sm:$0xff]
        %v561 = vld [vmem:[%s233 + $0x790] sm:$0xff]
        %v562 = vld [vmem:[%s233 + $0x798] sm:$0xff]
        %v563 = vld [vmem:[%s233 + $0x7a0] sm:$0xff]
        %v564 = vld [vmem:[%s233 + $0x7a8] sm:$0xff]
        %v565 = vld [vmem:[%s233 + $0x7b0] sm:$0xff]
        %v566 = vld [vmem:[%s233 + $0x7b8] sm:$0xff]
        %v567 = vld [vmem:[%s233 + $0x7c0] sm:$0xff]
        %v568 = vld [vmem:[%s233 + $0x7c8] sm:$0xff]
        %v569 = vld [vmem:[%s233 + $0x7d0] sm:$0xff]
        %v570 = vld [vmem:[%s233 + $0x7d8] sm:$0xff]
        %v571 = vld [vmem:[%s233 + $0x7e0] sm:$0xff]
        %v572 = vld [vmem:[%s233 + $0x7e8] sm:$0xff]
        %v573 = vld [vmem:[%s233 + $0x7f0] sm:$0xff]
        %v574 = vld [vmem:[%s233 + $0x7f8] sm:$0xff]
        %v575 = vld [vmem:[%s233 + $0x800] sm:$0xff]
        %v576 = vld [vmem:[%s233 + $0x808] sm:$0xff]
        %v577 = vld [vmem:[%s233 + $0x810] sm:$0xff]
        %v578 = vld [vmem:[%s233 + $0x818] sm:$0xff]
        %v579 = vld [vmem:[%s233 + $0x820] sm:$0xff]
        %v580 = vld [vmem:[%s233 + $0x828] sm:$0xff]
        %v581 = vld [vmem:[%s233 + $0x830] sm:$0xff]
        %v582 = vld [vmem:[%s233 + $0x838] sm:$0xff]
        %v583 = vld [vmem:[%s233 + $0x840] sm:$0xff]
        %v584 = vld [vmem:[%s233 + $0x848] sm:$0xff]
        %v585 = vld [vmem:[%s233 + $0x850] sm:$0xff]
        %v586 = vld [vmem:[%s233 + $0x858] sm:$0xff]
        %v587 = vld [vmem:[%s233 + $0x860] sm:$0xff]
        %v588 = vld [vmem:[%s233 + $0x868] sm:$0xff]
        %v589 = vld [vmem:[%s233 + $0x870] sm:$0xff]
        %v590 = vld [vmem:[%s233 + $0x878] sm:$0xff]
        %v591 = vld [vmem:[%s233 + $0x880] sm:$0xff]
        %v592 = vld [vmem:[%s233 + $0x888] sm:$0xff]
        %v593 = vld [vmem:[%s233 + $0x890] sm:$0xff]
        %v594 = vld [vmem:[%s233 + $0x898] sm:$0xff]
        %v595 = vld [vmem:[%s233 + $0x8a0] sm:$0xff]
        %v596 = vld [vmem:[%s233 + $0x8a8] sm:$0xff]
        %v597 = vld [vmem:[%s233 + $0x8b0] sm:$0xff]
        %v598 = vld [vmem:[%s233 + $0x8b8] sm:$0xff]
        %v599 = vld [vmem:[%s233 + $0x8c0] sm:$0xff]
        %v600 = vld [vmem:[%s233 + $0x8c8] sm:$0xff]
        %v601 = vld [vmem:[%s233 + $0x8d0] sm:$0xff]
        %v602 = vld [vmem:[%s233 + $0x8d8] sm:$0xff]
        %v603 = vld [vmem:[%s233 + $0x8e0] sm:$0xff]
        %v604 = vld [vmem:[%s233 + $0x8e8] sm:$0xff]
        %v605 = vld [vmem:[%s233 + $0x8f0] sm:$0xff]
        %v606 = vld [vmem:[%s233 + $0x8f8] sm:$0xff]
        %v607 = vld [vmem:[%s233 + $0x900] sm:$0xff]
        %v608 = vld [vmem:[%s233 + $0x908] sm:$0xff]
        %v609 = vld [vmem:[%s233 + $0x910] sm:$0xff]
        %v610 = vld [vmem:[%s233 + $0x918] sm:$0xff]
        %v611 = vld [vmem:[%s233 + $0x920] sm:$0xff]
        %v612 = vld [vmem:[%s233 + $0x928] sm:$0xff]
        %v613 = vld [vmem:[%s233 + $0x930] sm:$0xff]
        %v614 = vld [vmem:[%s233 + $0x938] sm:$0xff]
        %v615 = vld [vmem:[%s233 + $0x940] sm:$0xff]
        %v616 = vld [vmem:[%s233 + $0x948] sm:$0xff]
        %v617 = vld [vmem:[%s233 + $0x950] sm:$0xff]
        %v618 = vld [vmem:[%s233 + $0x958] sm:$0xff]
        %v619 = vld [vmem:[%s233 + $0x960] sm:$0xff]
        %v620 = vld [vmem:[%s233 + $0x968] sm:$0xff]
        %v621 = vld [vmem:[%s233 + $0x970] sm:$0xff]
        %v622 = vld [vmem:[%s233 + $0x978] sm:$0xff]
        %v623 = vld [vmem:[%s233 + $0x980] sm:$0xff]
        %v624 = vld [vmem:[%s233 + $0x988] sm:$0xff]
        %v625 = vld [vmem:[%s233 + $0x990] sm:$0xff]
        %v626 = vld [vmem:[%s233 + $0x998] sm:$0xff]
        %v627 = vld [vmem:[%s233 + $0x9a0] sm:$0xff]
        %v628 = vld [vmem:[%s233 + $0x9a8] sm:$0xff]
        %v629 = vld [vmem:[%s233 + $0x9b0] sm:$0xff]
        %v630 = vld [vmem:[%s233 + $0x9b8] sm:$0xff]
        %v631 = vld [vmem:[%s233 + $0x9c0] sm:$0xff]
        %v632 = vld [vmem:[%s233 + $0x9c8] sm:$0xff]
        %v633 = vld [vmem:[%s233 + $0x9d0] sm:$0xff]
        %v634 = vld [vmem:[%s233 + $0x9d8] sm:$0xff]
        %v635 = vld [vmem:[%s233 + $0x9e0] sm:$0xff]
        %v636 = vld [vmem:[%s233 + $0x9e8] sm:$0xff]
        %v637 = vld [vmem:[%s233 + $0x9f0] sm:$0xff]
        %v638 = vld [vmem:[%s233 + $0x9f8] sm:$0xff]
        %v639 = vld [vmem:[%s233 + $0xa00] sm:$0xff]
        %v640 = vld [vmem:[%s233 + $0xa08] sm:$0xff]
        %v641 = vld [vmem:[%s233 + $0xa10] sm:$0xff]
        %v642 = vld [vmem:[%s233 + $0xa18] sm:$0xff]
        %v643 = vld [vmem:[%s233 + $0xa20] sm:$0xff]
        %v644 = vld [vmem:[%s233 + $0xa28] sm:$0xff]
        %v645 = vld [vmem:[%s233 + $0xa30] sm:$0xff]
        %v646 = vld [vmem:[%s233 + $0xa38] sm:$0xff]
        %v647 = vld [vmem:[%s233 + $0xa40] sm:$0xff]
        %v648 = vld [vmem:[%s233 + $0xa48] sm:$0xff]
        %v649 = vld [vmem:[%s233 + $0xa50] sm:$0xff]
        %v650 = vld [vmem:[%s233 + $0xa58] sm:$0xff]
        %v651 = vld [vmem:[%s233 + $0xa60] sm:$0xff]
        %v652 = vld [vmem:[%s233 + $0xa68] sm:$0xff]
        %v653 = vld [vmem:[%s233 + $0xa70] sm:$0xff]
        %v654 = vld [vmem:[%s233 + $0xa78] sm:$0xff]
        %v655 = vld [vmem:[%s233 + $0xa80] sm:$0xff]
        %v656 = vld [vmem:[%s233 + $0xa88] sm:$0xff]
        %v657 = vld [vmem:[%s233 + $0xa90] sm:$0xff]
        %v658 = vld [vmem:[%s233 + $0xa98] sm:$0xff]
        %v659 = vld [vmem:[%s233 + $0xaa0] sm:$0xff]
        %v660 = vld [vmem:[%s233 + $0xaa8] sm:$0xff]
        %v661 = vld [vmem:[%s233 + $0xab0] sm:$0xff]
        %v662 = vld [vmem:[%s233 + $0xab8] sm:$0xff]
        %v663 = vld [vmem:[%s233 + $0xac0] sm:$0xff]
        %v664 = vld [vmem:[%s233 + $0xac8] sm:$0xff]
        %v665 = vld [vmem:[%s233 + $0xad0] sm:$0xff]
        %v666 = vld [vmem:[%s233 + $0xad8] sm:$0xff]
        %v667 = vld [vmem:[%s233 + $0xae0] sm:$0xff]
        %v668 = vld [vmem:[%s233 + $0xae8] sm:$0xff]
        %v669 = vld [vmem:[%s233 + $0xaf0] sm:$0xff]
        %v670 = vld [vmem:[%s233 + $0xaf8] sm:$0xff]
        %v671 = vld [vmem:[%s233 + $0xb00] sm:$0xff]
        %v672 = vld [vmem:[%s233 + $0xb08] sm:$0xff]
        %v673 = vld [vmem:[%s233 + $0xb10] sm:$0xff]
        %v674 = vld [vmem:[%s233 + $0xb18] sm:$0xff]
        %v675 = vld [vmem:[%s233 + $0xb20] sm:$0xff]
        %v676 = vld [vmem:[%s233 + $0xb28] sm:$0xff]
        %v677 = vld [vmem:[%s233 + $0xb30] sm:$0xff]
        %v678 = vld [vmem:[%s233 + $0xb38] sm:$0xff]
        %v679 = vld [vmem:[%s233 + $0xb40] sm:$0xff]
        %v680 = vld [vmem:[%s233 + $0xb48] sm:$0xff]
        %v681 = vld [vmem:[%s233 + $0xb50] sm:$0xff]
        %v682 = vld [vmem:[%s233 + $0xb58] sm:$0xff]
        %v683 = vld [vmem:[%s233 + $0xb60] sm:$0xff]
        %v684 = vld [vmem:[%s233 + $0xb68] sm:$0xff]
        %v685 = vld [vmem:[%s233 + $0xb70] sm:$0xff]
        %v686 = vld [vmem:[%s233 + $0xb78] sm:$0xff]
        %v687 = vld [vmem:[%s233 + $0xb80] sm:$0xff]
        %v688 = vld [vmem:[%s233 + $0xb88] sm:$0xff]
        %v689 = vld [vmem:[%s233 + $0xb90] sm:$0xff]
        %v690 = vld [vmem:[%s233 + $0xb98] sm:$0xff]
        %v691 = vld [vmem:[%s233 + $0xba0] sm:$0xff]
        %v692 = vld [vmem:[%s233 + $0xba8] sm:$0xff]
        %v693 = vld [vmem:[%s233 + $0xbb0] sm:$0xff]
        %v694 = vld [vmem:[%s233 + $0xbb8] sm:$0xff]
        %v695 = vld [vmem:[%s233 + $0xbc0] sm:$0xff]
        %v696 = vld [vmem:[%s233 + $0xbc8] sm:$0xff]
        %v697 = vld [vmem:[%s233 + $0xbd0] sm:$0xff]
        %v698 = vld [vmem:[%s233 + $0xbd8] sm:$0xff]
        %v699 = vld [vmem:[%s233 + $0xbe0] sm:$0xff]
        %v700 = vld [vmem:[%s233 + $0xbe8] sm:$0xff]
        %v701 = vld [vmem:[%s233 + $0xbf0] sm:$0xff]
        %v702 = vld [vmem:[%s233 + $0xbf8] sm:$0xff]
        %v709 = vunpack.c.l.b16 %v313
        %v710 = vunpack.c.h.b16 %v313
        %v711 = vunpack.c.l.b16 %v314
        %v712 = vunpack.c.h.b16 %v314
        %v713 = vunpack.c.l.b16 %v315
        %v714 = vunpack.c.h.b16 %v315
        %v715 = vunpack.c.l.b16 %v316
        %v716 = vunpack.c.h.b16 %v316
        %v717 = vunpack.c.l.b16 %v317
        %v718 = vunpack.c.h.b16 %v317
        %v719 = vunpack.c.l.b16 %v318
        %v720 = vunpack.c.h.b16 %v318
        %v721 = vpack.c.b16 %v715, %v709
        %v722 = vpack.c.b16 %v716, %v710
        %v723 = vpack.c.b16 %v717, %v711
        %v724 = vpack.c.b16 %v718, %v712
        %v725 = vpack.c.b16 %v719, %v713
        %v726 = vpack.c.b16 %v720, %v714
        %v1117 = vunpack.c.l.b16 %v319
        %v1118 = vunpack.c.h.b16 %v319
        %v1119 = vunpack.c.l.b16 %v320
        %v1120 = vunpack.c.h.b16 %v320
        %v1121 = vunpack.c.l.b16 %v321
        %v1122 = vunpack.c.h.b16 %v321
        %v1123 = vunpack.c.l.b16 %v322
        %v1124 = vunpack.c.h.b16 %v322
        %v1125 = vunpack.c.l.b16 %v323
        %v1126 = vunpack.c.h.b16 %v323
        %v1127 = vunpack.c.l.b16 %v324
        %v1128 = vunpack.c.h.b16 %v324
        %v1129 = vunpack.c.l.b16 %v325
        %v1130 = vunpack.c.h.b16 %v325
        %v1131 = vunpack.c.l.b16 %v326
        %v1132 = vunpack.c.h.b16 %v326
        %v1133 = vunpack.c.l.b16 %v327
        %v1134 = vunpack.c.h.b16 %v327
        %v1135 = vunpack.c.l.b16 %v328
        %v1136 = vunpack.c.h.b16 %v328
        %v1137 = vunpack.c.l.b16 %v329
        %v1138 = vunpack.c.h.b16 %v329
        %v1139 = vunpack.c.l.b16 %v330
        %v1140 = vunpack.c.h.b16 %v330
        %v1141 = vunpack.c.l.b16 %v331
        %v1142 = vunpack.c.h.b16 %v331
        %v1143 = vunpack.c.l.b16 %v332
        %v1144 = vunpack.c.h.b16 %v332
        %v1145 = vunpack.c.l.b16 %v333
        %v1146 = vunpack.c.h.b16 %v333
        %v1147 = vunpack.c.l.b16 %v334
        %v1148 = vunpack.c.h.b16 %v334
        %v1149 = vunpack.c.l.b16 %v335
        %v1150 = vunpack.c.h.b16 %v335
        %v1151 = vunpack.c.l.b16 %v336
        %v1152 = vunpack.c.h.b16 %v336
        %v1153 = vunpack.c.l.b16 %v337
        %v1154 = vunpack.c.h.b16 %v337
        %v1155 = vunpack.c.l.b16 %v338
        %v1156 = vunpack.c.h.b16 %v338
        %v1157 = vunpack.c.l.b16 %v339
        %v1158 = vunpack.c.h.b16 %v339
        %v1159 = vunpack.c.l.b16 %v340
        %v1160 = vunpack.c.h.b16 %v340
        %v1161 = vunpack.c.l.b16 %v341
        %v1162 = vunpack.c.h.b16 %v341
        %v1163 = vunpack.c.l.b16 %v342
        %v1164 = vunpack.c.h.b16 %v342
        %v1165 = vunpack.c.l.b16 %v343
        %v1166 = vunpack.c.h.b16 %v343
        %v1167 = vunpack.c.l.b16 %v344
        %v1168 = vunpack.c.h.b16 %v344
        %v1169 = vunpack.c.l.b16 %v345
        %v1170 = vunpack.c.h.b16 %v345
        %v1171 = vunpack.c.l.b16 %v346
        %v1172 = vunpack.c.h.b16 %v346
        %v1173 = vunpack.c.l.b16 %v347
        %v1174 = vunpack.c.h.b16 %v347
        %v1175 = vunpack.c.l.b16 %v348
        %v1176 = vunpack.c.h.b16 %v348
        %v1177 = vunpack.c.l.b16 %v349
        %v1178 = vunpack.c.h.b16 %v349
        %v1179 = vunpack.c.l.b16 %v350
        %v1180 = vunpack.c.h.b16 %v350
        %v1181 = vunpack.c.l.b16 %v351
        %v1182 = vunpack.c.h.b16 %v351
        %v1183 = vunpack.c.l.b16 %v352
        %v1184 = vunpack.c.h.b16 %v352
        %v1185 = vunpack.c.l.b16 %v353
        %v1186 = vunpack.c.h.b16 %v353
        %v1187 = vunpack.c.l.b16 %v354
        %v1188 = vunpack.c.h.b16 %v354
        %v1189 = vunpack.c.l.b16 %v355
        %v1190 = vunpack.c.h.b16 %v355
        %v1191 = vunpack.c.l.b16 %v356
        %v1192 = vunpack.c.h.b16 %v356
        %v1193 = vunpack.c.l.b16 %v357
        %v1194 = vunpack.c.h.b16 %v357
        %v1195 = vunpack.c.l.b16 %v358
        %v1196 = vunpack.c.h.b16 %v358
        %v1197 = vunpack.c.l.b16 %v359
        %v1198 = vunpack.c.h.b16 %v359
        %v1199 = vunpack.c.l.b16 %v360
        %v1200 = vunpack.c.h.b16 %v360
        %v1201 = vunpack.c.l.b16 %v361
        %v1202 = vunpack.c.h.b16 %v361
        %v1203 = vunpack.c.l.b16 %v362
        %v1204 = vunpack.c.h.b16 %v362
        %v1205 = vunpack.c.l.b16 %v363
        %v1206 = vunpack.c.h.b16 %v363
        %v1207 = vunpack.c.l.b16 %v364
        %v1208 = vunpack.c.h.b16 %v364
        %v1209 = vunpack.c.l.b16 %v365
        %v1210 = vunpack.c.h.b16 %v365
        %v1211 = vunpack.c.l.b16 %v366
        %v1212 = vunpack.c.h.b16 %v366
        %v1213 = vunpack.c.l.b16 %v367
        %v1214 = vunpack.c.h.b16 %v367
        %v1215 = vunpack.c.l.b16 %v368
        %v1216 = vunpack.c.h.b16 %v368
        %v1217 = vunpack.c.l.b16 %v369
        %v1218 = vunpack.c.h.b16 %v369
        %v1219 = vunpack.c.l.b16 %v370
        %v1220 = vunpack.c.h.b16 %v370
        %v1221 = vunpack.c.l.b16 %v371
        %v1222 = vunpack.c.h.b16 %v371
        %v1223 = vunpack.c.l.b16 %v372
        %v1224 = vunpack.c.h.b16 %v372
        %v1225 = vunpack.c.l.b16 %v373
        %v1226 = vunpack.c.h.b16 %v373
        %v1227 = vunpack.c.l.b16 %v374
        %v1228 = vunpack.c.h.b16 %v374
        %v1229 = vunpack.c.l.b16 %v375
        %v1230 = vunpack.c.h.b16 %v375
        %v1231 = vunpack.c.l.b16 %v376
        %v1232 = vunpack.c.h.b16 %v376
        %v1233 = vunpack.c.l.b16 %v377
        %v1234 = vunpack.c.h.b16 %v377
        %v1235 = vunpack.c.l.b16 %v378
        %v1236 = vunpack.c.h.b16 %v378
        %v1237 = vunpack.c.l.b16 %v379
        %v1238 = vunpack.c.h.b16 %v379
        %v1239 = vunpack.c.l.b16 %v380
        %v1240 = vunpack.c.h.b16 %v380
        %v1241 = vunpack.c.l.b16 %v381
        %v1242 = vunpack.c.h.b16 %v381
        %v1243 = vunpack.c.l.b16 %v382
        %v1244 = vunpack.c.h.b16 %v382
        %v1245 = vunpack.c.l.b16 %v383
        %v1246 = vunpack.c.h.b16 %v383
        %v1247 = vunpack.c.l.b16 %v384
        %v1248 = vunpack.c.h.b16 %v384
        %v1249 = vunpack.c.l.b16 %v385
        %v1250 = vunpack.c.h.b16 %v385
        %v1251 = vunpack.c.l.b16 %v386
        %v1252 = vunpack.c.h.b16 %v386
        %v1253 = vunpack.c.l.b16 %v387
        %v1254 = vunpack.c.h.b16 %v387
        %v1255 = vunpack.c.l.b16 %v388
        %v1256 = vunpack.c.h.b16 %v388
        %v1257 = vunpack.c.l.b16 %v389
        %v1258 = vunpack.c.h.b16 %v389
        %v1259 = vunpack.c.l.b16 %v390
        %v1260 = vunpack.c.h.b16 %v390
        %v1261 = vunpack.c.l.b16 %v391
        %v1262 = vunpack.c.h.b16 %v391
        %v1263 = vunpack.c.l.b16 %v392
        %v1264 = vunpack.c.h.b16 %v392
        %v1265 = vunpack.c.l.b16 %v393
        %v1266 = vunpack.c.h.b16 %v393
        %v1267 = vunpack.c.l.b16 %v394
        %v1268 = vunpack.c.h.b16 %v394
        %v1269 = vunpack.c.l.b16 %v395
        %v1270 = vunpack.c.h.b16 %v395
        %v1271 = vunpack.c.l.b16 %v396
        %v1272 = vunpack.c.h.b16 %v396
        %v1273 = vunpack.c.l.b16 %v397
        %v1274 = vunpack.c.h.b16 %v397
        %v1275 = vunpack.c.l.b16 %v398
        %v1276 = vunpack.c.h.b16 %v398
        %v1277 = vunpack.c.l.b16 %v399
        %v1278 = vunpack.c.h.b16 %v399
        %v1279 = vunpack.c.l.b16 %v400
        %v1280 = vunpack.c.h.b16 %v400
        %v1281 = vunpack.c.l.b16 %v401
        %v1282 = vunpack.c.h.b16 %v401
        %v1283 = vunpack.c.l.b16 %v402
        %v1284 = vunpack.c.h.b16 %v402
        %v1285 = vunpack.c.l.b16 %v403
        %v1286 = vunpack.c.h.b16 %v403
        %v1287 = vunpack.c.l.b16 %v404
        %v1288 = vunpack.c.h.b16 %v404
        %v1289 = vunpack.c.l.b16 %v405
        %v1290 = vunpack.c.h.b16 %v405
        %v1291 = vunpack.c.l.b16 %v406
        %v1292 = vunpack.c.h.b16 %v406
        %v1293 = vunpack.c.l.b16 %v407
        %v1294 = vunpack.c.h.b16 %v407
        %v1295 = vunpack.c.l.b16 %v408
        %v1296 = vunpack.c.h.b16 %v408
        %v1297 = vunpack.c.l.b16 %v409
        %v1298 = vunpack.c.h.b16 %v409
        %v1299 = vunpack.c.l.b16 %v410
        %v1300 = vunpack.c.h.b16 %v410
        %v1301 = vunpack.c.l.b16 %v411
        %v1302 = vunpack.c.h.b16 %v411
        %v1303 = vunpack.c.l.b16 %v412
        %v1304 = vunpack.c.h.b16 %v412
        %v1305 = vunpack.c.l.b16 %v413
        %v1306 = vunpack.c.h.b16 %v413
        %v1307 = vunpack.c.l.b16 %v414
        %v1308 = vunpack.c.h.b16 %v414
        %v1309 = vunpack.c.l.b16 %v415
        %v1310 = vunpack.c.h.b16 %v415
        %v1311 = vunpack.c.l.b16 %v416
        %v1312 = vunpack.c.h.b16 %v416
        %v1313 = vunpack.c.l.b16 %v417
        %v1314 = vunpack.c.h.b16 %v417
        %v1315 = vunpack.c.l.b16 %v418
        %v1316 = vunpack.c.h.b16 %v418
        %v1317 = vunpack.c.l.b16 %v419
        %v1318 = vunpack.c.h.b16 %v419
        %v1319 = vunpack.c.l.b16 %v420
        %v1320 = vunpack.c.h.b16 %v420
        %v1321 = vunpack.c.l.b16 %v421
        %v1322 = vunpack.c.h.b16 %v421
        %v1323 = vunpack.c.l.b16 %v422
        %v1324 = vunpack.c.h.b16 %v422
        %v1325 = vunpack.c.l.b16 %v423
        %v1326 = vunpack.c.h.b16 %v423
        %v1327 = vunpack.c.l.b16 %v424
        %v1328 = vunpack.c.h.b16 %v424
        %v1329 = vunpack.c.l.b16 %v425
        %v1330 = vunpack.c.h.b16 %v425
        %v1331 = vunpack.c.l.b16 %v426
        %v1332 = vunpack.c.h.b16 %v426
        %v1333 = vunpack.c.l.b16 %v427
        %v1334 = vunpack.c.h.b16 %v427
        %v1335 = vunpack.c.l.b16 %v428
        %v1336 = vunpack.c.h.b16 %v428
        %v1337 = vunpack.c.l.b16 %v429
        %v1338 = vunpack.c.h.b16 %v429
        %v1339 = vunpack.c.l.b16 %v430
        %v1340 = vunpack.c.h.b16 %v430
        %v1341 = vunpack.c.l.b16 %v431
        %v1342 = vunpack.c.h.b16 %v431
        %v1343 = vunpack.c.l.b16 %v432
        %v1344 = vunpack.c.h.b16 %v432
        %v1345 = vunpack.c.l.b16 %v433
        %v1346 = vunpack.c.h.b16 %v433
        %v1347 = vunpack.c.l.b16 %v434
        %v1348 = vunpack.c.h.b16 %v434
        %v1349 = vunpack.c.l.b16 %v435
        %v1350 = vunpack.c.h.b16 %v435
        %v1351 = vunpack.c.l.b16 %v436
        %v1352 = vunpack.c.h.b16 %v436
        %v1353 = vunpack.c.l.b16 %v437
        %v1354 = vunpack.c.h.b16 %v437
        %v1355 = vunpack.c.l.b16 %v438
        %v1356 = vunpack.c.h.b16 %v438
        %v1357 = vunpack.c.l.b16 %v439
        %v1358 = vunpack.c.h.b16 %v439
        %v1359 = vunpack.c.l.b16 %v440
        %v1360 = vunpack.c.h.b16 %v440
        %v1361 = vunpack.c.l.b16 %v441
        %v1362 = vunpack.c.h.b16 %v441
        %v1363 = vunpack.c.l.b16 %v442
        %v1364 = vunpack.c.h.b16 %v442
        %v1365 = vunpack.c.l.b16 %v443
        %v1366 = vunpack.c.h.b16 %v443
        %v1367 = vunpack.c.l.b16 %v444
        %v1368 = vunpack.c.h.b16 %v444
        %v1369 = vunpack.c.l.b16 %v445
        %v1370 = vunpack.c.h.b16 %v445
        %v1371 = vunpack.c.l.b16 %v446
        %v1372 = vunpack.c.h.b16 %v446
        %v1373 = vunpack.c.l.b16 %v447
        %v1374 = vunpack.c.h.b16 %v447
        %v1375 = vunpack.c.l.b16 %v448
        %v1376 = vunpack.c.h.b16 %v448
        %v1377 = vunpack.c.l.b16 %v449
        %v1378 = vunpack.c.h.b16 %v449
        %v1379 = vunpack.c.l.b16 %v450
        %v1380 = vunpack.c.h.b16 %v450
        %v1381 = vunpack.c.l.b16 %v451
        %v1382 = vunpack.c.h.b16 %v451
        %v1383 = vunpack.c.l.b16 %v452
        %v1384 = vunpack.c.h.b16 %v452
        %v1385 = vunpack.c.l.b16 %v453
        %v1386 = vunpack.c.h.b16 %v453
        %v1387 = vunpack.c.l.b16 %v454
        %v1388 = vunpack.c.h.b16 %v454
        %v1389 = vunpack.c.l.b16 %v455
        %v1390 = vunpack.c.h.b16 %v455
        %v1391 = vunpack.c.l.b16 %v456
        %v1392 = vunpack.c.h.b16 %v456
        %v1393 = vunpack.c.l.b16 %v457
        %v1394 = vunpack.c.h.b16 %v457
        %v1395 = vunpack.c.l.b16 %v458
        %v1396 = vunpack.c.h.b16 %v458
        %v1397 = vunpack.c.l.b16 %v459
        %v1398 = vunpack.c.h.b16 %v459
        %v1399 = vunpack.c.l.b16 %v460
        %v1400 = vunpack.c.h.b16 %v460
        %v1401 = vunpack.c.l.b16 %v461
        %v1402 = vunpack.c.h.b16 %v461
        %v1403 = vunpack.c.l.b16 %v462
        %v1404 = vunpack.c.h.b16 %v462
        %v1405 = vunpack.c.l.b16 %v463
        %v1406 = vunpack.c.h.b16 %v463
        %v1407 = vunpack.c.l.b16 %v464
        %v1408 = vunpack.c.h.b16 %v464
        %v1409 = vunpack.c.l.b16 %v465
        %v1410 = vunpack.c.h.b16 %v465
        %v1411 = vunpack.c.l.b16 %v466
        %v1412 = vunpack.c.h.b16 %v466
        %v1413 = vunpack.c.l.b16 %v467
        %v1414 = vunpack.c.h.b16 %v467
        %v1415 = vunpack.c.l.b16 %v468
        %v1416 = vunpack.c.h.b16 %v468
        %v1417 = vunpack.c.l.b16 %v469
        %v1418 = vunpack.c.h.b16 %v469
        %v1419 = vunpack.c.l.b16 %v470
        %v1420 = vunpack.c.h.b16 %v470
        %v1421 = vunpack.c.l.b16 %v471
        %v1422 = vunpack.c.h.b16 %v471
        %v1423 = vunpack.c.l.b16 %v472
        %v1424 = vunpack.c.h.b16 %v472
        %v1425 = vunpack.c.l.b16 %v473
        %v1426 = vunpack.c.h.b16 %v473
        %v1427 = vunpack.c.l.b16 %v474
        %v1428 = vunpack.c.h.b16 %v474
        %v1429 = vunpack.c.l.b16 %v475
        %v1430 = vunpack.c.h.b16 %v475
        %v1431 = vunpack.c.l.b16 %v476
        %v1432 = vunpack.c.h.b16 %v476
        %v1433 = vunpack.c.l.b16 %v477
        %v1434 = vunpack.c.h.b16 %v477
        %v1435 = vunpack.c.l.b16 %v478
        %v1436 = vunpack.c.h.b16 %v478
        %v1437 = vunpack.c.l.b16 %v479
        %v1438 = vunpack.c.h.b16 %v479
        %v1439 = vunpack.c.l.b16 %v480
        %v1440 = vunpack.c.h.b16 %v480
        %v1441 = vunpack.c.l.b16 %v481
        %v1442 = vunpack.c.h.b16 %v481
        %v1443 = vunpack.c.l.b16 %v482
        %v1444 = vunpack.c.h.b16 %v482
        %v1445 = vunpack.c.l.b16 %v483
        %v1446 = vunpack.c.h.b16 %v483
        %v1447 = vunpack.c.l.b16 %v484
        %v1448 = vunpack.c.h.b16 %v484
        %v1449 = vunpack.c.l.b16 %v485
        %v1450 = vunpack.c.h.b16 %v485
        %v1451 = vunpack.c.l.b16 %v486
        %v1452 = vunpack.c.h.b16 %v486
        %v1453 = vunpack.c.l.b16 %v487
        %v1454 = vunpack.c.h.b16 %v487
        %v1455 = vunpack.c.l.b16 %v488
        %v1456 = vunpack.c.h.b16 %v488
        %v1457 = vunpack.c.l.b16 %v489
        %v1458 = vunpack.c.h.b16 %v489
        %v1459 = vunpack.c.l.b16 %v490
        %v1460 = vunpack.c.h.b16 %v490
        %v1461 = vunpack.c.l.b16 %v491
        %v1462 = vunpack.c.h.b16 %v491
        %v1463 = vunpack.c.l.b16 %v492
        %v1464 = vunpack.c.h.b16 %v492
        %v1465 = vunpack.c.l.b16 %v493
        %v1466 = vunpack.c.h.b16 %v493
        %v1467 = vunpack.c.l.b16 %v494
        %v1468 = vunpack.c.h.b16 %v494
        %v1469 = vunpack.c.l.b16 %v495
        %v1470 = vunpack.c.h.b16 %v495
        %v1471 = vunpack.c.l.b16 %v496
        %v1472 = vunpack.c.h.b16 %v496
        %v1473 = vunpack.c.l.b16 %v497
        %v1474 = vunpack.c.h.b16 %v497
        %v1475 = vunpack.c.l.b16 %v498
        %v1476 = vunpack.c.h.b16 %v498
        %v1477 = vunpack.c.l.b16 %v499
        %v1478 = vunpack.c.h.b16 %v499
        %v1479 = vunpack.c.l.b16 %v500
        %v1480 = vunpack.c.h.b16 %v500
        %v1481 = vunpack.c.l.b16 %v501
        %v1482 = vunpack.c.h.b16 %v501
        %v1483 = vunpack.c.l.b16 %v502
        %v1484 = vunpack.c.h.b16 %v502
        %v1485 = vunpack.c.l.b16 %v503
        %v1486 = vunpack.c.h.b16 %v503
        %v1487 = vunpack.c.l.b16 %v504
        %v1488 = vunpack.c.h.b16 %v504
        %v1489 = vunpack.c.l.b16 %v505
        %v1490 = vunpack.c.h.b16 %v505
        %v1491 = vunpack.c.l.b16 %v506
        %v1492 = vunpack.c.h.b16 %v506
        %v1493 = vunpack.c.l.b16 %v507
        %v1494 = vunpack.c.h.b16 %v507
        %v1495 = vunpack.c.l.b16 %v508
        %v1496 = vunpack.c.h.b16 %v508
        %v1497 = vunpack.c.l.b16 %v509
        %v1498 = vunpack.c.h.b16 %v509
        %v1499 = vunpack.c.l.b16 %v510
        %v1500 = vunpack.c.h.b16 %v510
        %v1501 = vunpack.c.l.b16 %v511
        %v1502 = vunpack.c.h.b16 %v511
        %v1503 = vunpack.c.l.b16 %v512
        %v1504 = vunpack.c.h.b16 %v512
        %v1505 = vunpack.c.l.b16 %v513
        %v1506 = vunpack.c.h.b16 %v513
        %v1507 = vunpack.c.l.b16 %v514
        %v1508 = vunpack.c.h.b16 %v514
        %v1509 = vunpack.c.l.b16 %v515
        %v1510 = vunpack.c.h.b16 %v515
        %v1511 = vunpack.c.l.b16 %v516
        %v1512 = vunpack.c.h.b16 %v516
        %v1513 = vunpack.c.l.b16 %v517
        %v1514 = vunpack.c.h.b16 %v517
        %v1515 = vunpack.c.l.b16 %v518
        %v1516 = vunpack.c.h.b16 %v518
        %v1517 = vunpack.c.l.b16 %v519
        %v1518 = vunpack.c.h.b16 %v519
        %v1519 = vunpack.c.l.b16 %v520
        %v1520 = vunpack.c.h.b16 %v520
        %v1521 = vunpack.c.l.b16 %v521
        %v1522 = vunpack.c.h.b16 %v521
        %v1523 = vunpack.c.l.b16 %v522
        %v1524 = vunpack.c.h.b16 %v522
        %v1525 = vunpack.c.l.b16 %v523
        %v1526 = vunpack.c.h.b16 %v523
        %v1527 = vunpack.c.l.b16 %v524
        %v1528 = vunpack.c.h.b16 %v524
        %v1529 = vunpack.c.l.b16 %v525
        %v1530 = vunpack.c.h.b16 %v525
        %v1531 = vunpack.c.l.b16 %v526
        %v1532 = vunpack.c.h.b16 %v526
        %v1533 = vunpack.c.l.b16 %v527
        %v1534 = vunpack.c.h.b16 %v527
        %v1535 = vunpack.c.l.b16 %v528
        %v1536 = vunpack.c.h.b16 %v528
        %v1537 = vunpack.c.l.b16 %v529
        %v1538 = vunpack.c.h.b16 %v529
        %v1539 = vunpack.c.l.b16 %v530
        %v1540 = vunpack.c.h.b16 %v530
        %v1541 = vunpack.c.l.b16 %v531
        %v1542 = vunpack.c.h.b16 %v531
        %v1543 = vunpack.c.l.b16 %v532
        %v1544 = vunpack.c.h.b16 %v532
        %v1545 = vunpack.c.l.b16 %v533
        %v1546 = vunpack.c.h.b16 %v533
        %v1547 = vunpack.c.l.b16 %v534
        %v1548 = vunpack.c.h.b16 %v534
        %v1549 = vunpack.c.l.b16 %v535
        %v1550 = vunpack.c.h.b16 %v535
        %v1551 = vunpack.c.l.b16 %v536
        %v1552 = vunpack.c.h.b16 %v536
        %v1553 = vunpack.c.l.b16 %v537
        %v1554 = vunpack.c.h.b16 %v537
        %v1555 = vunpack.c.l.b16 %v538
        %v1556 = vunpack.c.h.b16 %v538
        %v1557 = vunpack.c.l.b16 %v539
        %v1558 = vunpack.c.h.b16 %v539
        %v1559 = vunpack.c.l.b16 %v540
        %v1560 = vunpack.c.h.b16 %v540
        %v1561 = vunpack.c.l.b16 %v541
        %v1562 = vunpack.c.h.b16 %v541
        %v1563 = vunpack.c.l.b16 %v542
        %v1564 = vunpack.c.h.b16 %v542
        %v1565 = vunpack.c.l.b16 %v543
        %v1566 = vunpack.c.h.b16 %v543
        %v1567 = vunpack.c.l.b16 %v544
        %v1568 = vunpack.c.h.b16 %v544
        %v1569 = vunpack.c.l.b16 %v545
        %v1570 = vunpack.c.h.b16 %v545
        %v1571 = vunpack.c.l.b16 %v546
        %v1572 = vunpack.c.h.b16 %v546
        %v1573 = vunpack.c.l.b16 %v547
        %v1574 = vunpack.c.h.b16 %v547
        %v1575 = vunpack.c.l.b16 %v548
        %v1576 = vunpack.c.h.b16 %v548
        %v1577 = vunpack.c.l.b16 %v549
        %v1578 = vunpack.c.h.b16 %v549
        %v1579 = vunpack.c.l.b16 %v550
        %v1580 = vunpack.c.h.b16 %v550
        %v1581 = vunpack.c.l.b16 %v551
        %v1582 = vunpack.c.h.b16 %v551
        %v1583 = vunpack.c.l.b16 %v552
        %v1584 = vunpack.c.h.b16 %v552
        %v1585 = vunpack.c.l.b16 %v553
        %v1586 = vunpack.c.h.b16 %v553
        %v1587 = vunpack.c.l.b16 %v554
        %v1588 = vunpack.c.h.b16 %v554
        %v1589 = vunpack.c.l.b16 %v555
        %v1590 = vunpack.c.h.b16 %v555
        %v1591 = vunpack.c.l.b16 %v556
        %v1592 = vunpack.c.h.b16 %v556
        %v1593 = vunpack.c.l.b16 %v557
        %v1594 = vunpack.c.h.b16 %v557
        %v1595 = vunpack.c.l.b16 %v558
        %v1596 = vunpack.c.h.b16 %v558
        %v1597 = vunpack.c.l.b16 %v559
        %v1598 = vunpack.c.h.b16 %v559
        %v1599 = vunpack.c.l.b16 %v560
        %v1600 = vunpack.c.h.b16 %v560
        %v1601 = vunpack.c.l.b16 %v561
        %v1602 = vunpack.c.h.b16 %v561
        %v1603 = vunpack.c.l.b16 %v562
        %v1604 = vunpack.c.h.b16 %v562
        %v1605 = vunpack.c.l.b16 %v563
        %v1606 = vunpack.c.h.b16 %v563
        %v1607 = vunpack.c.l.b16 %v564
        %v1608 = vunpack.c.h.b16 %v564
        %v1609 = vunpack.c.l.b16 %v565
        %v1610 = vunpack.c.h.b16 %v565
        %v1611 = vunpack.c.l.b16 %v566
        %v1612 = vunpack.c.h.b16 %v566
        %v1613 = vunpack.c.l.b16 %v567
        %v1614 = vunpack.c.h.b16 %v567
        %v1615 = vunpack.c.l.b16 %v568
        %v1616 = vunpack.c.h.b16 %v568
        %v1617 = vunpack.c.l.b16 %v569
        %v1618 = vunpack.c.h.b16 %v569
        %v1619 = vunpack.c.l.b16 %v570
        %v1620 = vunpack.c.h.b16 %v570
        %v1621 = vunpack.c.l.b16 %v571
        %v1622 = vunpack.c.h.b16 %v571
        %v1623 = vunpack.c.l.b16 %v572
        %v1624 = vunpack.c.h.b16 %v572
        %v1625 = vunpack.c.l.b16 %v573
        %v1626 = vunpack.c.h.b16 %v573
        %v1627 = vunpack.c.l.b16 %v574
        %v1628 = vunpack.c.h.b16 %v574
        %v1629 = vunpack.c.l.b16 %v575
        %v1630 = vunpack.c.h.b16 %v575
        %v1631 = vunpack.c.l.b16 %v576
        %v1632 = vunpack.c.h.b16 %v576
        %v1633 = vunpack.c.l.b16 %v577
        %v1634 = vunpack.c.h.b16 %v577
        %v1635 = vunpack.c.l.b16 %v578
        %v1636 = vunpack.c.h.b16 %v578
        %v1637 = vunpack.c.l.b16 %v579
        %v1638 = vunpack.c.h.b16 %v579
        %v1639 = vunpack.c.l.b16 %v580
        %v1640 = vunpack.c.h.b16 %v580
        %v1641 = vunpack.c.l.b16 %v581
        %v1642 = vunpack.c.h.b16 %v581
        %v1643 = vunpack.c.l.b16 %v582
        %v1644 = vunpack.c.h.b16 %v582
        %v1645 = vunpack.c.l.b16 %v583
        %v1646 = vunpack.c.h.b16 %v583
        %v1647 = vunpack.c.l.b16 %v584
        %v1648 = vunpack.c.h.b16 %v584
        %v1649 = vunpack.c.l.b16 %v585
        %v1650 = vunpack.c.h.b16 %v585
        %v1651 = vunpack.c.l.b16 %v586
        %v1652 = vunpack.c.h.b16 %v586
        %v1653 = vunpack.c.l.b16 %v587
        %v1654 = vunpack.c.h.b16 %v587
        %v1655 = vunpack.c.l.b16 %v588
        %v1656 = vunpack.c.h.b16 %v588
        %v1657 = vunpack.c.l.b16 %v589
        %v1658 = vunpack.c.h.b16 %v589
        %v1659 = vunpack.c.l.b16 %v590
        %v1660 = vunpack.c.h.b16 %v590
        %v1661 = vunpack.c.l.b16 %v591
        %v1662 = vunpack.c.h.b16 %v591
        %v1663 = vunpack.c.l.b16 %v592
        %v1664 = vunpack.c.h.b16 %v592
        %v1665 = vunpack.c.l.b16 %v593
        %v1666 = vunpack.c.h.b16 %v593
        %v1667 = vunpack.c.l.b16 %v594
        %v1668 = vunpack.c.h.b16 %v594
        %v1669 = vunpack.c.l.b16 %v595
        %v1670 = vunpack.c.h.b16 %v595
        %v1671 = vunpack.c.l.b16 %v596
        %v1672 = vunpack.c.h.b16 %v596
        %v1673 = vunpack.c.l.b16 %v597
        %v1674 = vunpack.c.h.b16 %v597
        %v1675 = vunpack.c.l.b16 %v598
        %v1676 = vunpack.c.h.b16 %v598
        %v1677 = vunpack.c.l.b16 %v599
        %v1678 = vunpack.c.h.b16 %v599
        %v1679 = vunpack.c.l.b16 %v600
        %v1680 = vunpack.c.h.b16 %v600
        %v1681 = vunpack.c.l.b16 %v601
        %v1682 = vunpack.c.h.b16 %v601
        %v1683 = vunpack.c.l.b16 %v602
        %v1684 = vunpack.c.h.b16 %v602
        %v1685 = vunpack.c.l.b16 %v603
        %v1686 = vunpack.c.h.b16 %v603
        %v1687 = vunpack.c.l.b16 %v604
        %v1688 = vunpack.c.h.b16 %v604
        %v1689 = vunpack.c.l.b16 %v605
        %v1690 = vunpack.c.h.b16 %v605
        %v1691 = vunpack.c.l.b16 %v606
        %v1692 = vunpack.c.h.b16 %v606
        %v1693 = vunpack.c.l.b16 %v607
        %v1694 = vunpack.c.h.b16 %v607
        %v1695 = vunpack.c.l.b16 %v608
        %v1696 = vunpack.c.h.b16 %v608
        %v1697 = vunpack.c.l.b16 %v609
        %v1698 = vunpack.c.h.b16 %v609
        %v1699 = vunpack.c.l.b16 %v610
        %v1700 = vunpack.c.h.b16 %v610
        %v1701 = vunpack.c.l.b16 %v611
        %v1702 = vunpack.c.h.b16 %v611
        %v1703 = vunpack.c.l.b16 %v612
        %v1704 = vunpack.c.h.b16 %v612
        %v1705 = vunpack.c.l.b16 %v613
        %v1706 = vunpack.c.h.b16 %v613
        %v1707 = vunpack.c.l.b16 %v614
        %v1708 = vunpack.c.h.b16 %v614
        %v1709 = vunpack.c.l.b16 %v615
        %v1710 = vunpack.c.h.b16 %v615
        %v1711 = vunpack.c.l.b16 %v616
        %v1712 = vunpack.c.h.b16 %v616
        %v1713 = vunpack.c.l.b16 %v617
        %v1714 = vunpack.c.h.b16 %v617
        %v1715 = vunpack.c.l.b16 %v618
        %v1716 = vunpack.c.h.b16 %v618
        %v1717 = vunpack.c.l.b16 %v619
        %v1718 = vunpack.c.h.b16 %v619
        %v1719 = vunpack.c.l.b16 %v620
        %v1720 = vunpack.c.h.b16 %v620
        %v1721 = vunpack.c.l.b16 %v621
        %v1722 = vunpack.c.h.b16 %v621
        %v1723 = vunpack.c.l.b16 %v622
        %v1724 = vunpack.c.h.b16 %v622
        %v1725 = vunpack.c.l.b16 %v623
        %v1726 = vunpack.c.h.b16 %v623
        %v1727 = vunpack.c.l.b16 %v624
        %v1728 = vunpack.c.h.b16 %v624
        %v1729 = vunpack.c.l.b16 %v625
        %v1730 = vunpack.c.h.b16 %v625
        %v1731 = vunpack.c.l.b16 %v626
        %v1732 = vunpack.c.h.b16 %v626
        %v1733 = vunpack.c.l.b16 %v627
        %v1734 = vunpack.c.h.b16 %v627
        %v1735 = vunpack.c.l.b16 %v628
        %v1736 = vunpack.c.h.b16 %v628
        %v1737 = vunpack.c.l.b16 %v629
        %v1738 = vunpack.c.h.b16 %v629
        %v1739 = vunpack.c.l.b16 %v630
        %v1740 = vunpack.c.h.b16 %v630
        %v1741 = vunpack.c.l.b16 %v631
        %v1742 = vunpack.c.h.b16 %v631
        %v1743 = vunpack.c.l.b16 %v632
        %v1744 = vunpack.c.h.b16 %v632
        %v1745 = vunpack.c.l.b16 %v633
        %v1746 = vunpack.c.h.b16 %v633
        %v1747 = vunpack.c.l.b16 %v634
        %v1748 = vunpack.c.h.b16 %v634
        %v1749 = vunpack.c.l.b16 %v635
        %v1750 = vunpack.c.h.b16 %v635
        %v1751 = vunpack.c.l.b16 %v636
        %v1752 = vunpack.c.h.b16 %v636
        %v1753 = vunpack.c.l.b16 %v637
        %v1754 = vunpack.c.h.b16 %v637
        %v1755 = vunpack.c.l.b16 %v638
        %v1756 = vunpack.c.h.b16 %v638
        %v1757 = vunpack.c.l.b16 %v639
        %v1758 = vunpack.c.h.b16 %v639
        %v1759 = vunpack.c.l.b16 %v640
        %v1760 = vunpack.c.h.b16 %v640
        %v1761 = vunpack.c.l.b16 %v641
        %v1762 = vunpack.c.h.b16 %v641
        %v1763 = vunpack.c.l.b16 %v642
        %v1764 = vunpack.c.h.b16 %v642
        %v1765 = vunpack.c.l.b16 %v643
        %v1766 = vunpack.c.h.b16 %v643
        %v1767 = vunpack.c.l.b16 %v644
        %v1768 = vunpack.c.h.b16 %v644
        %v1769 = vunpack.c.l.b16 %v645
        %v1770 = vunpack.c.h.b16 %v645
        %v1771 = vunpack.c.l.b16 %v646
        %v1772 = vunpack.c.h.b16 %v646
        %v1773 = vunpack.c.l.b16 %v647
        %v1774 = vunpack.c.h.b16 %v647
        %v1775 = vunpack.c.l.b16 %v648
        %v1776 = vunpack.c.h.b16 %v648
        %v1777 = vunpack.c.l.b16 %v649
        %v1778 = vunpack.c.h.b16 %v649
        %v1779 = vunpack.c.l.b16 %v650
        %v1780 = vunpack.c.h.b16 %v650
        %v1781 = vunpack.c.l.b16 %v651
        %v1782 = vunpack.c.h.b16 %v651
        %v1783 = vunpack.c.l.b16 %v652
        %v1784 = vunpack.c.h.b16 %v652
        %v1785 = vunpack.c.l.b16 %v653
        %v1786 = vunpack.c.h.b16 %v653
        %v1787 = vunpack.c.l.b16 %v654
        %v1788 = vunpack.c.h.b16 %v654
        %v1789 = vunpack.c.l.b16 %v655
        %v1790 = vunpack.c.h.b16 %v655
        %v1791 = vunpack.c.l.b16 %v656
        %v1792 = vunpack.c.h.b16 %v656
        %v1793 = vunpack.c.l.b16 %v657
        %v1794 = vunpack.c.h.b16 %v657
        %v1795 = vunpack.c.l.b16 %v658
        %v1796 = vunpack.c.h.b16 %v658
        %v1797 = vunpack.c.l.b16 %v659
        %v1798 = vunpack.c.h.b16 %v659
        %v1799 = vunpack.c.l.b16 %v660
        %v1800 = vunpack.c.h.b16 %v660
        %v1801 = vunpack.c.l.b16 %v661
        %v1802 = vunpack.c.h.b16 %v661
        %v1803 = vunpack.c.l.b16 %v662
        %v1804 = vunpack.c.h.b16 %v662
        %v1805 = vunpack.c.l.b16 %v663
        %v1806 = vunpack.c.h.b16 %v663
        %v1807 = vunpack.c.l.b16 %v664
        %v1808 = vunpack.c.h.b16 %v664
        %v1809 = vunpack.c.l.b16 %v665
        %v1810 = vunpack.c.h.b16 %v665
        %v1811 = vunpack.c.l.b16 %v666
        %v1812 = vunpack.c.h.b16 %v666
        %v1813 = vunpack.c.l.b16 %v667
        %v1814 = vunpack.c.h.b16 %v667
        %v1815 = vunpack.c.l.b16 %v668
        %v1816 = vunpack.c.h.b16 %v668
        %v1817 = vunpack.c.l.b16 %v669
        %v1818 = vunpack.c.h.b16 %v669
        %v1819 = vunpack.c.l.b16 %v670
        %v1820 = vunpack.c.h.b16 %v670
        %v1821 = vunpack.c.l.b16 %v671
        %v1822 = vunpack.c.h.b16 %v671
        %v1823 = vunpack.c.l.b16 %v672
        %v1824 = vunpack.c.h.b16 %v672
        %v1825 = vunpack.c.l.b16 %v673
        %v1826 = vunpack.c.h.b16 %v673
        %v1827 = vunpack.c.l.b16 %v674
        %v1828 = vunpack.c.h.b16 %v674
        %v1829 = vunpack.c.l.b16 %v675
        %v1830 = vunpack.c.h.b16 %v675
        %v1831 = vunpack.c.l.b16 %v676
        %v1832 = vunpack.c.h.b16 %v676
        %v1833 = vunpack.c.l.b16 %v677
        %v1834 = vunpack.c.h.b16 %v677
        %v1835 = vunpack.c.l.b16 %v678
        %v1836 = vunpack.c.h.b16 %v678
        %v1837 = vunpack.c.l.b16 %v679
        %v1838 = vunpack.c.h.b16 %v679
        %v1839 = vunpack.c.l.b16 %v680
        %v1840 = vunpack.c.h.b16 %v680
        %v1841 = vunpack.c.l.b16 %v681
        %v1842 = vunpack.c.h.b16 %v681
        %v1843 = vunpack.c.l.b16 %v682
        %v1844 = vunpack.c.h.b16 %v682
        %v1845 = vunpack.c.l.b16 %v683
        %v1846 = vunpack.c.h.b16 %v683
        %v1847 = vunpack.c.l.b16 %v684
        %v1848 = vunpack.c.h.b16 %v684
        %v1849 = vunpack.c.l.b16 %v685
        %v1850 = vunpack.c.h.b16 %v685
        %v1851 = vunpack.c.l.b16 %v686
        %v1852 = vunpack.c.h.b16 %v686
        %v1853 = vunpack.c.l.b16 %v687
        %v1854 = vunpack.c.h.b16 %v687
        %v1855 = vunpack.c.l.b16 %v688
        %v1856 = vunpack.c.h.b16 %v688
        %v1857 = vunpack.c.l.b16 %v689
        %v1858 = vunpack.c.h.b16 %v689
        %v1859 = vunpack.c.l.b16 %v690
        %v1860 = vunpack.c.h.b16 %v690
        %v1861 = vunpack.c.l.b16 %v691
        %v1862 = vunpack.c.h.b16 %v691
        %v1863 = vunpack.c.l.b16 %v692
        %v1864 = vunpack.c.h.b16 %v692
        %v1865 = vunpack.c.l.b16 %v693
        %v1866 = vunpack.c.h.b16 %v693
        %v1867 = vunpack.c.l.b16 %v694
        %v1868 = vunpack.c.h.b16 %v694
        %v1869 = vunpack.c.l.b16 %v695
        %v1870 = vunpack.c.h.b16 %v695
        %v1871 = vunpack.c.l.b16 %v696
        %v1872 = vunpack.c.h.b16 %v696
        %v1873 = vunpack.c.l.b16 %v697
        %v1874 = vunpack.c.h.b16 %v697
        %v1875 = vunpack.c.l.b16 %v698
        %v1876 = vunpack.c.h.b16 %v698
        %v1877 = vunpack.c.l.b16 %v699
        %v1878 = vunpack.c.h.b16 %v699
        %v1879 = vunpack.c.l.b16 %v700
        %v1880 = vunpack.c.h.b16 %v700
        %v1881 = vunpack.c.l.b16 %v701
        %v1882 = vunpack.c.h.b16 %v701
        %v1883 = vunpack.c.l.b16 %v702
        %v1884 = vunpack.c.h.b16 %v702
        %v1885 = vpack.c.b16 %v1125, %v1117
        %v1886 = vpack.c.b16 %v1126, %v1118
        %v1887 = vpack.c.b16 %v1127, %v1119
        %v1888 = vpack.c.b16 %v1128, %v1120
        %v1889 = vpack.c.b16 %v1129, %v1121
        %v1890 = vpack.c.b16 %v1130, %v1122
        %v1891 = vpack.c.b16 %v1131, %v1123
        %v1892 = vpack.c.b16 %v1132, %v1124
        %v1893 = vpack.c.b16 %v1141, %v1133
        %v1894 = vpack.c.b16 %v1142, %v1134
        %v1895 = vpack.c.b16 %v1143, %v1135
        %v1896 = vpack.c.b16 %v1144, %v1136
        %v1897 = vpack.c.b16 %v1145, %v1137
        %v1898 = vpack.c.b16 %v1146, %v1138
        %v1899 = vpack.c.b16 %v1147, %v1139
        %v1900 = vpack.c.b16 %v1148, %v1140
        %v1901 = vpack.c.b16 %v1157, %v1149
        %v1902 = vpack.c.b16 %v1158, %v1150
        %v1903 = vpack.c.b16 %v1159, %v1151
        %v1904 = vpack.c.b16 %v1160, %v1152
        %v1905 = vpack.c.b16 %v1161, %v1153
        %v1906 = vpack.c.b16 %v1162, %v1154
        %v1907 = vpack.c.b16 %v1163, %v1155
        %v1908 = vpack.c.b16 %v1164, %v1156
        %v1909 = vpack.c.b16 %v1173, %v1165
        %v1910 = vpack.c.b16 %v1174, %v1166
        %v1911 = vpack.c.b16 %v1175, %v1167
        %v1912 = vpack.c.b16 %v1176, %v1168
        %v1913 = vpack.c.b16 %v1177, %v1169
        %v1914 = vpack.c.b16 %v1178, %v1170
        %v1915 = vpack.c.b16 %v1179, %v1171
        %v1916 = vpack.c.b16 %v1180, %v1172
        %v1917 = vpack.c.b16 %v1189, %v1181
        %v1918 = vpack.c.b16 %v1190, %v1182
        %v1919 = vpack.c.b16 %v1191, %v1183
        %v1920 = vpack.c.b16 %v1192, %v1184
        %v1921 = vpack.c.b16 %v1193, %v1185
        %v1922 = vpack.c.b16 %v1194, %v1186
        %v1923 = vpack.c.b16 %v1195, %v1187
        %v1924 = vpack.c.b16 %v1196, %v1188
        %v1925 = vpack.c.b16 %v1205, %v1197
        %v1926 = vpack.c.b16 %v1206, %v1198
        %v1927 = vpack.c.b16 %v1207, %v1199
        %v1928 = vpack.c.b16 %v1208, %v1200
        %v1929 = vpack.c.b16 %v1209, %v1201
        %v1930 = vpack.c.b16 %v1210, %v1202
        %v1931 = vpack.c.b16 %v1211, %v1203
        %v1932 = vpack.c.b16 %v1212, %v1204
        %v1933 = vpack.c.b16 %v1221, %v1213
        %v1934 = vpack.c.b16 %v1222, %v1214
        %v1935 = vpack.c.b16 %v1223, %v1215
        %v1936 = vpack.c.b16 %v1224, %v1216
        %v1937 = vpack.c.b16 %v1225, %v1217
        %v1938 = vpack.c.b16 %v1226, %v1218
        %v1939 = vpack.c.b16 %v1227, %v1219
        %v1940 = vpack.c.b16 %v1228, %v1220
        %v1941 = vpack.c.b16 %v1237, %v1229
        %v1942 = vpack.c.b16 %v1238, %v1230
        %v1943 = vpack.c.b16 %v1239, %v1231
        %v1944 = vpack.c.b16 %v1240, %v1232
        %v1945 = vpack.c.b16 %v1241, %v1233
        %v1946 = vpack.c.b16 %v1242, %v1234
        %v1947 = vpack.c.b16 %v1243, %v1235
        %v1948 = vpack.c.b16 %v1244, %v1236
        %v1949 = vpack.c.b16 %v1253, %v1245
        %v1950 = vpack.c.b16 %v1254, %v1246
        %v1951 = vpack.c.b16 %v1255, %v1247
        %v1952 = vpack.c.b16 %v1256, %v1248
        %v1953 = vpack.c.b16 %v1257, %v1249
        %v1954 = vpack.c.b16 %v1258, %v1250
        %v1955 = vpack.c.b16 %v1259, %v1251
        %v1956 = vpack.c.b16 %v1260, %v1252
        %v1957 = vpack.c.b16 %v1269, %v1261
        %v1958 = vpack.c.b16 %v1270, %v1262
        %v1959 = vpack.c.b16 %v1271, %v1263
        %v1960 = vpack.c.b16 %v1272, %v1264
        %v1961 = vpack.c.b16 %v1273, %v1265
        %v1962 = vpack.c.b16 %v1274, %v1266
        %v1963 = vpack.c.b16 %v1275, %v1267
        %v1964 = vpack.c.b16 %v1276, %v1268
        %v1965 = vpack.c.b16 %v1285, %v1277
        %v1966 = vpack.c.b16 %v1286, %v1278
        %v1967 = vpack.c.b16 %v1287, %v1279
        %v1968 = vpack.c.b16 %v1288, %v1280
        %v1969 = vpack.c.b16 %v1289, %v1281
        %v1970 = vpack.c.b16 %v1290, %v1282
        %v1971 = vpack.c.b16 %v1291, %v1283
        %v1972 = vpack.c.b16 %v1292, %v1284
        %v1973 = vpack.c.b16 %v1301, %v1293
        %v1974 = vpack.c.b16 %v1302, %v1294
        %v1975 = vpack.c.b16 %v1303, %v1295
        %v1976 = vpack.c.b16 %v1304, %v1296
        %v1977 = vpack.c.b16 %v1305, %v1297
        %v1978 = vpack.c.b16 %v1306, %v1298
        %v1979 = vpack.c.b16 %v1307, %v1299
        %v1980 = vpack.c.b16 %v1308, %v1300
        %v1981 = vpack.c.b16 %v1317, %v1309
        %v1982 = vpack.c.b16 %v1318, %v1310
        %v1983 = vpack.c.b16 %v1319, %v1311
        %v1984 = vpack.c.b16 %v1320, %v1312
        %v1985 = vpack.c.b16 %v1321, %v1313
        %v1986 = vpack.c.b16 %v1322, %v1314
        %v1987 = vpack.c.b16 %v1323, %v1315
        %v1988 = vpack.c.b16 %v1324, %v1316
        %v1989 = vpack.c.b16 %v1333, %v1325
        %v1990 = vpack.c.b16 %v1334, %v1326
        %v1991 = vpack.c.b16 %v1335, %v1327
        %v1992 = vpack.c.b16 %v1336, %v1328
        %v1993 = vpack.c.b16 %v1337, %v1329
        %v1994 = vpack.c.b16 %v1338, %v1330
        %v1995 = vpack.c.b16 %v1339, %v1331
        %v1996 = vpack.c.b16 %v1340, %v1332
        %v1997 = vpack.c.b16 %v1349, %v1341
        %v1998 = vpack.c.b16 %v1350, %v1342
        %v1999 = vpack.c.b16 %v1351, %v1343
        %v2000 = vpack.c.b16 %v1352, %v1344
        %v2001 = vpack.c.b16 %v1353, %v1345
        %v2002 = vpack.c.b16 %v1354, %v1346
        %v2003 = vpack.c.b16 %v1355, %v1347
        %v2004 = vpack.c.b16 %v1356, %v1348
        %v2005 = vpack.c.b16 %v1365, %v1357
        %v2006 = vpack.c.b16 %v1366, %v1358
        %v2007 = vpack.c.b16 %v1367, %v1359
        %v2008 = vpack.c.b16 %v1368, %v1360
        %v2009 = vpack.c.b16 %v1369, %v1361
        %v2010 = vpack.c.b16 %v1370, %v1362
        %v2011 = vpack.c.b16 %v1371, %v1363
        %v2012 = vpack.c.b16 %v1372, %v1364
        %v2013 = vpack.c.b16 %v1381, %v1373
        %v2014 = vpack.c.b16 %v1382, %v1374
        %v2015 = vpack.c.b16 %v1383, %v1375
        %v2016 = vpack.c.b16 %v1384, %v1376
        %v2017 = vpack.c.b16 %v1385, %v1377
        %v2018 = vpack.c.b16 %v1386, %v1378
        %v2019 = vpack.c.b16 %v1387, %v1379
        %v2020 = vpack.c.b16 %v1388, %v1380
        %v2021 = vpack.c.b16 %v1397, %v1389
        %v2022 = vpack.c.b16 %v1398, %v1390
        %v2023 = vpack.c.b16 %v1399, %v1391
        %v2024 = vpack.c.b16 %v1400, %v1392
        %v2025 = vpack.c.b16 %v1401, %v1393
        %v2026 = vpack.c.b16 %v1402, %v1394
        %v2027 = vpack.c.b16 %v1403, %v1395
        %v2028 = vpack.c.b16 %v1404, %v1396
        %v2029 = vpack.c.b16 %v1413, %v1405
        %v2030 = vpack.c.b16 %v1414, %v1406
        %v2031 = vpack.c.b16 %v1415, %v1407
        %v2032 = vpack.c.b16 %v1416, %v1408
        %v2033 = vpack.c.b16 %v1417, %v1409
        %v2034 = vpack.c.b16 %v1418, %v1410
        %v2035 = vpack.c.b16 %v1419, %v1411
        %v2036 = vpack.c.b16 %v1420, %v1412
        %v2037 = vpack.c.b16 %v1429, %v1421
        %v2038 = vpack.c.b16 %v1430, %v1422
        %v2039 = vpack.c.b16 %v1431, %v1423
        %v2040 = vpack.c.b16 %v1432, %v1424
        %v2041 = vpack.c.b16 %v1433, %v1425
        %v2042 = vpack.c.b16 %v1434, %v1426
        %v2043 = vpack.c.b16 %v1435, %v1427
        %v2044 = vpack.c.b16 %v1436, %v1428
        %v2045 = vpack.c.b16 %v1445, %v1437
        %v2046 = vpack.c.b16 %v1446, %v1438
        %v2047 = vpack.c.b16 %v1447, %v1439
        %v2048 = vpack.c.b16 %v1448, %v1440
        %v2049 = vpack.c.b16 %v1449, %v1441
        %v2050 = vpack.c.b16 %v1450, %v1442
        %v2051 = vpack.c.b16 %v1451, %v1443
        %v2052 = vpack.c.b16 %v1452, %v1444
        %v2053 = vpack.c.b16 %v1461, %v1453
        %v2054 = vpack.c.b16 %v1462, %v1454
        %v2055 = vpack.c.b16 %v1463, %v1455
        %v2056 = vpack.c.b16 %v1464, %v1456
        %v2057 = vpack.c.b16 %v1465, %v1457
        %v2058 = vpack.c.b16 %v1466, %v1458
        %v2059 = vpack.c.b16 %v1467, %v1459
        %v2060 = vpack.c.b16 %v1468, %v1460
        %v2061 = vpack.c.b16 %v1477, %v1469
        %v2062 = vpack.c.b16 %v1478, %v1470
        %v2063 = vpack.c.b16 %v1479, %v1471
        %v2064 = vpack.c.b16 %v1480, %v1472
        %v2065 = vpack.c.b16 %v1481, %v1473
        %v2066 = vpack.c.b16 %v1482, %v1474
        %v2067 = vpack.c.b16 %v1483, %v1475
        %v2068 = vpack.c.b16 %v1484, %v1476
        %v2069 = vpack.c.b16 %v1493, %v1485
        %v2070 = vpack.c.b16 %v1494, %v1486
        %v2071 = vpack.c.b16 %v1495, %v1487
        %v2072 = vpack.c.b16 %v1496, %v1488
        %v2073 = vpack.c.b16 %v1497, %v1489
        %v2074 = vpack.c.b16 %v1498, %v1490
        %v2075 = vpack.c.b16 %v1499, %v1491
        %v2076 = vpack.c.b16 %v1500, %v1492
        %v2077 = vpack.c.b16 %v1509, %v1501
        %v2078 = vpack.c.b16 %v1510, %v1502
        %v2079 = vpack.c.b16 %v1511, %v1503
        %v2080 = vpack.c.b16 %v1512, %v1504
        %v2081 = vpack.c.b16 %v1513, %v1505
        %v2082 = vpack.c.b16 %v1514, %v1506
        %v2083 = vpack.c.b16 %v1515, %v1507
        %v2084 = vpack.c.b16 %v1516, %v1508
        %v2085 = vpack.c.b16 %v1525, %v1517
        %v2086 = vpack.c.b16 %v1526, %v1518
        %v2087 = vpack.c.b16 %v1527, %v1519
        %v2088 = vpack.c.b16 %v1528, %v1520
        %v2089 = vpack.c.b16 %v1529, %v1521
        %v2090 = vpack.c.b16 %v1530, %v1522
        %v2091 = vpack.c.b16 %v1531, %v1523
        %v2092 = vpack.c.b16 %v1532, %v1524
        %v2093 = vpack.c.b16 %v1541, %v1533
        %v2094 = vpack.c.b16 %v1542, %v1534
        %v2095 = vpack.c.b16 %v1543, %v1535
        %v2096 = vpack.c.b16 %v1544, %v1536
        %v2097 = vpack.c.b16 %v1545, %v1537
        %v2098 = vpack.c.b16 %v1546, %v1538
        %v2099 = vpack.c.b16 %v1547, %v1539
        %v2100 = vpack.c.b16 %v1548, %v1540
        %v2101 = vpack.c.b16 %v1557, %v1549
        %v2102 = vpack.c.b16 %v1558, %v1550
        %v2103 = vpack.c.b16 %v1559, %v1551
        %v2104 = vpack.c.b16 %v1560, %v1552
        %v2105 = vpack.c.b16 %v1561, %v1553
        %v2106 = vpack.c.b16 %v1562, %v1554
        %v2107 = vpack.c.b16 %v1563, %v1555
        %v2108 = vpack.c.b16 %v1564, %v1556
        %v2109 = vpack.c.b16 %v1573, %v1565
        %v2110 = vpack.c.b16 %v1574, %v1566
        %v2111 = vpack.c.b16 %v1575, %v1567
        %v2112 = vpack.c.b16 %v1576, %v1568
        %v2113 = vpack.c.b16 %v1577, %v1569
        %v2114 = vpack.c.b16 %v1578, %v1570
        %v2115 = vpack.c.b16 %v1579, %v1571
        %v2116 = vpack.c.b16 %v1580, %v1572
        %v2117 = vpack.c.b16 %v1589, %v1581
        %v2118 = vpack.c.b16 %v1590, %v1582
        %v2119 = vpack.c.b16 %v1591, %v1583
        %v2120 = vpack.c.b16 %v1592, %v1584
        %v2121 = vpack.c.b16 %v1593, %v1585
        %v2122 = vpack.c.b16 %v1594, %v1586
        %v2123 = vpack.c.b16 %v1595, %v1587
        %v2124 = vpack.c.b16 %v1596, %v1588
        %v2125 = vpack.c.b16 %v1605, %v1597
        %v2126 = vpack.c.b16 %v1606, %v1598
        %v2127 = vpack.c.b16 %v1607, %v1599
        %v2128 = vpack.c.b16 %v1608, %v1600
        %v2129 = vpack.c.b16 %v1609, %v1601
        %v2130 = vpack.c.b16 %v1610, %v1602
        %v2131 = vpack.c.b16 %v1611, %v1603
        %v2132 = vpack.c.b16 %v1612, %v1604
        %v2133 = vpack.c.b16 %v1621, %v1613
        %v2134 = vpack.c.b16 %v1622, %v1614
        %v2135 = vpack.c.b16 %v1623, %v1615
        %v2136 = vpack.c.b16 %v1624, %v1616
        %v2137 = vpack.c.b16 %v1625, %v1617
        %v2138 = vpack.c.b16 %v1626, %v1618
        %v2139 = vpack.c.b16 %v1627, %v1619
        %v2140 = vpack.c.b16 %v1628, %v1620
        %v2141 = vpack.c.b16 %v1637, %v1629
        %v2142 = vpack.c.b16 %v1638, %v1630
        %v2143 = vpack.c.b16 %v1639, %v1631
        %v2144 = vpack.c.b16 %v1640, %v1632
        %v2145 = vpack.c.b16 %v1641, %v1633
        %v2146 = vpack.c.b16 %v1642, %v1634
        %v2147 = vpack.c.b16 %v1643, %v1635
        %v2148 = vpack.c.b16 %v1644, %v1636
        %v2149 = vpack.c.b16 %v1653, %v1645
        %v2150 = vpack.c.b16 %v1654, %v1646
        %v2151 = vpack.c.b16 %v1655, %v1647
        %v2152 = vpack.c.b16 %v1656, %v1648
        %v2153 = vpack.c.b16 %v1657, %v1649
        %v2154 = vpack.c.b16 %v1658, %v1650
        %v2155 = vpack.c.b16 %v1659, %v1651
        %v2156 = vpack.c.b16 %v1660, %v1652
        %v2157 = vpack.c.b16 %v1669, %v1661
        %v2158 = vpack.c.b16 %v1670, %v1662
        %v2159 = vpack.c.b16 %v1671, %v1663
        %v2160 = vpack.c.b16 %v1672, %v1664
        %v2161 = vpack.c.b16 %v1673, %v1665
        %v2162 = vpack.c.b16 %v1674, %v1666
        %v2163 = vpack.c.b16 %v1675, %v1667
        %v2164 = vpack.c.b16 %v1676, %v1668
        %v2165 = vpack.c.b16 %v1685, %v1677
        %v2166 = vpack.c.b16 %v1686, %v1678
        %v2167 = vpack.c.b16 %v1687, %v1679
        %v2168 = vpack.c.b16 %v1688, %v1680
        %v2169 = vpack.c.b16 %v1689, %v1681
        %v2170 = vpack.c.b16 %v1690, %v1682
        %v2171 = vpack.c.b16 %v1691, %v1683
        %v2172 = vpack.c.b16 %v1692, %v1684
        %v2173 = vpack.c.b16 %v1701, %v1693
        %v2174 = vpack.c.b16 %v1702, %v1694
        %v2175 = vpack.c.b16 %v1703, %v1695
        %v2176 = vpack.c.b16 %v1704, %v1696
        %v2177 = vpack.c.b16 %v1705, %v1697
        %v2178 = vpack.c.b16 %v1706, %v1698
        %v2179 = vpack.c.b16 %v1707, %v1699
        %v2180 = vpack.c.b16 %v1708, %v1700
        %v2181 = vpack.c.b16 %v1717, %v1709
        %v2182 = vpack.c.b16 %v1718, %v1710
        %v2183 = vpack.c.b16 %v1719, %v1711
        %v2184 = vpack.c.b16 %v1720, %v1712
        %v2185 = vpack.c.b16 %v1721, %v1713
        %v2186 = vpack.c.b16 %v1722, %v1714
        %v2187 = vpack.c.b16 %v1723, %v1715
        %v2188 = vpack.c.b16 %v1724, %v1716
        %v2189 = vpack.c.b16 %v1733, %v1725
        %v2190 = vpack.c.b16 %v1734, %v1726
        %v2191 = vpack.c.b16 %v1735, %v1727
        %v2192 = vpack.c.b16 %v1736, %v1728
        %v2193 = vpack.c.b16 %v1737, %v1729
        %v2194 = vpack.c.b16 %v1738, %v1730
        %v2195 = vpack.c.b16 %v1739, %v1731
        %v2196 = vpack.c.b16 %v1740, %v1732
        %v2197 = vpack.c.b16 %v1749, %v1741
        %v2198 = vpack.c.b16 %v1750, %v1742
        %v2199 = vpack.c.b16 %v1751, %v1743
        %v2200 = vpack.c.b16 %v1752, %v1744
        %v2201 = vpack.c.b16 %v1753, %v1745
        %v2202 = vpack.c.b16 %v1754, %v1746
        %v2203 = vpack.c.b16 %v1755, %v1747
        %v2204 = vpack.c.b16 %v1756, %v1748
        %v2205 = vpack.c.b16 %v1765, %v1757
        %v2206 = vpack.c.b16 %v1766, %v1758
        %v2207 = vpack.c.b16 %v1767, %v1759
        %v2208 = vpack.c.b16 %v1768, %v1760
        %v2209 = vpack.c.b16 %v1769, %v1761
        %v2210 = vpack.c.b16 %v1770, %v1762
        %v2211 = vpack.c.b16 %v1771, %v1763
        %v2212 = vpack.c.b16 %v1772, %v1764
        %v2213 = vpack.c.b16 %v1781, %v1773
        %v2214 = vpack.c.b16 %v1782, %v1774
        %v2215 = vpack.c.b16 %v1783, %v1775
        %v2216 = vpack.c.b16 %v1784, %v1776
        %v2217 = vpack.c.b16 %v1785, %v1777
        %v2218 = vpack.c.b16 %v1786, %v1778
        %v2219 = vpack.c.b16 %v1787, %v1779
        %v2220 = vpack.c.b16 %v1788, %v1780
        %v2221 = vpack.c.b16 %v1797, %v1789
        %v2222 = vpack.c.b16 %v1798, %v1790
        %v2223 = vpack.c.b16 %v1799, %v1791
        %v2224 = vpack.c.b16 %v1800, %v1792
        %v2225 = vpack.c.b16 %v1801, %v1793
        %v2226 = vpack.c.b16 %v1802, %v1794
        %v2227 = vpack.c.b16 %v1803, %v1795
        %v2228 = vpack.c.b16 %v1804, %v1796
        %v2229 = vpack.c.b16 %v1813, %v1805
        %v2230 = vpack.c.b16 %v1814, %v1806
        %v2231 = vpack.c.b16 %v1815, %v1807
        %v2232 = vpack.c.b16 %v1816, %v1808
        %v2233 = vpack.c.b16 %v1817, %v1809
        %v2234 = vpack.c.b16 %v1818, %v1810
        %v2235 = vpack.c.b16 %v1819, %v1811
        %v2236 = vpack.c.b16 %v1820, %v1812
        %v2237 = vpack.c.b16 %v1829, %v1821
        %v2238 = vpack.c.b16 %v1830, %v1822
        %v2239 = vpack.c.b16 %v1831, %v1823
        %v2240 = vpack.c.b16 %v1832, %v1824
        %v2241 = vpack.c.b16 %v1833, %v1825
        %v2242 = vpack.c.b16 %v1834, %v1826
        %v2243 = vpack.c.b16 %v1835, %v1827
        %v2244 = vpack.c.b16 %v1836, %v1828
        %v2245 = vpack.c.b16 %v1845, %v1837
        %v2246 = vpack.c.b16 %v1846, %v1838
        %v2247 = vpack.c.b16 %v1847, %v1839
        %v2248 = vpack.c.b16 %v1848, %v1840
        %v2249 = vpack.c.b16 %v1849, %v1841
        %v2250 = vpack.c.b16 %v1850, %v1842
        %v2251 = vpack.c.b16 %v1851, %v1843
        %v2252 = vpack.c.b16 %v1852, %v1844
        %v2253 = vpack.c.b16 %v1861, %v1853
        %v2254 = vpack.c.b16 %v1862, %v1854
        %v2255 = vpack.c.b16 %v1863, %v1855
        %v2256 = vpack.c.b16 %v1864, %v1856
        %v2257 = vpack.c.b16 %v1865, %v1857
        %v2258 = vpack.c.b16 %v1866, %v1858
        %v2259 = vpack.c.b16 %v1867, %v1859
        %v2260 = vpack.c.b16 %v1868, %v1860
        %v2261 = vpack.c.b16 %v1877, %v1869
        %v2262 = vpack.c.b16 %v1878, %v1870
        %v2263 = vpack.c.b16 %v1879, %v1871
        %v2264 = vpack.c.b16 %v1880, %v1872
        %v2265 = vpack.c.b16 %v1881, %v1873
        %v2266 = vpack.c.b16 %v1882, %v1874
        %v2267 = vpack.c.b16 %v1883, %v1875
        %v2268 = vpack.c.b16 %v1884, %v1876
        %2653 = vmatprep.subr.bf16.mxu0 %v1886
        %2654 = vmatpush1.bf16.msra.mxu0 %v1885
        %2655 = vmatprep.subr.bf16.mxu0 %v1894
        %2656 = vmatpush1.bf16.msra.mxu0 %v1893
        %2657 = vmatprep.subr.bf16.mxu0 %v1902
        %2658 = vmatpush1.bf16.msra.mxu0 %v1901
        %2659 = vmatprep.subr.bf16.mxu0 %v1910
        %2660 = vmatpush1.bf16.msra.mxu0 %v1909
        %2661 = vmatprep.subr.bf16.mxu0 %v1918
        %2662 = vmatpush1.bf16.msra.mxu0 %v1917
        %2663 = vmatprep.subr.bf16.mxu0 %v1926
        %2664 = vmatpush1.bf16.msra.mxu0 %v1925
        %2665 = vmatprep.subr.bf16.mxu0 %v1934
        %2666 = vmatpush1.bf16.msra.mxu0 %v1933
        %2667 = vmatprep.subr.bf16.mxu0 %v1942
        %2668 = vmatpush1.bf16.msra.mxu0 %v1941
        %2669 = vmatprep.subr.bf16.mxu0 %v1950
        %2670 = vmatpush1.bf16.msra.mxu0 %v1949
        %2671 = vmatprep.subr.bf16.mxu0 %v1958
        %2672 = vmatpush1.bf16.msra.mxu0 %v1957
        %2673 = vmatprep.subr.bf16.mxu0 %v1966
        %2674 = vmatpush1.bf16.msra.mxu0 %v1965
        %2675 = vmatprep.subr.bf16.mxu0 %v1974
        %2676 = vmatpush1.bf16.msra.mxu0 %v1973
        %2677 = vmatprep.subr.bf16.mxu0 %v1982
        %2678 = vmatpush1.bf16.msra.mxu0 %v1981
        %2679 = vmatprep.subr.bf16.mxu0 %v1990
        %2680 = vmatpush1.bf16.msra.mxu0 %v1989
        %2681 = vmatprep.subr.bf16.mxu0 %v1998
        %2682 = vmatpush1.bf16.msra.mxu0 %v1997
        %2683 = vmatprep.subr.bf16.mxu0 %v2006
        %2684 = vmatpush1.bf16.msra.mxu0 %v2005
        %2685 = vmatprep.mubr.bf16.mxu0 %v722
        %2686 = vmatmul.mubr.bf16.gmra.mrb[0].mxu0 %v721
        %v2687 = vpop.f32.mrb[0].mxu0
        %v2688 = vadd.f32 0.0, %v2687
        %v2689 = vpop.f32.mrb[0].mxu0
        %v2690 = vadd.f32 0.0, %v2689
        %v2691 = vpop.f32.mrb[0].mxu0
        %v2692 = vadd.f32 0.0, %v2691
        %v2693 = vpop.f32.mrb[0].mxu0
        %v2694 = vadd.f32 0.0, %v2693
        %2695 = vdwg.mxu0
        %2696 = vmatprep.subr.bf16.mxu0 %v2014
        %2697 = vmatpush1.bf16.msra.mxu0 %v2013
        %2698 = vmatprep.subr.bf16.mxu0 %v2022
        %2699 = vmatpush1.bf16.msra.mxu0 %v2021
        %2700 = vmatprep.subr.bf16.mxu0 %v2030
        %2701 = vmatpush1.bf16.msra.mxu0 %v2029
        %2702 = vmatprep.subr.bf16.mxu0 %v2038
        %2703 = vmatpush1.bf16.msra.mxu0 %v2037
        %2704 = vmatprep.subr.bf16.mxu0 %v2046
        %2705 = vmatpush1.bf16.msra.mxu0 %v2045
        %2706 = vmatprep.subr.bf16.mxu0 %v2054
        %2707 = vmatpush1.bf16.msra.mxu0 %v2053
        %2708 = vmatprep.subr.bf16.mxu0 %v2062
        %2709 = vmatpush1.bf16.msra.mxu0 %v2061
        %2710 = vmatprep.subr.bf16.mxu0 %v2070
        %2711 = vmatpush1.bf16.msra.mxu0 %v2069
        %2712 = vmatprep.subr.bf16.mxu0 %v2078
        %2713 = vmatpush1.bf16.msra.mxu0 %v2077
        %2714 = vmatprep.subr.bf16.mxu0 %v2086
        %2715 = vmatpush1.bf16.msra.mxu0 %v2085
        %2716 = vmatprep.subr.bf16.mxu0 %v2094
        %2717 = vmatpush1.bf16.msra.mxu0 %v2093
        %2718 = vmatprep.subr.bf16.mxu0 %v2102
        %2719 = vmatpush1.bf16.msra.mxu0 %v2101
        %2720 = vmatprep.subr.bf16.mxu0 %v2110
        %2721 = vmatpush1.bf16.msra.mxu0 %v2109
        %2722 = vmatprep.subr.bf16.mxu0 %v2118
        %2723 = vmatpush1.bf16.msra.mxu0 %v2117
        %2724 = vmatprep.subr.bf16.mxu0 %v2126
        %2725 = vmatpush1.bf16.msra.mxu0 %v2125
        %2726 = vmatprep.subr.bf16.mxu0 %v2134
        %2727 = vmatpush1.bf16.msra.mxu0 %v2133
        %2728 = vmatprep.mubr.bf16.mxu0 %v724
        %2729 = vmatmul.mubr.bf16.gmra.mrb[0].mxu0 %v723
        %v2730 = vpop.f32.mrb[0].mxu0
        %v2731 = vadd.f32 %v2688, %v2730
        %v2732 = vpop.f32.mrb[0].mxu0
        %v2733 = vadd.f32 %v2690, %v2732
        %v2734 = vpop.f32.mrb[0].mxu0
        %v2735 = vadd.f32 %v2692, %v2734
        %v2736 = vpop.f32.mrb[0].mxu0
        %v2737 = vadd.f32 %v2694, %v2736
        %2738 = vdwg.mxu0
        %2739 = vmatprep.subr.bf16.mxu0 %v2142
        %2740 = vmatpush1.bf16.msra.mxu0 %v2141
        %2741 = vmatprep.subr.bf16.mxu0 %v2150
        %2742 = vmatpush1.bf16.msra.mxu0 %v2149
        %2743 = vmatprep.subr.bf16.mxu0 %v2158
        %2744 = vmatpush1.bf16.msra.mxu0 %v2157
        %2745 = vmatprep.subr.bf16.mxu0 %v2166
        %2746 = vmatpush1.bf16.msra.mxu0 %v2165
        %2747 = vmatprep.subr.bf16.mxu0 %v2174
        %2748 = vmatpush1.bf16.msra.mxu0 %v2173
        %2749 = vmatprep.subr.bf16.mxu0 %v2182
        %2750 = vmatpush1.bf16.msra.mxu0 %v2181
        %2751 = vmatprep.subr.bf16.mxu0 %v2190
        %2752 = vmatpush1.bf16.msra.mxu0 %v2189
        %2753 = vmatprep.subr.bf16.mxu0 %v2198
        %2754 = vmatpush1.bf16.msra.mxu0 %v2197
        %2755 = vmatprep.subr.bf16.mxu0 %v2206
        %2756 = vmatpush1.bf16.msra.mxu0 %v2205
        %2757 = vmatprep.subr.bf16.mxu0 %v2214
        %2758 = vmatpush1.bf16.msra.mxu0 %v2213
        %2759 = vmatprep.subr.bf16.mxu0 %v2222
        %2760 = vmatpush1.bf16.msra.mxu0 %v2221
        %2761 = vmatprep.subr.bf16.mxu0 %v2230
        %2762 = vmatpush1.bf16.msra.mxu0 %v2229
        %2763 = vmatprep.subr.bf16.mxu0 %v2238
        %2764 = vmatpush1.bf16.msra.mxu0 %v2237
        %2765 = vmatprep.subr.bf16.mxu0 %v2246
        %2766 = vmatpush1.bf16.msra.mxu0 %v2245
        %2767 = vmatprep.subr.bf16.mxu0 %v2254
        %2768 = vmatpush1.bf16.msra.mxu0 %v2253
        %2769 = vmatprep.subr.bf16.mxu0 %v2262
        %2770 = vmatpush1.bf16.msra.mxu0 %v2261
        %2771 = vmatprep.mubr.bf16.mxu0 %v726
        %2772 = vmatmul.mubr.bf16.gmra.mrb[0].mxu0 %v725
        %v2773 = vpop.f32.mrb[0].mxu0
        %v2774 = vadd.f32 %v2731, %v2773
        %v2775 = vpop.f32.mrb[0].mxu0
        %v2776 = vadd.f32 %v2733, %v2775
        %v2777 = vpop.f32.mrb[0].mxu0
        %v2778 = vadd.f32 %v2735, %v2777
        %v2779 = vpop.f32.mrb[0].mxu0
        %v2780 = vadd.f32 %v2737, %v2779
        %2781 = vdwg.mxu0
        %2782 = vmatprep.subr.bf16.mxu0 %v1888
        %2783 = vmatpush1.bf16.msra.mxu0 %v1887
        %2784 = vmatprep.subr.bf16.mxu0 %v1896
        %2785 = vmatpush1.bf16.msra.mxu0 %v1895
        %2786 = vmatprep.subr.bf16.mxu0 %v1904
        %2787 = vmatpush1.bf16.msra.mxu0 %v1903
        %2788 = vmatprep.subr.bf16.mxu0 %v1912
        %2789 = vmatpush1.bf16.msra.mxu0 %v1911
        %2790 = vmatprep.subr.bf16.mxu0 %v1920
        %2791 = vmatpush1.bf16.msra.mxu0 %v1919
        %2792 = vmatprep.subr.bf16.mxu0 %v1928
        %2793 = vmatpush1.bf16.msra.mxu0 %v1927
        %2794 = vmatprep.subr.bf16.mxu0 %v1936
        %2795 = vmatpush1.bf16.msra.mxu0 %v1935
        %2796 = vmatprep.subr.bf16.mxu0 %v1944
        %2797 = vmatpush1.bf16.msra.mxu0 %v1943
        %2798 = vmatprep.subr.bf16.mxu0 %v1952
        %2799 = vmatpush1.bf16.msra.mxu0 %v1951
        %2800 = vmatprep.subr.bf16.mxu0 %v1960
        %2801 = vmatpush1.bf16.msra.mxu0 %v1959
        %2802 = vmatprep.subr.bf16.mxu0 %v1968
        %2803 = vmatpush1.bf16.msra.mxu0 %v1967
        %2804 = vmatprep.subr.bf16.mxu0 %v1976
        %2805 = vmatpush1.bf16.msra.mxu0 %v1975
        %2806 = vmatprep.subr.bf16.mxu0 %v1984
        %2807 = vmatpush1.bf16.msra.mxu0 %v1983
        %2808 = vmatprep.subr.bf16.mxu0 %v1992
        %2809 = vmatpush1.bf16.msra.mxu0 %v1991
        %2810 = vmatprep.subr.bf16.mxu0 %v2000
        %2811 = vmatpush1.bf16.msra.mxu0 %v1999
        %2812 = vmatprep.subr.bf16.mxu0 %v2008
        %2813 = vmatpush1.bf16.msra.mxu0 %v2007
        %2814 = vmatprep.mubr.bf16.mxu0 %v722
        %2815 = vmatmul.mubr.bf16.gmra.mrb[0].mxu0 %v721
        %v2816 = vpop.f32.mrb[0].mxu0
        %v2817 = vadd.f32 0.0, %v2816
        %v2818 = vpop.f32.mrb[0].mxu0
        %v2819 = vadd.f32 0.0, %v2818
        %v2820 = vpop.f32.mrb[0].mxu0
        %v2821 = vadd.f32 0.0, %v2820
        %v2822 = vpop.f32.mrb[0].mxu0
        %v2823 = vadd.f32 0.0, %v2822
        %2824 = vdwg.mxu0
        %2825 = vmatprep.subr.bf16.mxu0 %v2016
        %2826 = vmatpush1.bf16.msra.mxu0 %v2015
        %2827 = vmatprep.subr.bf16.mxu0 %v2024
        %2828 = vmatpush1.bf16.msra.mxu0 %v2023
        %2829 = vmatprep.subr.bf16.mxu0 %v2032
        %2830 = vmatpush1.bf16.msra.mxu0 %v2031
        %2831 = vmatprep.subr.bf16.mxu0 %v2040
        %2832 = vmatpush1.bf16.msra.mxu0 %v2039
        %2833 = vmatprep.subr.bf16.mxu0 %v2048
        %2834 = vmatpush1.bf16.msra.mxu0 %v2047
        %2835 = vmatprep.subr.bf16.mxu0 %v2056
        %2836 = vmatpush1.bf16.msra.mxu0 %v2055
        %2837 = vmatprep.subr.bf16.mxu0 %v2064
        %2838 = vmatpush1.bf16.msra.mxu0 %v2063
        %2839 = vmatprep.subr.bf16.mxu0 %v2072
        %2840 = vmatpush1.bf16.msra.mxu0 %v2071
        %2841 = vmatprep.subr.bf16.mxu0 %v2080
        %2842 = vmatpush1.bf16.msra.mxu0 %v2079
        %2843 = vmatprep.subr.bf16.mxu0 %v2088
        %2844 = vmatpush1.bf16.msra.mxu0 %v2087
        %2845 = vmatprep.subr.bf16.mxu0 %v2096
        %2846 = vmatpush1.bf16.msra.mxu0 %v2095
        %2847 = vmatprep.subr.bf16.mxu0 %v2104
        %2848 = vmatpush1.bf16.msra.mxu0 %v2103
        %2849 = vmatprep.subr.bf16.mxu0 %v2112
        %2850 = vmatpush1.bf16.msra.mxu0 %v2111
        %2851 = vmatprep.subr.bf16.mxu0 %v2120
        %2852 = vmatpush1.bf16.msra.mxu0 %v2119
        %2853 = vmatprep.subr.bf16.mxu0 %v2128
        %2854 = vmatpush1.bf16.msra.mxu0 %v2127
        %2855 = vmatprep.subr.bf16.mxu0 %v2136
        %2856 = vmatpush1.bf16.msra.mxu0 %v2135
        %2857 = vmatprep.mubr.bf16.mxu0 %v724
        %2858 = vmatmul.mubr.bf16.gmra.mrb[0].mxu0 %v723
        %v2859 = vpop.f32.mrb[0].mxu0
        %v2860 = vadd.f32 %v2817, %v2859
        %v2861 = vpop.f32.mrb[0].mxu0
        %v2862 = vadd.f32 %v2819, %v2861
        %v2863 = vpop.f32.mrb[0].mxu0
        %v2864 = vadd.f32 %v2821, %v2863
        %v2865 = vpop.f32.mrb[0].mxu0
        %v2866 = vadd.f32 %v2823, %v2865
        %2867 = vdwg.mxu0
        %2868 = vmatprep.subr.bf16.mxu0 %v2144
        %2869 = vmatpush1.bf16.msra.mxu0 %v2143
        %2870 = vmatprep.subr.bf16.mxu0 %v2152
        %2871 = vmatpush1.bf16.msra.mxu0 %v2151
        %2872 = vmatprep.subr.bf16.mxu0 %v2160
        %2873 = vmatpush1.bf16.msra.mxu0 %v2159
        %2874 = vmatprep.subr.bf16.mxu0 %v2168
        %2875 = vmatpush1.bf16.msra.mxu0 %v2167
        %2876 = vmatprep.subr.bf16.mxu0 %v2176
        %2877 = vmatpush1.bf16.msra.mxu0 %v2175
        %2878 = vmatprep.subr.bf16.mxu0 %v2184
        %2879 = vmatpush1.bf16.msra.mxu0 %v2183
        %2880 = vmatprep.subr.bf16.mxu0 %v2192
        %2881 = vmatpush1.bf16.msra.mxu0 %v2191
        %2882 = vmatprep.subr.bf16.mxu0 %v2200
        %2883 = vmatpush1.bf16.msra.mxu0 %v2199
        %2884 = vmatprep.subr.bf16.mxu0 %v2208
        %2885 = vmatpush1.bf16.msra.mxu0 %v2207
        %2886 = vmatprep.subr.bf16.mxu0 %v2216
        %2887 = vmatpush1.bf16.msra.mxu0 %v2215
        %2888 = vmatprep.subr.bf16.mxu0 %v2224
        %2889 = vmatpush1.bf16.msra.mxu0 %v2223
        %2890 = vmatprep.subr.bf16.mxu0 %v2232
        %2891 = vmatpush1.bf16.msra.mxu0 %v2231
        %2892 = vmatprep.subr.bf16.mxu0 %v2240
        %2893 = vmatpush1.bf16.msra.mxu0 %v2239
        %2894 = vmatprep.subr.bf16.mxu0 %v2248
        %2895 = vmatpush1.bf16.msra.mxu0 %v2247
        %2896 = vmatprep.subr.bf16.mxu0 %v2256
        %2897 = vmatpush1.bf16.msra.mxu0 %v2255
        %2898 = vmatprep.subr.bf16.mxu0 %v2264
        %2899 = vmatpush1.bf16.msra.mxu0 %v2263
        %2900 = vmatprep.mubr.bf16.mxu0 %v726
        %2901 = vmatmul.mubr.bf16.gmra.mrb[0].mxu0 %v725
        %v2902 = vpop.f32.mrb[0].mxu0
        %v2903 = vadd.f32 %v2860, %v2902
        %v2904 = vpop.f32.mrb[0].mxu0
        %v2905 = vadd.f32 %v2862, %v2904
        %v2906 = vpop.f32.mrb[0].mxu0
        %v2907 = vadd.f32 %v2864, %v2906
        %v2908 = vpop.f32.mrb[0].mxu0
        %v2909 = vadd.f32 %v2866, %v2908
        %2910 = vdwg.mxu0
        %2911 = vmatprep.subr.bf16.mxu0 %v1890
        %2912 = vmatpush1.bf16.msra.mxu0 %v1889
        %2913 = vmatprep.subr.bf16.mxu0 %v1898
        %2914 = vmatpush1.bf16.msra.mxu0 %v1897
        %2915 = vmatprep.subr.bf16.mxu0 %v1906
        %2916 = vmatpush1.bf16.msra.mxu0 %v1905
        %2917 = vmatprep.subr.bf16.mxu0 %v1914
        %2918 = vmatpush1.bf16.msra.mxu0 %v1913
        %2919 = vmatprep.subr.bf16.mxu0 %v1922
        %2920 = vmatpush1.bf16.msra.mxu0 %v1921
        %2921 = vmatprep.subr.bf16.mxu0 %v1930
        %2922 = vmatpush1.bf16.msra.mxu0 %v1929
        %2923 = vmatprep.subr.bf16.mxu0 %v1938
        %2924 = vmatpush1.bf16.msra.mxu0 %v1937
        %2925 = vmatprep.subr.bf16.mxu0 %v1946
        %2926 = vmatpush1.bf16.msra.mxu0 %v1945
        %2927 = vmatprep.subr.bf16.mxu0 %v1954
        %2928 = vmatpush1.bf16.msra.mxu0 %v1953
        %2929 = vmatprep.subr.bf16.mxu0 %v1962
        %2930 = vmatpush1.bf16.msra.mxu0 %v1961
        %2931 = vmatprep.subr.bf16.mxu0 %v1970
        %2932 = vmatpush1.bf16.msra.mxu0 %v1969
        %2933 = vmatprep.subr.bf16.mxu0 %v1978
        %2934 = vmatpush1.bf16.msra.mxu0 %v1977
        %2935 = vmatprep.subr.bf16.mxu0 %v1986
        %2936 = vmatpush1.bf16.msra.mxu0 %v1985
        %2937 = vmatprep.subr.bf16.mxu0 %v1994
        %2938 = vmatpush1.bf16.msra.mxu0 %v1993
        %2939 = vmatprep.subr.bf16.mxu0 %v2002
        %2940 = vmatpush1.bf16.msra.mxu0 %v2001
        %2941 = vmatprep.subr.bf16.mxu0 %v2010
        %2942 = vmatpush1.bf16.msra.mxu0 %v2009
        %2943 = vmatprep.mubr.bf16.mxu0 %v722
        %2944 = vmatmul.mubr.bf16.gmra.mrb[0].mxu0 %v721
        %v2945 = vpop.f32.mrb[0].mxu0
        %v2946 = vadd.f32 0.0, %v2945
        %v2947 = vpop.f32.mrb[0].mxu0
        %v2948 = vadd.f32 0.0, %v2947
        %v2949 = vpop.f32.mrb[0].mxu0
        %v2950 = vadd.f32 0.0, %v2949
        %v2951 = vpop.f32.mrb[0].mxu0
        %v2952 = vadd.f32 0.0, %v2951
        %2953 = vdwg.mxu0
        %2954 = vmatprep.subr.bf16.mxu0 %v2018
        %2955 = vmatpush1.bf16.msra.mxu0 %v2017
        %2956 = vmatprep.subr.bf16.mxu0 %v2026
        %2957 = vmatpush1.bf16.msra.mxu0 %v2025
        %2958 = vmatprep.subr.bf16.mxu0 %v2034
        %2959 = vmatpush1.bf16.msra.mxu0 %v2033
        %2960 = vmatprep.subr.bf16.mxu0 %v2042
        %2961 = vmatpush1.bf16.msra.mxu0 %v2041
        %2962 = vmatprep.subr.bf16.mxu0 %v2050
        %2963 = vmatpush1.bf16.msra.mxu0 %v2049
        %2964 = vmatprep.subr.bf16.mxu0 %v2058
        %2965 = vmatpush1.bf16.msra.mxu0 %v2057
        %2966 = vmatprep.subr.bf16.mxu0 %v2066
        %2967 = vmatpush1.bf16.msra.mxu0 %v2065
        %2968 = vmatprep.subr.bf16.mxu0 %v2074
        %2969 = vmatpush1.bf16.msra.mxu0 %v2073
        %2970 = vmatprep.subr.bf16.mxu0 %v2082
        %2971 = vmatpush1.bf16.msra.mxu0 %v2081
        %2972 = vmatprep.subr.bf16.mxu0 %v2090
        %2973 = vmatpush1.bf16.msra.mxu0 %v2089
        %2974 = vmatprep.subr.bf16.mxu0 %v2098
        %2975 = vmatpush1.bf16.msra.mxu0 %v2097
        %2976 = vmatprep.subr.bf16.mxu0 %v2106
        %2977 = vmatpush1.bf16.msra.mxu0 %v2105
        %2978 = vmatprep.subr.bf16.mxu0 %v2114
        %2979 = vmatpush1.bf16.msra.mxu0 %v2113
        %2980 = vmatprep.subr.bf16.mxu0 %v2122
        %2981 = vmatpush1.bf16.msra.mxu0 %v2121
        %2982 = vmatprep.subr.bf16.mxu0 %v2130
        %2983 = vmatpush1.bf16.msra.mxu0 %v2129
        %2984 = vmatprep.subr.bf16.mxu0 %v2138
        %2985 = vmatpush1.bf16.msra.mxu0 %v2137
        %2986 = vmatprep.mubr.bf16.mxu0 %v724
        %2987 = vmatmul.mubr.bf16.gmra.mrb[0].mxu0 %v723
        %v2988 = vpop.f32.mrb[0].mxu0
        %v2989 = vadd.f32 %v2946, %v2988
        %v2990 = vpop.f32.mrb[0].mxu0
        %v2991 = vadd.f32 %v2948, %v2990
        %v2992 = vpop.f32.mrb[0].mxu0
        %v2993 = vadd.f32 %v2950, %v2992
        %v2994 = vpop.f32.mrb[0].mxu0
        %v2995 = vadd.f32 %v2952, %v2994
        %2996 = vdwg.mxu0
        %2997 = vmatprep.subr.bf16.mxu0 %v2146
        %2998 = vmatpush1.bf16.msra.mxu0 %v2145
        %2999 = vmatprep.subr.bf16.mxu0 %v2154
        %3000 = vmatpush1.bf16.msra.mxu0 %v2153
        %3001 = vmatprep.subr.bf16.mxu0 %v2162
        %3002 = vmatpush1.bf16.msra.mxu0 %v2161
        %3003 = vmatprep.subr.bf16.mxu0 %v2170
        %3004 = vmatpush1.bf16.msra.mxu0 %v2169
        %3005 = vmatprep.subr.bf16.mxu0 %v2178
        %3006 = vmatpush1.bf16.msra.mxu0 %v2177
        %3007 = vmatprep.subr.bf16.mxu0 %v2186
        %3008 = vmatpush1.bf16.msra.mxu0 %v2185
        %3009 = vmatprep.subr.bf16.mxu0 %v2194
        %3010 = vmatpush1.bf16.msra.mxu0 %v2193
        %3011 = vmatprep.subr.bf16.mxu0 %v2202
        %3012 = vmatpush1.bf16.msra.mxu0 %v2201
        %3013 = vmatprep.subr.bf16.mxu0 %v2210
        %3014 = vmatpush1.bf16.msra.mxu0 %v2209
        %3015 = vmatprep.subr.bf16.mxu0 %v2218
        %3016 = vmatpush1.bf16.msra.mxu0 %v2217
        %3017 = vmatprep.subr.bf16.mxu0 %v2226
        %3018 = vmatpush1.bf16.msra.mxu0 %v2225
        %3019 = vmatprep.subr.bf16.mxu0 %v2234
        %3020 = vmatpush1.bf16.msra.mxu0 %v2233
        %3021 = vmatprep.subr.bf16.mxu0 %v2242
        %3022 = vmatpush1.bf16.msra.mxu0 %v2241
        %3023 = vmatprep.subr.bf16.mxu0 %v2250
        %3024 = vmatpush1.bf16.msra.mxu0 %v2249
        %3025 = vmatprep.subr.bf16.mxu0 %v2258
        %3026 = vmatpush1.bf16.msra.mxu0 %v2257
        %3027 = vmatprep.subr.bf16.mxu0 %v2266
        %3028 = vmatpush1.bf16.msra.mxu0 %v2265
        %3029 = vmatprep.mubr.bf16.mxu0 %v726
        %3030 = vmatmul.mubr.bf16.gmra.mrb[0].mxu0 %v725
        %v3031 = vpop.f32.mrb[0].mxu0
        %v3032 = vadd.f32 %v2989, %v3031
        %v3033 = vpop.f32.mrb[0].mxu0
        %v3034 = vadd.f32 %v2991, %v3033
        %v3035 = vpop.f32.mrb[0].mxu0
        %v3036 = vadd.f32 %v2993, %v3035
        %v3037 = vpop.f32.mrb[0].mxu0
        %v3038 = vadd.f32 %v2995, %v3037
        %3039 = vdwg.mxu0
        %3040 = vmatprep.subr.bf16.mxu0 %v1892
        %3041 = vmatpush1.bf16.msra.mxu0 %v1891
        %3042 = vmatprep.subr.bf16.mxu0 %v1900
        %3043 = vmatpush1.bf16.msra.mxu0 %v1899
        %3044 = vmatprep.subr.bf16.mxu0 %v1908
        %3045 = vmatpush1.bf16.msra.mxu0 %v1907
        %3046 = vmatprep.subr.bf16.mxu0 %v1916
        %3047 = vmatpush1.bf16.msra.mxu0 %v1915
        %3048 = vmatprep.subr.bf16.mxu0 %v1924
        %3049 = vmatpush1.bf16.msra.mxu0 %v1923
        %3050 = vmatprep.subr.bf16.mxu0 %v1932
        %3051 = vmatpush1.bf16.msra.mxu0 %v1931
        %3052 = vmatprep.subr.bf16.mxu0 %v1940
        %3053 = vmatpush1.bf16.msra.mxu0 %v1939
        %3054 = vmatprep.subr.bf16.mxu0 %v1948
        %3055 = vmatpush1.bf16.msra.mxu0 %v1947
        %3056 = vmatprep.subr.bf16.mxu0 %v1956
        %3057 = vmatpush1.bf16.msra.mxu0 %v1955
        %3058 = vmatprep.subr.bf16.mxu0 %v1964
        %3059 = vmatpush1.bf16.msra.mxu0 %v1963
        %3060 = vmatprep.subr.bf16.mxu0 %v1972
        %3061 = vmatpush1.bf16.msra.mxu0 %v1971
        %3062 = vmatprep.subr.bf16.mxu0 %v1980
        %3063 = vmatpush1.bf16.msra.mxu0 %v1979
        %3064 = vmatprep.subr.bf16.mxu0 %v1988
        %3065 = vmatpush1.bf16.msra.mxu0 %v1987
        %3066 = vmatprep.subr.bf16.mxu0 %v1996
        %3067 = vmatpush1.bf16.msra.mxu0 %v1995
        %3068 = vmatprep.subr.bf16.mxu0 %v2004
        %3069 = vmatpush1.bf16.msra.mxu0 %v2003
        %3070 = vmatprep.subr.bf16.mxu0 %v2012
        %3071 = vmatpush1.bf16.msra.mxu0 %v2011
        %3072 = vmatprep.mubr.bf16.mxu0 %v722
        %3073 = vmatmul.mubr.bf16.gmra.mrb[0].mxu0 %v721
        %v3074 = vpop.f32.mrb[0].mxu0
        %v3075 = vadd.f32 0.0, %v3074
        %v3076 = vpop.f32.mrb[0].mxu0
        %v3077 = vadd.f32 0.0, %v3076
        %v3078 = vpop.f32.mrb[0].mxu0
        %v3079 = vadd.f32 0.0, %v3078
        %v3080 = vpop.f32.mrb[0].mxu0
        %v3081 = vadd.f32 0.0, %v3080
        %3082 = vdwg.mxu0
        %3083 = vmatprep.subr.bf16.mxu0 %v2020
        %3084 = vmatpush1.bf16.msra.mxu0 %v2019
        %3085 = vmatprep.subr.bf16.mxu0 %v2028
        %3086 = vmatpush1.bf16.msra.mxu0 %v2027
        %3087 = vmatprep.subr.bf16.mxu0 %v2036
        %3088 = vmatpush1.bf16.msra.mxu0 %v2035
        %3089 = vmatprep.subr.bf16.mxu0 %v2044
        %3090 = vmatpush1.bf16.msra.mxu0 %v2043
        %3091 = vmatprep.subr.bf16.mxu0 %v2052
        %3092 = vmatpush1.bf16.msra.mxu0 %v2051
        %3093 = vmatprep.subr.bf16.mxu0 %v2060
        %3094 = vmatpush1.bf16.msra.mxu0 %v2059
        %3095 = vmatprep.subr.bf16.mxu0 %v2068
        %3096 = vmatpush1.bf16.msra.mxu0 %v2067
        %3097 = vmatprep.subr.bf16.mxu0 %v2076
        %3098 = vmatpush1.bf16.msra.mxu0 %v2075
        %3099 = vmatprep.subr.bf16.mxu0 %v2084
        %3100 = vmatpush1.bf16.msra.mxu0 %v2083
        %3101 = vmatprep.subr.bf16.mxu0 %v2092
        %3102 = vmatpush1.bf16.msra.mxu0 %v2091
        %3103 = vmatprep.subr.bf16.mxu0 %v2100
        %3104 = vmatpush1.bf16.msra.mxu0 %v2099
        %3105 = vmatprep.subr.bf16.mxu0 %v2108
        %3106 = vmatpush1.bf16.msra.mxu0 %v2107
        %3107 = vmatprep.subr.bf16.mxu0 %v2116
        %3108 = vmatpush1.bf16.msra.mxu0 %v2115
        %3109 = vmatprep.subr.bf16.mxu0 %v2124
        %3110 = vmatpush1.bf16.msra.mxu0 %v2123
        %3111 = vmatprep.subr.bf16.mxu0 %v2132
        %3112 = vmatpush1.bf16.msra.mxu0 %v2131
        %3113 = vmatprep.subr.bf16.mxu0 %v2140
        %3114 = vmatpush1.bf16.msra.mxu0 %v2139
        %3115 = vmatprep.mubr.bf16.mxu0 %v724
        %3116 = vmatmul.mubr.bf16.gmra.mrb[0].mxu0 %v723
        %v3117 = vpop.f32.mrb[0].mxu0
        %v3118 = vadd.f32 %v3075, %v3117
        %v3119 = vpop.f32.mrb[0].mxu0
        %v3120 = vadd.f32 %v3077, %v3119
        %v3121 = vpop.f32.mrb[0].mxu0
        %v3122 = vadd.f32 %v3079, %v3121
        %v3123 = vpop.f32.mrb[0].mxu0
        %v3124 = vadd.f32 %v3081, %v3123
        %3125 = vdwg.mxu0
        %3126 = vmatprep.subr.bf16.mxu0 %v2148
        %3127 = vmatpush1.bf16.msra.mxu0 %v2147
        %3128 = vmatprep.subr.bf16.mxu0 %v2156
        %3129 = vmatpush1.bf16.msra.mxu0 %v2155
        %3130 = vmatprep.subr.bf16.mxu0 %v2164
        %3131 = vmatpush1.bf16.msra.mxu0 %v2163
        %3132 = vmatprep.subr.bf16.mxu0 %v2172
        %3133 = vmatpush1.bf16.msra.mxu0 %v2171
        %3134 = vmatprep.subr.bf16.mxu0 %v2180
        %3135 = vmatpush1.bf16.msra.mxu0 %v2179
        %3136 = vmatprep.subr.bf16.mxu0 %v2188
        %3137 = vmatpush1.bf16.msra.mxu0 %v2187
        %3138 = vmatprep.subr.bf16.mxu0 %v2196
        %3139 = vmatpush1.bf16.msra.mxu0 %v2195
        %3140 = vmatprep.subr.bf16.mxu0 %v2204
        %3141 = vmatpush1.bf16.msra.mxu0 %v2203
        %3142 = vmatprep.subr.bf16.mxu0 %v2212
        %3143 = vmatpush1.bf16.msra.mxu0 %v2211
        %3144 = vmatprep.subr.bf16.mxu0 %v2220
        %3145 = vmatpush1.bf16.msra.mxu0 %v2219
        %3146 = vmatprep.subr.bf16.mxu0 %v2228
        %3147 = vmatpush1.bf16.msra.mxu0 %v2227
        %3148 = vmatprep.subr.bf16.mxu0 %v2236
        %3149 = vmatpush1.bf16.msra.mxu0 %v2235
        %3150 = vmatprep.subr.bf16.mxu0 %v2244
        %3151 = vmatpush1.bf16.msra.mxu0 %v2243
        %3152 = vmatprep.subr.bf16.mxu0 %v2252
        %3153 = vmatpush1.bf16.msra.mxu0 %v2251
        %3154 = vmatprep.subr.bf16.mxu0 %v2260
        %3155 = vmatpush1.bf16.msra.mxu0 %v2259
        %3156 = vmatprep.subr.bf16.mxu0 %v2268
        %3157 = vmatpush1.bf16.msra.mxu0 %v2267
        %3158 = vmatprep.mubr.bf16.mxu0 %v726
        %3159 = vmatmul.mubr.bf16.gmra.mrb[0].mxu0 %v725
        %v3160 = vpop.f32.mrb[0].mxu0
        %v3161 = vadd.f32 %v3118, %v3160
        %v3162 = vpop.f32.mrb[0].mxu0
        %v3163 = vadd.f32 %v3120, %v3162
        %v3164 = vpop.f32.mrb[0].mxu0
        %v3165 = vadd.f32 %v3122, %v3164
        %v3166 = vpop.f32.mrb[0].mxu0
        %v3167 = vadd.f32 %v3124, %v3166
        %3168 = vdwg.mxu0
        %v3169 = vadd.f32 %v297, %v2774
        %v3170 = vadd.f32 %v298, %v2776
        %v3171 = vadd.f32 %v299, %v2903
        %v3172 = vadd.f32 %v300, %v2905
        %v3173 = vadd.f32 %v301, %v3032
        %v3174 = vadd.f32 %v302, %v3034
        %v3175 = vadd.f32 %v303, %v3161
        %v3176 = vadd.f32 %v304, %v3163
        %v3177 = vadd.f32 %v305, %v2778
        %v3178 = vadd.f32 %v306, %v2780
        %v3179 = vadd.f32 %v307, %v2907
        %v3180 = vadd.f32 %v308, %v2909
        %v3181 = vadd.f32 %v309, %v3036
        %v3182 = vadd.f32 %v310, %v3038
        %v3183 = vadd.f32 %v311, %v3165
        %v3184 = vadd.f32 %v312, %v3167
        %3185 = vst [vmem:[#allocation2] sm:$0xff] %v3169
        %3186 = vst [vmem:[#allocation2 + $0x8] sm:$0xff] %v3170
        %3187 = vst [vmem:[#allocation2 + $0x10] sm:$0xff] %v3171
        %3188 = vst [vmem:[#allocation2 + $0x18] sm:$0xff] %v3172
        %3189 = vst [vmem:[#allocation2 + $0x20] sm:$0xff] %v3173
        %3190 = vst [vmem:[#allocation2 + $0x28] sm:$0xff] %v3174
        %3191 = vst [vmem:[#allocation2 + $0x30] sm:$0xff] %v3175
        %3192 = vst [vmem:[#allocation2 + $0x38] sm:$0xff] %v3176
        %3193 = vst [vmem:[#allocation2 + $0x40] sm:$0xff] %v3177
        %3194 = vst [vmem:[#allocation2 + $0x48] sm:$0xff] %v3178
        %3195 = vst [vmem:[#allocation2 + $0x50] sm:$0xff] %v3179
        %3196 = vst [vmem:[#allocation2 + $0x58] sm:$0xff] %v3180
        %3197 = vst [vmem:[#allocation2 + $0x60] sm:$0xff] %v3181
        %3198 = vst [vmem:[#allocation2 + $0x68] sm:$0xff] %v3182
        %3199 = vst [vmem:[#allocation2 + $0x70] sm:$0xff] %v3183
        %3200 = vst [vmem:[#allocation2 + $0x78] sm:$0xff] %v3184
        %p3201 = scmp.eq.s32.totalorder %s23, 2
        // Predicated region
        $region60: #{_forward.1} parent=46 // pred_check
          %p3202 = pneg %p3201
        $region61: #{_forward.1} parent=46 // pred_check_branch
          %3204 = sbr.rel (%p3202) target = $region63
        $region62: #{_forward.1} parent=46 // pred_region
          %v3205 = vld [vmem:[#allocation2] sm:$0xf]
          %v3206 = vld [vmem:[#allocation2 + $0x8] sm:$0xf]
          %v3207 = vld [vmem:[#allocation2 + $0x10] sm:$0xf]
          %v3208 = vld [vmem:[#allocation2 + $0x18] sm:$0xf]
          %v3209 = vld [vmem:[#allocation2 + $0x60] sm:$0xf]
          %v3210 = vld [vmem:[#allocation2 + $0x68] sm:$0xf]
          %v3211 = vld [vmem:[#allocation2 + $0x70] sm:$0xf]
          %v3212 = vld [vmem:[#allocation2 + $0x78] sm:$0xf]
          %v3213 = vmul.f32 %v3205, %v3205
          %v3214 = vmul.f32 %v3206, %v3206
          %v3215 = vmul.f32 %v3207, %v3207
          %v3216 = vmul.f32 %v3208, %v3208
          %v3217 = vmul.f32 %v3209, %v3209
          %v3218 = vmul.f32 %v3210, %v3210
          %v3219 = vmul.f32 %v3211, %v3211
          %v3220 = vmul.f32 %v3212, %v3212
          %v3221 = vadd.f32 %v3213, %v3217
          %v3222 = vadd.f32 %v3214, %v3218
          %v3223 = vadd.f32 %v3215, %v3219
          %v3224 = vadd.f32 %v3216, %v3220
          %v3225 = vrsqrt.pop %v3221
          %v3226 = vmul.f32 %v3221, %v3225
          %vm3227 = vcmp.eq.f32.partialorder %v3221, inf
          %v3228 = vsel %vm3227, %v3221, %v3226
          %vm3229 = vcmp.eq.f32.partialorder %v3221, 0.0
          %v3230 = vand.u32 %v3221, 2147483648
          %v3231 = vsel %vm3229, %v3230, %v3228
          %v3232 = vrsqrt.pop %v3222
          %v3233 = vmul.f32 %v3222, %v3232
          %vm3234 = vcmp.eq.f32.partialorder %v3222, inf
          %v3235 = vsel %vm3234, %v3222, %v3233
          %vm3236 = vcmp.eq.f32.partialorder %v3222, 0.0
          %v3237 = vand.u32 %v3222, 2147483648
          %v3238 = vsel %vm3236, %v3237, %v3235
          %v3239 = vrsqrt.pop %v3223
          %v3240 = vmul.f32 %v3223, %v3239
          %vm3241 = vcmp.eq.f32.partialorder %v3223, inf
          %v3242 = vsel %vm3241, %v3223, %v3240
          %vm3243 = vcmp.eq.f32.partialorder %v3223, 0.0
          %v3244 = vand.u32 %v3223, 2147483648
          %v3245 = vsel %vm3243, %v3244, %v3242
          %v3246 = vrsqrt.pop %v3224
          %v3247 = vmul.f32 %v3224, %v3246
          %vm3248 = vcmp.eq.f32.partialorder %v3224, inf
          %v3249 = vsel %vm3248, %v3224, %v3247
          %vm3250 = vcmp.eq.f32.partialorder %v3224, 0.0
          %v3251 = vand.u32 %v3224, 2147483648
          %v3252 = vsel %vm3250, %v3251, %v3249
          %v3257 = vcombine.low %v3231, %v3238
          %v3258 = vcombine.low %v3245, %v3252
          %3261 = vst [vmem:[%s271] sm:$0xff] %v3257
          %3262 = vst [vmem:[%s271 + $0x8] sm:$0xff] %v3258
          %v3263 = vand.u32 2147483647, %v3205
          %v3264 = vand.u32 2147483647, %v3209
          %v3265 = vmin.f32 %v3263, %v3264
          %v3266 = vmax.f32 %v3263, %v3264
          %v3267 = vrcp.pop %v3266
          %v3268 = vmul.f32 %v3265, %v3267
          %v3269 = vmul.f32 %v3268, %v3268
          %v3270 = vmul.f32 0.002785687, %v3269
          %v3271 = vadd.f32 %v3270, -0.015866
          %v3272 = vmul.f32 %v3271, %v3269
          %v3273 = vadd.f32 %v3272, 0.04247222
          %v3274 = vmul.f32 %v3273, %v3269
          %v3275 = vadd.f32 %v3274, -0.074975304
          %v3276 = vmul.f32 %v3275, %v3269
          %v3277 = vadd.f32 %v3276, 0.1064488
          %v3278 = vmul.f32 %v3277, %v3269
          %v3279 = vadd.f32 %v3278, -0.14207031
          %v3280 = vmul.f32 %v3279, %v3269
          %v3281 = vadd.f32 %v3280, 0.19993454
          %v3282 = vmul.f32 %v3281, %v3269
          %v3283 = vadd.f32 %v3282, -0.33333147
          %v3284 = vmul.f32 %v3283, %v3269
          %v3285 = vmul.f32 %v3284, %v3268
          %v3286 = vadd.f32 %v3285, %v3268
          %vm3287 = vcmp.gt.f32.partialorder %v3264, %v3263
          %v3288 = vsub.f32 1.5707964, %v3286
          %v3289 = vsel %vm3287, %v3288, %v3286
          %vm3290 = vcmp.lt.f32.partialorder %v3205, 0.0
          %v3291 = vsub.f32 3.1415927, %v3289
          %v3292 = vsel %vm3290, %v3291, %v3289
          %vm3293 = vcmp.lt.s32.totalorder %v3205, 0
          %v3294 = vsel %vm3293, 3.1415927, 0.0
          %vm3295 = vcmp.eq.f32.partialorder %v3209, 0.0
          %v3296 = vsel %vm3295, %v3294, %v3292
          %vm3297 = vcmp.ne.f32.partialorder %v3205, %v3205
          %vm3298 = vcmp.ne.f32.partialorder %v3209, %v3209
          %vm3299 = vmor %vm3297, %vm3298
          %v3300 = vsel %vm3299, nan, %v3296
          %vm3301 = vcmp.lt.f32.partialorder %v3205, 0.0
          %v3302 = vsel %vm3301, 2.3561945, 0.7853982
          %vm3303 = vcmp.eq.s32.totalorder %v3263, inf
          %vm3304 = vcmp.eq.s32.totalorder %v3264, inf
          %vm3305 = vmand %vm3303, %vm3304
          %v3306 = vsel %vm3305, %v3302, %v3300
          %v3307 = vand.u32 2147483647, %v3306
          %v3308 = vand.u32 %v3209, 2147483648
          %v3309 = vor.u32 %v3307, %v3308
          %v3310 = vand.u32 2147483647, %v3206
          %v3311 = vand.u32 2147483647, %v3210
          %v3312 = vmin.f32 %v3310, %v3311
          %v3313 = vmax.f32 %v3310, %v3311
          %v3314 = vrcp.pop %v3313
          %v3315 = vmul.f32 %v3312, %v3314
          %v3316 = vmul.f32 %v3315, %v3315
          %v3317 = vmul.f32 0.002785687, %v3316
          %v3318 = vadd.f32 %v3317, -0.015866
          %v3319 = vmul.f32 %v3318, %v3316
          %v3320 = vadd.f32 %v3319, 0.04247222
          %v3321 = vmul.f32 %v3320, %v3316
          %v3322 = vadd.f32 %v3321, -0.074975304
          %v3323 = vmul.f32 %v3322, %v3316
          %v3324 = vadd.f32 %v3323, 0.1064488
          %v3325 = vmul.f32 %v3324, %v3316
          %v3326 = vadd.f32 %v3325, -0.14207031
          %v3327 = vmul.f32 %v3326, %v3316
          %v3328 = vadd.f32 %v3327, 0.19993454
          %v3329 = vmul.f32 %v3328, %v3316
          %v3330 = vadd.f32 %v3329, -0.33333147
          %v3331 = vmul.f32 %v3330, %v3316
          %v3332 = vmul.f32 %v3331, %v3315
          %v3333 = vadd.f32 %v3332, %v3315
          %vm3334 = vcmp.gt.f32.partialorder %v3311, %v3310
          %v3335 = vsub.f32 1.5707964, %v3333
          %v3336 = vsel %vm3334, %v3335, %v3333
          %vm3337 = vcmp.lt.f32.partialorder %v3206, 0.0
          %v3338 = vsub.f32 3.1415927, %v3336
          %v3339 = vsel %vm3337, %v3338, %v3336
          %vm3340 = vcmp.lt.s32.totalorder %v3206, 0
          %v3341 = vsel %vm3340, 3.1415927, 0.0
          %vm3342 = vcmp.eq.f32.partialorder %v3210, 0.0
          %v3343 = vsel %vm3342, %v3341, %v3339
          %vm3344 = vcmp.ne.f32.partialorder %v3206, %v3206
          %vm3345 = vcmp.ne.f32.partialorder %v3210, %v3210
          %vm3346 = vmor %vm3344, %vm3345
          %v3347 = vsel %vm3346, nan, %v3343
          %vm3348 = vcmp.lt.f32.partialorder %v3206, 0.0
          %v3349 = vsel %vm3348, 2.3561945, 0.7853982
          %vm3350 = vcmp.eq.s32.totalorder %v3310, inf
          %vm3351 = vcmp.eq.s32.totalorder %v3311, inf
          %vm3352 = vmand %vm3350, %vm3351
          %v3353 = vsel %vm3352, %v3349, %v3347
          %v3354 = vand.u32 2147483647, %v3353
          %v3355 = vand.u32 %v3210, 2147483648
          %v3356 = vor.u32 %v3354, %v3355
          %v3357 = vand.u32 2147483647, %v3207
          %v3358 = vand.u32 2147483647, %v3211
          %v3359 = vmin.f32 %v3357, %v3358
          %v3360 = vmax.f32 %v3357, %v3358
          %v3361 = vrcp.pop %v3360
          %v3362 = vmul.f32 %v3359, %v3361
          %v3363 = vmul.f32 %v3362, %v3362
          %v3364 = vmul.f32 0.002785687, %v3363
          %v3365 = vadd.f32 %v3364, -0.015866
          %v3366 = vmul.f32 %v3365, %v3363
          %v3367 = vadd.f32 %v3366, 0.04247222
          %v3368 = vmul.f32 %v3367, %v3363
          %v3369 = vadd.f32 %v3368, -0.074975304
          %v3370 = vmul.f32 %v3369, %v3363
          %v3371 = vadd.f32 %v3370, 0.1064488
          %v3372 = vmul.f32 %v3371, %v3363
          %v3373 = vadd.f32 %v3372, -0.14207031
          %v3374 = vmul.f32 %v3373, %v3363
          %v3375 = vadd.f32 %v3374, 0.19993454
          %v3376 = vmul.f32 %v3375, %v3363
          %v3377 = vadd.f32 %v3376, -0.33333147
          %v3378 = vmul.f32 %v3377, %v3363
          %v3379 = vmul.f32 %v3378, %v3362
          %v3380 = vadd.f32 %v3379, %v3362
          %vm3381 = vcmp.gt.f32.partialorder %v3358, %v3357
          %v3382 = vsub.f32 1.5707964, %v3380
          %v3383 = vsel %vm3381, %v3382, %v3380
          %vm3384 = vcmp.lt.f32.partialorder %v3207, 0.0
          %v3385 = vsub.f32 3.1415927, %v3383
          %v3386 = vsel %vm3384, %v3385, %v3383
          %vm3387 = vcmp.lt.s32.totalorder %v3207, 0
          %v3388 = vsel %vm3387, 3.1415927, 0.0
          %vm3389 = vcmp.eq.f32.partialorder %v3211, 0.0
          %v3390 = vsel %vm3389, %v3388, %v3386
          %vm3391 = vcmp.ne.f32.partialorder %v3207, %v3207
          %vm3392 = vcmp.ne.f32.partialorder %v3211, %v3211
          %vm3393 = vmor %vm3391, %vm3392
          %v3394 = vsel %vm3393, nan, %v3390
          %vm3395 = vcmp.lt.f32.partialorder %v3207, 0.0
          %v3396 = vsel %vm3395, 2.3561945, 0.7853982
          %vm3397 = vcmp.eq.s32.totalorder %v3357, inf
          %vm3398 = vcmp.eq.s32.totalorder %v3358, inf
          %vm3399 = vmand %vm3397, %vm3398
          %v3400 = vsel %vm3399, %v3396, %v3394
          %v3401 = vand.u32 2147483647, %v3400
          %v3402 = vand.u32 %v3211, 2147483648
          %v3403 = vor.u32 %v3401, %v3402
          %v3404 = vand.u32 2147483647, %v3208
          %v3405 = vand.u32 2147483647, %v3212
          %v3406 = vmin.f32 %v3404, %v3405
          %v3407 = vmax.f32 %v3404, %v3405
          %v3408 = vrcp.pop %v3407
          %v3409 = vmul.f32 %v3406, %v3408
          %v3410 = vmul.f32 %v3409, %v3409
          %v3411 = vmul.f32 0.002785687, %v3410
          %v3412 = vadd.f32 %v3411, -0.015866
          %v3413 = vmul.f32 %v3412, %v3410
          %v3414 = vadd.f32 %v3413, 0.04247222
          %v3415 = vmul.f32 %v3414, %v3410
          %v3416 = vadd.f32 %v3415, -0.074975304
          %v3417 = vmul.f32 %v3416, %v3410
          %v3418 = vadd.f32 %v3417, 0.1064488
          %v3419 = vmul.f32 %v3418, %v3410
          %v3420 = vadd.f32 %v3419, -0.14207031
          %v3421 = vmul.f32 %v3420, %v3410
          %v3422 = vadd.f32 %v3421, 0.19993454
          %v3423 = vmul.f32 %v3422, %v3410
          %v3424 = vadd.f32 %v3423, -0.33333147
          %v3425 = vmul.f32 %v3424, %v3410
          %v3426 = vmul.f32 %v3425, %v3409
          %v3427 = vadd.f32 %v3426, %v3409
          %vm3428 = vcmp.gt.f32.partialorder %v3405, %v3404
          %v3429 = vsub.f32 1.5707964, %v3427
          %v3430 = vsel %vm3428, %v3429, %v3427
          %vm3431 = vcmp.lt.f32.partialorder %v3208, 0.0
          %v3432 = vsub.f32 3.1415927, %v3430
          %v3433 = vsel %vm3431, %v3432, %v3430
          %vm3434 = vcmp.lt.s32.totalorder %v3208, 0
          %v3435 = vsel %vm3434, 3.1415927, 0.0
          %vm3436 = vcmp.eq.f32.partialorder %v3212, 0.0
          %v3437 = vsel %vm3436, %v3435, %v3433
          %vm3438 = vcmp.ne.f32.partialorder %v3208, %v3208
          %vm3439 = vcmp.ne.f32.partialorder %v3212, %v3212
          %vm3440 = vmor %vm3438, %vm3439
          %v3441 = vsel %vm3440, nan, %v3437
          %vm3442 = vcmp.lt.f32.partialorder %v3208, 0.0
          %v3443 = vsel %vm3442, 2.3561945, 0.7853982
          %vm3444 = vcmp.eq.s32.totalorder %v3404, inf
          %vm3445 = vcmp.eq.s32.totalorder %v3405, inf
          %vm3446 = vmand %vm3444, %vm3445
          %v3447 = vsel %vm3446, %v3443, %v3441
          %v3448 = vand.u32 2147483647, %v3447
          %v3449 = vand.u32 %v3212, 2147483648
          %v3450 = vor.u32 %v3448, %v3449
          %v3455 = vcombine.low %v3309, %v3356
          %v3456 = vcombine.low %v3403, %v3450
          %3459 = vst [vmem:[%s276] sm:$0xff] %v3455
          %3460 = vst [vmem:[%s276 + $0x8] sm:$0xff] %v3456
        $region63: #{_forward.1} parent=46 // pred_fallthru
          _
        %p3461 = scmp.lt.s32.totalorder %s22, 1
        %s3462 = scalar_select %p3461, %s22, 1
        %s3463 = smul.addr %s3462, 4
        %s3464 = smul.addr %s3463, 4
        %s3465 = scalar_lea.vmem %s2, %s3464
        %p3466 = scmp.lt.s32.totalorder %s22, 1
        %s3467 = scalar_select %p3466, %s22, 1
        %s3468 = smul.addr %s3467, 4
        %s3469 = smul.addr %s3468, 4
        %s3470 = scalar_lea.vmem %s3, %s3469
        // Predicated region
        $region64: #{_forward.1} parent=46 // pred_check
          %p3471 = pneg %p104
        $region65: #{_forward.1} parent=46 // pred_check_branch
          %3473 = sbr.rel (%p3471) target = $region67
        $region66: #{_forward.1} parent=46 // pred_region
          _
        $region67: #{_forward.1} parent=46 // pred_fallthru
          _
        // Predicated region
        $region68: #{_forward.1} parent=46 // pred_check
          %p3474 = pneg %p130
        $region69: #{_forward.1} parent=46 // pred_check_branch
          %3476 = sbr.rel (%p3474) target = $region71
        $region70: #{_forward.1} parent=46 // pred_region
          _
        $region71: #{_forward.1} parent=46 // pred_fallthru
          _
      $region47: #{_forward.1} parent=5 // pred_fallthru
        _
      %p3477 = scmp.le.s32.totalorder 2, %s13
      // Predicated region
      $region72: #{_forward.1} parent=5 // pred_check
        %p3478 = pneg %p3477
      $region73: #{_forward.1} parent=5 // pred_check_branch
        %3480 = sbr.rel (%p3478) target = $region75
      $region74: #{_forward.1} parent=5 // pred_region
        %s3481 = ssub.s32 %s13, 2
        // Predicated region
        $region76: #{_forward.1} parent=74 // pred_check
          %p3482 = pneg %p110
        $region77: #{_forward.1} parent=74 // pred_check_branch
          %3484 = sbr.rel (%p3482) target = $region79
        $region78: #{_forward.1} parent=74 // pred_region
          %p3485 = scmp.lt.s32.totalorder %s24, 1
          %s3486 = scalar_select %p3485, %s24, 1
          %s3487 = smul.addr %s3486, 4
          %s3488 = smul.addr %s3487, 4
          %s3489 = scalar_lea.vmem %s2, %s3488
        $region79: #{_forward.1} parent=74 // pred_fallthru
          _
        // Predicated region
        $region80: #{_forward.1} parent=74 // pred_check
          %p3490 = pneg %p136
        $region81: #{_forward.1} parent=74 // pred_check_branch
          %3492 = sbr.rel (%p3490) target = $region83
        $region82: #{_forward.1} parent=74 // pred_region
          %p3493 = scmp.lt.s32.totalorder %s24, 1
          %s3494 = scalar_select %p3493, %s24, 1
          %s3495 = smul.addr %s3494, 4
          %s3496 = smul.addr %s3495, 4
          %s3497 = scalar_lea.vmem %s3, %s3496
        $region83: #{_forward.1} parent=74 // pred_fallthru
          _
      $region75: #{_forward.1} parent=5 // pred_fallthru
        _
    $region6: #{_forward.1} parent=1 // loop_footer
      %s17 = sadd.s32 1, %s13
    $region7: #{_forward.1} parent=1 // loop_footer_branch
      %12 = sbr.rel target = $region3
    $region8: #{_forward.1} parent=1 // loop_exit
      _
    %3498 = vsyncpa [#allocation5], 1
    %s3499 = scalar_lea.sflag [#allocation5], 1
    %3500 = vsyncpa %s3499, 1

</llo_original>
